<compile_context>
chip_gen: v5e
topology: v5e:2x2
jax: 0.10.0
libtpu: 0.0.40
codegen_flags: <defaults>
</compile_context>

<pallas_src>
import functools
import math

import jax
import jax.numpy as jnp
from jax.experimental import pallas as pl
from jax.experimental.pallas import tpu as pltpu


# ---------------------------------------------------------------------------
# Fused kernel. Grid = (batch, query-tile).  One x block (1, C, S) stays
# resident across all query tiles of a batch element; K/V/GroupNorm-affine
# live in persistent VMEM scratch, recomputed whenever qi == 0.
# ---------------------------------------------------------------------------
def _spatial_attn_kernel(x_ref, gmat_ref, gamma_ref, beta_ref,
                         wq_ref, bq_ref, wk_ref, bk_ref, wv_ref, bv_ref,
                         wp_ref, bp_ref,
                         o_ref,
                         scale_ref, shift_ref, k_ref, v_ref,
                         *, attn_scale, eps, tq, compute_dtype, approx_recip):
    qi = pl.program_id(1)
    C, S = k_ref.shape

    # ---- per-batch prologue: GroupNorm affine + K/V into scratch ----------
    @pl.when(qi == 0)
    def _prologue():
        x = x_ref[0].astype(jnp.float32)                       # (C, S)
        inv_s = 1.0 / float(S)
        # Reduce-then-project stats: lane sums first, then the tiny group-
        # membership matmul (gmat rows are 1/group_size on the group block).
        sum_x = jnp.sum(x, axis=-1, keepdims=True)             # (C, 1)
        sum_x2 = jnp.sum(x * x, axis=-1, keepdims=True)        # (C, 1)
        gm = gmat_ref[...]                                     # (C, C) f32
        mean = jnp.dot(gm, sum_x, preferred_element_type=jnp.float32) * inv_s
        ex2 = jnp.dot(gm, sum_x2, preferred_element_type=jnp.float32) * inv_s
        # One-pass variance (E[x^2]-mean^2): fine in f32 for sane inputs.
        var = ex2 - mean * mean
        rstd = jax.lax.rsqrt(var + eps)                        # (C, 1)
        scl = rstd * gamma_ref[...]                            # (C, 1)
        shf = beta_ref[...] - mean * scl                       # (C, 1)
        scale_ref[...] = scl
        shift_ref[...] = shf

        h = (x * scl + shf).astype(compute_dtype)              # (C, S), bf16
        # K kept in (C, S): standard matmul (C,C)x(C,S).
        k_acc = jnp.einsum('oc,cs->os', wk_ref[...], h,
                           preferred_element_type=jnp.float32)
        k_ref[...] = (k_acc + bk_ref[...]).astype(compute_dtype)
        # V kept in (S, C): cast-before-transpose, then trans_b matmul.
        ht = h.T                                               # (S, C), bf16
        v_acc = jnp.einsum('sc,oc->so', ht, wv_ref[...],
                           preferred_element_type=jnp.float32)
        v_ref[...] = (v_acc + bv_ref[...]).astype(compute_dtype)

    # ---- per query-tile work ----------------------------------------------
    q_start = pl.multiple_of(qi * tq, tq)
    x_tile = x_ref[0, :, pl.ds(q_start, tq)].astype(jnp.float32)    # (C, Tq)
    h_tile = (x_tile * scale_ref[...] + shift_ref[...]).astype(compute_dtype)
    qt = h_tile.T                                                    # (Tq, C)

    q = jnp.einsum('qc,oc->qo', qt, wq_ref[...],
                   preferred_element_type=jnp.float32)               # (Tq, C)
    q = (q + bq_ref[...]).astype(compute_dtype)

    # Scores over the FULL key dim (exact softmax, no online pass needed).
    scores = jnp.einsum('qc,cs->qs', q, k_ref[...],
                        preferred_element_type=jnp.float32) * attn_scale
    m = jnp.max(scores, axis=-1, keepdims=True)
    p = jnp.exp(scores - m)                                          # (Tq, S)
    rowsum = jnp.sum(p, axis=-1, keepdims=True)                      # (Tq, 1)

    # Deferred normalization: PV with un-normalized p, scale afterwards.
    pv = jnp.einsum('qk,kc->qc', p.astype(compute_dtype), v_ref[...],
                    preferred_element_type=jnp.float32)              # (Tq, C)
    h_att = (pv * pl.reciprocal(rowsum, approx=approx_recip)).astype(compute_dtype)

    # proj_out back to (C, Tq) layout + residual; lane-dense store.
    out_tile = jnp.einsum('oc,qc->oq', wp_ref[...], h_att,
                          preferred_element_type=jnp.float32) + bp_ref[...]
    o_ref[0] = (x_tile + out_tile).astype(o_ref.dtype)


def _pick_tq(S):
    """Largest lane-aligned query tile that divides S and keeps the (Tq,S)
    f32 score tile modest; fall back to the full (untiled) spatial extent."""
    for tq in (512, 256, 128):
        if S % tq == 0 and (tq * S * 4 <= 8 * 1024 * 1024 or tq == 128):
            return tq
    return S


# ---------------------------------------------------------------------------
# Module wrapper (params + forward)
# ---------------------------------------------------------------------------
class SpatialSelfAttention:
    NUM_GROUPS = 32
    EPS = 1e-6

    def __init__(self, in_channels: int, key):
        assert in_channels % self.NUM_GROUPS == 0, "GroupNorm(32) needs C % 32 == 0"
        C = in_channels
        self.in_channels = C

        ks = jax.random.split(key, 10)
        bound = 1.0 / math.sqrt(C)  # Conv2d(k=1) default init bound (fan_in = C)

        def u(k, shape, lo, hi):
            return jax.random.uniform(k, shape, jnp.float32, lo, hi)

        self.params = {
            'wq': u(ks[0], (C, C), -bound, bound), 'bq': u(ks[1], (C,), -bound, bound),
            'wk': u(ks[2], (C, C), -bound, bound), 'bk': u(ks[3], (C,), -bound, bound),
            'wv': u(ks[4], (C, C), -bound, bound), 'bv': u(ks[5], (C,), -bound, bound),
            'wp': u(ks[6], (C, C), -bound, bound), 'bp': u(ks[7], (C,), -bound, bound),
            # PyTorch defaults are gamma=1, beta=0; randomize slightly so the
            # affine path is actually exercised by the correctness check.
            'gamma': u(ks[8], (C,), 0.8, 1.2),
            'beta': u(ks[9], (C,), -0.1, 0.1),
        }

        # Group-membership matrix (C, C), rows scaled by 1/group_size, kept f32.
        cg = C // self.NUM_GROUPS
        gid = jnp.arange(C) // cg
        self.gmat = (gid[:, None] == gid[None, :]).astype(jnp.float32) / float(cg)

    def forward(self, x, compute_dtype=None):
        """x: NCHW. Returns x + proj(attn(norm(x)))."""
        B, C, H, W = x.shape
        S = H * W
        cd = jnp.bfloat16 if compute_dtype is None else compute_dtype
        p = self.params

        tq = _pick_tq(S)
        n_qt = S // tq

        x_seq = x.reshape(B, C, S)          # free reshape; lane dim = S
        itemsize_x = jnp.dtype(x.dtype).itemsize
        itemsize_c = jnp.dtype(cd).itemsize

        # Per-generation VMEM budget derived from the actual working set.
        est = (2 * C * S * itemsize_x          # x block (double-buffered, resident)
               + 2 * C * tq * itemsize_x       # out block (double-buffered)
               + 2 * C * S * itemsize_c        # K + V persistent scratch
               + 2 * tq * S * 4                # score / exp transients (f32)
               + C * S * (4 + itemsize_c)      # prologue normalized-h transients
               + 8 * C * C * itemsize_c        # weights (double-buffered)
               + 4 * 1024 * 1024)              # misc headroom
        try:
            phys_vmem = int(getattr(pltpu.get_tpu_info(), "vmem_capacity_bytes",
                                    64 * 1024 * 1024))
        except Exception:
            phys_vmem = 64 * 1024 * 1024       # conservative (v7x per-TC)
        vmem_limit = int(min(max(est, 32 * 1024 * 1024), int(phys_vmem * 0.85)))

        # Pre-cast projection weights once (bf16 MXU fast path, half the DMA).
        wq = p['wq'].astype(cd); wk = p['wk'].astype(cd)
        wv = p['wv'].astype(cd); wp = p['wp'].astype(cd)

        const = lambda b, qi: (0, 0)  # noqa: E731  (weights/biases: constant block)
        out_seq = pl.pallas_call(
            functools.partial(_spatial_attn_kernel,
                              attn_scale=float(C) ** (-0.5),
                              eps=self.EPS,
                              tq=tq,
                              compute_dtype=cd,
                              approx_recip=(cd != jnp.float32)),
            out_shape=jax.ShapeDtypeStruct((B, C, S), x.dtype),
            grid_spec=pltpu.PrefetchScalarGridSpec(
                num_scalar_prefetch=0,
                grid=(B, n_qt),
                in_specs=[
                    pl.BlockSpec((1, C, S), lambda b, qi: (b, 0, 0)),   # x (resident per b)
                    pl.BlockSpec((C, C), const),                        # group matrix
                    pl.BlockSpec((C, 1), const),                        # gamma
                    pl.BlockSpec((C, 1), const),                        # beta
                    pl.BlockSpec((C, C), const),                        # Wq
                    pl.BlockSpec((1, C), const),                        # bq
                    pl.BlockSpec((C, C), const),                        # Wk
                    pl.BlockSpec((C, 1), const),                        # bk
                    pl.BlockSpec((C, C), const),                        # Wv
                    pl.BlockSpec((1, C), const),                        # bv
                    pl.BlockSpec((C, C), const),                        # Wp (proj_out)
                    pl.BlockSpec((C, 1), const),                        # bp
                ],
                out_specs=pl.BlockSpec((1, C, tq), lambda b, qi: (b, 0, qi)),
                scratch_shapes=[
                    pltpu.VMEM((C, 1), jnp.float32),   # GroupNorm scale (rstd*gamma)
                    pltpu.VMEM((C, 1), jnp.float32),   # GroupNorm shift
                    pltpu.VMEM((C, S), cd),            # K (C, S)
                    pltpu.VMEM((S, C), cd),            # V (S, C)
                ],
            ),
            compiler_params=pltpu.CompilerParams(
                # batch elements independent -> shard across v7x's 2 TCs; the
                # query-tile axis carries the per-batch K/V scratch.
                dimension_semantics=("parallel", "arbitrary"),
                vmem_limit_bytes=vmem_limit,
            ),
        )(x_seq, self.gmat,
          p['gamma'].reshape(C, 1), p['beta'].reshape(C, 1),
          wq, p['bq'].reshape(1, C),
          wk, p['bk'].reshape(C, 1),
          wv, p['bv'].reshape(1, C),
          wp, p['bp'].reshape(C, 1))

        return out_seq.reshape(B, C, H, W)

    __call__ = forward


# ---------------------------------------------------------------------------
# Plain-XLA reference (mirrors the PyTorch forward) for the correctness check
# ---------------------------------------------------------------------------
def _ref_forward(x, params, *, num_groups=32, eps=1e-6):
    B, C, H, W = x.shape
    S = H * W
    xg = x.reshape(B, num_groups, (C // num_groups) * S)
    mean = xg.mean(-1, keepdims=True)
    var = xg.var(-1, keepdims=True)
    xn = (xg - mean) / jnp.sqrt(var + eps)
    xn = xn.reshape(B, C, H, W)
    xn = xn * params['gamma'].reshape(1, C, 1, 1) + params['beta'].reshape(1, C, 1, 1)

    hseq = xn.reshape(B, C, S)
    q = jnp.einsum('oc,bcs->bos', params['wq'], hseq) + params['bq'][None, :, None]
    k = jnp.einsum('oc,bcs->bos', params['wk'], hseq) + params['bk'][None, :, None]
    v = jnp.einsum('oc,bcs->bos', params['wv'], hseq) + params['bv'][None, :, None]

    w_ = jnp.einsum('bci,bcj->bij', q, k) * (float(C) ** (-0.5))   # (B, Sq, Sk)
    w_ = jax.nn.softmax(w_, axis=2)
    h_ = jnp.einsum('bcj,bij->bci', v, w_)                         # (B, C, Sq)
    h_ = jnp.einsum('oc,bcs->bos', params['wp'], h_) + params['bp'][None, :, None]
    return x + h_.reshape(B, C, H, W)


if __name__ == "__main__":
    key = jax.random.PRNGKey(0)
    k_params, k_x = jax.random.split(key)

    # Small shapes consistent with the module: C must be a multiple of 32
    # (GroupNorm with 32 groups); 64 channels exercises group size > 1.
    N, C, H, W = 2, 64, 16, 16

    module = SpatialSelfAttention(C, k_params)
    x = jax.random.normal(k_x, (N, C, H, W), jnp.float32)

    ref = _ref_forward(x, module.params)

    # f32 compute path: tight check against the XLA reference.
    out_f32 = jax.block_until_ready(module.forward(x, compute_dtype=jnp.float32))
    assert out_f32.shape == x.shape
    err_f32 = float(jnp.max(jnp.abs(out_f32 - ref)))
    assert err_f32 < 2e-3, f"f32 path max |err| = {err_f32}"

    # Default bf16 MXU path (performance path): looser tolerance.
    out_bf16 = jax.block_until_ready(module.forward(x))
    err_bf16 = float(jnp.max(jnp.abs(out_bf16 - ref)))
    assert err_bf16 < 6e-2, f"bf16 path max |err| = {err_bf16}"

    print("KERNEL_OK")
</pallas_src>

<mosaic_0001>
module attributes {stable_mosaic.version = 11 : i64} {
  func.func @_spatial_attn_kernel(%arg0: i32, %arg1: i32, %arg2: memref<1x64x256xf32, #tpu.memory_space<vmem>>, %arg3: memref<64x64xf32, #tpu.memory_space<vmem>>, %arg4: memref<64x1xf32, #tpu.memory_space<vmem>>, %arg5: memref<64x1xf32, #tpu.memory_space<vmem>>, %arg6: memref<64x64xf32, #tpu.memory_space<vmem>>, %arg7: memref<1x64xf32, #tpu.memory_space<vmem>>, %arg8: memref<64x64xf32, #tpu.memory_space<vmem>>, %arg9: memref<64x1xf32, #tpu.memory_space<vmem>>, %arg10: memref<64x64xf32, #tpu.memory_space<vmem>>, %arg11: memref<1x64xf32, #tpu.memory_space<vmem>>, %arg12: memref<64x64xf32, #tpu.memory_space<vmem>>, %arg13: memref<64x1xf32, #tpu.memory_space<vmem>>, %arg14: memref<1x64x256xf32, #tpu.memory_space<vmem>>, %arg15: memref<64x1xf32, #tpu.memory_space<vmem>>, %arg16: memref<64x1xf32, #tpu.memory_space<vmem>>, %arg17: memref<64x256xf32, #tpu.memory_space<vmem>>, %arg18: memref<256x64xf32, #tpu.memory_space<vmem>>) attributes {dimension_semantics = [#tpu.dimension_semantics<parallel>, #tpu.dimension_semantics<arbitrary>], iteration_bounds = array<i64: 2, 1>, scalar_prefetch = 0 : i64, scratch_operands = 4 : i64, tpu.core_type = #tpu.core_type<tc>, window_params = [{transform_indices = @transform_0, window_bounds = array<i64: 1, 64, 256>}, {pipeline_mode = #tpu.pipeline_mode<synchronous>, transform_indices = @transform_1, window_bounds = array<i64: 64, 64>}, {pipeline_mode = #tpu.pipeline_mode<synchronous>, transform_indices = @transform_2, window_bounds = array<i64: 64, 1>}, {pipeline_mode = #tpu.pipeline_mode<synchronous>, transform_indices = @transform_3, window_bounds = array<i64: 64, 1>}, {pipeline_mode = #tpu.pipeline_mode<synchronous>, transform_indices = @transform_4, window_bounds = array<i64: 64, 64>}, {pipeline_mode = #tpu.pipeline_mode<synchronous>, transform_indices = @transform_5, window_bounds = array<i64: 1, 64>}, {pipeline_mode = #tpu.pipeline_mode<synchronous>, transform_indices = @transform_6, window_bounds = array<i64: 64, 64>}, {pipeline_mode = #tpu.pipeline_mode<synchronous>, transform_indices = @transform_7, window_bounds = array<i64: 64, 1>}, {pipeline_mode = #tpu.pipeline_mode<synchronous>, transform_indices = @transform_8, window_bounds = array<i64: 64, 64>}, {pipeline_mode = #tpu.pipeline_mode<synchronous>, transform_indices = @transform_9, window_bounds = array<i64: 1, 64>}, {pipeline_mode = #tpu.pipeline_mode<synchronous>, transform_indices = @transform_10, window_bounds = array<i64: 64, 64>}, {pipeline_mode = #tpu.pipeline_mode<synchronous>, transform_indices = @transform_11, window_bounds = array<i64: 64, 1>}, {transform_indices = @transform_12, window_bounds = array<i64: 1, 64, 256>}]} {
    %c0_i32 = arith.constant 0 : i32
    %0 = arith.cmpi eq, %arg1, %c0_i32 : i32
    %1 = arith.extui %0 : i1 to i32
    %c0_i32_0 = arith.constant 0 : i32
    %2 = arith.cmpi ne, %1, %c0_i32_0 : i32
    scf.if %2 {
      %c0_27 = arith.constant 0 : index
      %c0_28 = arith.constant 0 : index
      %c0_29 = arith.constant 0 : index
      %45 = vector.load %arg2[%c0_27, %c0_28, %c0_29] : memref<1x64x256xf32, #tpu.memory_space<vmem>>, vector<1x64x256xf32>
      %46 = vector.shape_cast %45 : vector<1x64x256xf32> to vector<64x256xf32>
      %cst_30 = arith.constant dense<0.000000e+00> : vector<64xf32>
      %47 = vector.multi_reduction <add>, %46, %cst_30 [1] : vector<64x256xf32> to vector<64xf32>
      %48 = vector.shape_cast %47 : vector<64xf32> to vector<64x1xf32>
      %49 = arith.mulf %46, %46 : vector<64x256xf32>
      %cst_31 = arith.constant dense<0.000000e+00> : vector<64xf32>
      %50 = vector.multi_reduction <add>, %49, %cst_31 [1] : vector<64x256xf32> to vector<64xf32>
      %51 = vector.shape_cast %50 : vector<64xf32> to vector<64x1xf32>
      %c0_32 = arith.constant 0 : index
      %c0_33 = arith.constant 0 : index
      %52 = vector.load %arg3[%c0_32, %c0_33] : memref<64x64xf32, #tpu.memory_space<vmem>>, vector<64x64xf32>
      %cst_34 = arith.constant dense<0.000000e+00> : vector<64x1xf32>
      %53 = tpu.matmul %52, %48, %cst_34 {dimension_numbers = #tpu.dot_dimension_numbers<[1], [0], [0], [1], [0, 0, 1, 1], [], []>} : vector<64x64xf32>, vector<64x1xf32>, vector<64x1xf32> -> vector<64x1xf32>
      %cst_35 = arith.constant 3.906250e-03 : f32
      %54 = vector.broadcast %cst_35 : f32 to vector<64x1xf32>
      %55 = arith.mulf %53, %54 : vector<64x1xf32>
      %cst_36 = arith.constant dense<0.000000e+00> : vector<64x1xf32>
      %56 = tpu.matmul %52, %51, %cst_36 {dimension_numbers = #tpu.dot_dimension_numbers<[1], [0], [0], [1], [0, 0, 1, 1], [], []>} : vector<64x64xf32>, vector<64x1xf32>, vector<64x1xf32> -> vector<64x1xf32>
      %cst_37 = arith.constant 3.906250e-03 : f32
      %57 = vector.broadcast %cst_37 : f32 to vector<64x1xf32>
      %58 = arith.mulf %56, %57 : vector<64x1xf32>
      %59 = arith.mulf %55, %55 : vector<64x1xf32>
      %60 = arith.subf %58, %59 : vector<64x1xf32>
      %cst_38 = arith.constant 9.99999997E-7 : f32
      %61 = vector.broadcast %cst_38 : f32 to vector<64x1xf32>
      %62 = arith.addf %60, %61 : vector<64x1xf32>
      %63 = math.rsqrt %62 : vector<64x1xf32>
      %c0_39 = arith.constant 0 : index
      %c0_40 = arith.constant 0 : index
      %64 = vector.load %arg4[%c0_39, %c0_40] : memref<64x1xf32, #tpu.memory_space<vmem>>, vector<64x1xf32>
      %65 = arith.mulf %63, %64 : vector<64x1xf32>
      %c0_41 = arith.constant 0 : index
      %c0_42 = arith.constant 0 : index
      %66 = vector.load %arg5[%c0_41, %c0_42] : memref<64x1xf32, #tpu.memory_space<vmem>>, vector<64x1xf32>
      %67 = arith.mulf %55, %65 : vector<64x1xf32>
      %68 = arith.subf %66, %67 : vector<64x1xf32>
      %c0_43 = arith.constant 0 : index
      %c0_44 = arith.constant 0 : index
      %69 = vector.load %arg15[%c0_43, %c0_44] : memref<64x1xf32, #tpu.memory_space<vmem>>, vector<64x1xf32>
      tpu.vector_store %arg15[%c0_43, %c0_44], %65 {strides = array<i32>} : memref<64x1xf32, #tpu.memory_space<vmem>>, vector<64x1xf32>,
      %c0_45 = arith.constant 0 : index
      %c0_46 = arith.constant 0 : index
      %70 = vector.load %arg16[%c0_45, %c0_46] : memref<64x1xf32, #tpu.memory_space<vmem>>, vector<64x1xf32>
      tpu.vector_store %arg16[%c0_45, %c0_46], %68 {strides = array<i32>} : memref<64x1xf32, #tpu.memory_space<vmem>>, vector<64x1xf32>,
      %71 = vector.broadcast %65 : vector<64x1xf32> to vector<64x256xf32>
      %72 = arith.mulf %46, %71 : vector<64x256xf32>
      %73 = vector.broadcast %68 : vector<64x1xf32> to vector<64x256xf32>
      %74 = arith.addf %72, %73 : vector<64x256xf32>
      %c0_47 = arith.constant 0 : index
      %c0_48 = arith.constant 0 : index
      %75 = vector.load %arg8[%c0_47, %c0_48] : memref<64x64xf32, #tpu.memory_space<vmem>>, vector<64x64xf32>
      "tpu.trace_start"() <{level = 10 : i32, message = "oc,cs->os"}> : () -> ()
      %cst_49 = arith.constant dense<0.000000e+00> : vector<64x256xf32>
      %76 = tpu.matmul %75, %74, %cst_49 {dimension_numbers = #tpu.dot_dimension_numbers<[1], [0], [0], [1], [0, 0, 1, 1], [], []>} : vector<64x64xf32>, vector<64x256xf32>, vector<64x256xf32> -> vector<64x256xf32>
      "tpu.trace_stop"() : () -> ()
      %c0_50 = arith.constant 0 : index
      %c0_51 = arith.constant 0 : index
      %77 = vector.load %arg9[%c0_50, %c0_51] : memref<64x1xf32, #tpu.memory_space<vmem>>, vector<64x1xf32>
      %78 = vector.broadcast %77 : vector<64x1xf32> to vector<64x256xf32>
      %79 = arith.addf %76, %78 : vector<64x256xf32>
      %c0_52 = arith.constant 0 : index
      %c0_53 = arith.constant 0 : index
      %80 = vector.load %arg17[%c0_52, %c0_53] : memref<64x256xf32, #tpu.memory_space<vmem>>, vector<64x256xf32>
      tpu.vector_store %arg17[%c0_52, %c0_53], %79 {strides = array<i32>} : memref<64x256xf32, #tpu.memory_space<vmem>>, vector<64x256xf32>,
      %81 = tpu.transpose %74, [1, 0] : vector<64x256xf32> -> vector<256x64xf32>
      %c0_54 = arith.constant 0 : index
      %c0_55 = arith.constant 0 : index
      %82 = vector.load %arg10[%c0_54, %c0_55] : memref<64x64xf32, #tpu.memory_space<vmem>>, vector<64x64xf32>
      "tpu.trace_start"() <{level = 10 : i32, message = "sc,oc->so"}> : () -> ()
      %cst_56 = arith.constant dense<0.000000e+00> : vector<256x64xf32>
      %83 = tpu.matmul %81, %82, %cst_56 {dimension_numbers = #tpu.dot_dimension_numbers<[1], [1], [0], [0], [0, 0, 1, 0], [], []>} : vector<256x64xf32>, vector<64x64xf32>, vector<256x64xf32> -> vector<256x64xf32>
      "tpu.trace_stop"() : () -> ()
      %c0_57 = arith.constant 0 : index
      %c0_58 = arith.constant 0 : index
      %84 = vector.load %arg11[%c0_57, %c0_58] : memref<1x64xf32, #tpu.memory_space<vmem>>, vector<1x64xf32>
      %85 = vector.broadcast %84 : vector<1x64xf32> to vector<256x64xf32>
      %86 = arith.addf %83, %85 : vector<256x64xf32>
      %c0_59 = arith.constant 0 : index
      %c0_60 = arith.constant 0 : index
      %87 = vector.load %arg18[%c0_59, %c0_60] : memref<256x64xf32, #tpu.memory_space<vmem>>, vector<256x64xf32>
      tpu.vector_store %arg18[%c0_59, %c0_60], %86 {strides = array<i32>} : memref<256x64xf32, #tpu.memory_space<vmem>>, vector<256x64xf32>,
    } else {
    }
    %c256_i32 = arith.constant 256 : i32
    %3 = arith.muli %arg1, %c256_i32 : i32
    %4 = tpu.assume_multiple %3, 256 : i32
    %c0 = arith.constant 0 : index
    %c0_1 = arith.constant 0 : index
    %5 = arith.index_cast %4 : i32 to index
    %6 = vector.load %arg2[%c0, %c0_1, %5] : memref<1x64x256xf32, #tpu.memory_space<vmem>>, vector<1x64x256xf32>
    %7 = vector.shape_cast %6 : vector<1x64x256xf32> to vector<64x256xf32>
    %c0_2 = arith.constant 0 : index
    %c0_3 = arith.constant 0 : index
    %8 = vector.load %arg15[%c0_2, %c0_3] : memref<64x1xf32, #tpu.memory_space<vmem>>, vector<64x1xf32>
    %9 = vector.broadcast %8 : vector<64x1xf32> to vector<64x256xf32>
    %10 = arith.mulf %7, %9 : vector<64x256xf32>
    %c0_4 = arith.constant 0 : index
    %c0_5 = arith.constant 0 : index
    %11 = vector.load %arg16[%c0_4, %c0_5] : memref<64x1xf32, #tpu.memory_space<vmem>>, vector<64x1xf32>
    %12 = vector.broadcast %11 : vector<64x1xf32> to vector<64x256xf32>
    %13 = arith.addf %10, %12 : vector<64x256xf32>
    %14 = tpu.transpose %13, [1, 0] : vector<64x256xf32> -> vector<256x64xf32>
    %c0_6 = arith.constant 0 : index
    %c0_7 = arith.constant 0 : index
    %15 = vector.load %arg6[%c0_6, %c0_7] : memref<64x64xf32, #tpu.memory_space<vmem>>, vector<64x64xf32>
    "tpu.trace_start"() <{level = 10 : i32, message = "qc,oc->qo"}> : () -> ()
    %cst = arith.constant dense<0.000000e+00> : vector<256x64xf32>
    %16 = tpu.matmul %14, %15, %cst {dimension_numbers = #tpu.dot_dimension_numbers<[1], [1], [0], [0], [0, 0, 1, 0], [], []>} : vector<256x64xf32>, vector<64x64xf32>, vector<256x64xf32> -> vector<256x64xf32>
    "tpu.trace_stop"() : () -> ()
    %c0_8 = arith.constant 0 : index
    %c0_9 = arith.constant 0 : index
    %17 = vector.load %arg7[%c0_8, %c0_9] : memref<1x64xf32, #tpu.memory_space<vmem>>, vector<1x64xf32>
    %18 = vector.broadcast %17 : vector<1x64xf32> to vector<256x64xf32>
    %19 = arith.addf %16, %18 : vector<256x64xf32>
    %c0_10 = arith.constant 0 : index
    %c0_11 = arith.constant 0 : index
    %20 = vector.load %arg17[%c0_10, %c0_11] : memref<64x256xf32, #tpu.memory_space<vmem>>, vector<64x256xf32>
    "tpu.trace_start"() <{level = 10 : i32, message = "qc,cs->qs"}> : () -> ()
    %cst_12 = arith.constant dense<0.000000e+00> : vector<256x256xf32>
    %21 = tpu.matmul %19, %20, %cst_12 {dimension_numbers = #tpu.dot_dimension_numbers<[1], [0], [0], [1], [0, 0, 1, 1], [], []>} : vector<256x64xf32>, vector<64x256xf32>, vector<256x256xf32> -> vector<256x256xf32>
    "tpu.trace_stop"() : () -> ()
    %cst_13 = arith.constant 1.250000e-01 : f32
    %22 = vector.broadcast %cst_13 : f32 to vector<256x256xf32>
    %23 = arith.mulf %21, %22 : vector<256x256xf32>
    %cst_14 = arith.constant dense<0xFF800000> : vector<256xf32>
    %24 = vector.multi_reduction <maximumf>, %23, %cst_14 [1] : vector<256x256xf32> to vector<256xf32>
    %25 = vector.shape_cast %24 : vector<256xf32> to vector<256x1xf32>
    %26 = vector.broadcast %25 : vector<256x1xf32> to vector<256x256xf32>
    %27 = arith.subf %23, %26 : vector<256x256xf32>
    %28 = math.exp %27 : vector<256x256xf32>
    %cst_15 = arith.constant dense<0.000000e+00> : vector<256xf32>
    %29 = vector.multi_reduction <add>, %28, %cst_15 [1] : vector<256x256xf32> to vector<256xf32>
    %30 = vector.shape_cast %29 : vector<256xf32> to vector<256x1xf32>
    %c0_16 = arith.constant 0 : index
    %c0_17 = arith.constant 0 : index
    %31 = vector.load %arg18[%c0_16, %c0_17] : memref<256x64xf32, #tpu.memory_space<vmem>>, vector<256x64xf32>
    "tpu.trace_start"() <{level = 10 : i32, message = "qk,kc->qc"}> : () -> ()
    %cst_18 = arith.constant dense<0.000000e+00> : vector<256x64xf32>
    %32 = tpu.matmul %28, %31, %cst_18 {dimension_numbers = #tpu.dot_dimension_numbers<[1], [0], [0], [1], [0, 0, 1, 1], [], []>} : vector<256x256xf32>, vector<256x64xf32>, vector<256x64xf32> -> vector<256x64xf32>
    "tpu.trace_stop"() : () -> ()
    %33 = tpu.reciprocal %30 : vector<256x1xf32> -> vector<256x1xf32>
    %34 = vector.broadcast %33 : vector<256x1xf32> to vector<256x64xf32>
    %35 = arith.mulf %32, %34 : vector<256x64xf32>
    %c0_19 = arith.constant 0 : index
    %c0_20 = arith.constant 0 : index
    %36 = vector.load %arg12[%c0_19, %c0_20] : memref<64x64xf32, #tpu.memory_space<vmem>>, vector<64x64xf32>
    "tpu.trace_start"() <{level = 10 : i32, message = "oc,qc->oq"}> : () -> ()
    %cst_21 = arith.constant dense<0.000000e+00> : vector<64x256xf32>
    %37 = tpu.matmul %36, %35, %cst_21 {dimension_numbers = #tpu.dot_dimension_numbers<[1], [1], [0], [0], [0, 0, 1, 0], [], []>} : vector<64x64xf32>, vector<256x64xf32>, vector<64x256xf32> -> vector<64x256xf32>
    "tpu.trace_stop"() : () -> ()
    %c0_22 = arith.constant 0 : index
    %c0_23 = arith.constant 0 : index
    %38 = vector.load %arg13[%c0_22, %c0_23] : memref<64x1xf32, #tpu.memory_space<vmem>>, vector<64x1xf32>
    %39 = vector.broadcast %38 : vector<64x1xf32> to vector<64x256xf32>
    %40 = arith.addf %37, %39 : vector<64x256xf32>
    %41 = arith.addf %7, %40 : vector<64x256xf32>
    %c0_24 = arith.constant 0 : index
    %c0_25 = arith.constant 0 : index
    %c0_26 = arith.constant 0 : index
    %42 = vector.load %arg14[%c0_24, %c0_25, %c0_26] : memref<1x64x256xf32, #tpu.memory_space<vmem>>, vector<1x64x256xf32>
    %43 = vector.shape_cast %42 : vector<1x64x256xf32> to vector<64x256xf32>
    %44 = vector.shape_cast %41 : vector<64x256xf32> to vector<1x64x256xf32>
    tpu.vector_store %arg14[%c0_24, %c0_25, %c0_26], %44 {strides = array<i32>} : memref<1x64x256xf32, #tpu.memory_space<vmem>>, vector<1x64x256xf32>,
    return
  }
  func.func @transform_0(%arg0: i32, %arg1: i32) -> (i32, i32, i32) {
    %c0_i32 = arith.constant 0 : i32
    %c0_i32_0 = arith.constant 0 : i32
    %c0_i32_1 = arith.constant 0 : i32
    return %arg0, %c0_i32, %c0_i32_0 : i32, i32, i32
  }
  func.func @transform_1(%arg0: i32, %arg1: i32) -> (i32, i32) {
    %c0_i32 = arith.constant 0 : i32
    %c0_i32_0 = arith.constant 0 : i32
    %c0_i32_1 = arith.constant 0 : i32
    return %c0_i32, %c0_i32_0 : i32, i32
  }
  func.func @transform_2(%arg0: i32, %arg1: i32) -> (i32, i32) {
    %c0_i32 = arith.constant 0 : i32
    %c0_i32_0 = arith.constant 0 : i32
    %c0_i32_1 = arith.constant 0 : i32
    return %c0_i32, %c0_i32_0 : i32, i32
  }
  func.func @transform_3(%arg0: i32, %arg1: i32) -> (i32, i32) {
    %c0_i32 = arith.constant 0 : i32
    %c0_i32_0 = arith.constant 0 : i32
    %c0_i32_1 = arith.constant 0 : i32
    return %c0_i32, %c0_i32_0 : i32, i32
  }
  func.func @transform_4(%arg0: i32, %arg1: i32) -> (i32, i32) {
    %c0_i32 = arith.constant 0 : i32
    %c0_i32_0 = arith.constant 0 : i32
    %c0_i32_1 = arith.constant 0 : i32
    return %c0_i32, %c0_i32_0 : i32, i32
  }
  func.func @transform_5(%arg0: i32, %arg1: i32) -> (i32, i32) {
    %c0_i32 = arith.constant 0 : i32
    %c0_i32_0 = arith.constant 0 : i32
    %c0_i32_1 = arith.constant 0 : i32
    return %c0_i32, %c0_i32_0 : i32, i32
  }
  func.func @transform_6(%arg0: i32, %arg1: i32) -> (i32, i32) {
    %c0_i32 = arith.constant 0 : i32
    %c0_i32_0 = arith.constant 0 : i32
    %c0_i32_1 = arith.constant 0 : i32
    return %c0_i32, %c0_i32_0 : i32, i32
  }
  func.func @transform_7(%arg0: i32, %arg1: i32) -> (i32, i32) {
    %c0_i32 = arith.constant 0 : i32
    %c0_i32_0 = arith.constant 0 : i32
    %c0_i32_1 = arith.constant 0 : i32
    return %c0_i32, %c0_i32_0 : i32, i32
  }
  func.func @transform_8(%arg0: i32, %arg1: i32) -> (i32, i32) {
    %c0_i32 = arith.constant 0 : i32
    %c0_i32_0 = arith.constant 0 : i32
    %c0_i32_1 = arith.constant 0 : i32
    return %c0_i32, %c0_i32_0 : i32, i32
  }
  func.func @transform_9(%arg0: i32, %arg1: i32) -> (i32, i32) {
    %c0_i32 = arith.constant 0 : i32
    %c0_i32_0 = arith.constant 0 : i32
    %c0_i32_1 = arith.constant 0 : i32
    return %c0_i32, %c0_i32_0 : i32, i32
  }
  func.func @transform_10(%arg0: i32, %arg1: i32) -> (i32, i32) {
    %c0_i32 = arith.constant 0 : i32
    %c0_i32_0 = arith.constant 0 : i32
    %c0_i32_1 = arith.constant 0 : i32
    return %c0_i32, %c0_i32_0 : i32, i32
  }
  func.func @transform_11(%arg0: i32, %arg1: i32) -> (i32, i32) {
    %c0_i32 = arith.constant 0 : i32
    %c0_i32_0 = arith.constant 0 : i32
    %c0_i32_1 = arith.constant 0 : i32
    return %c0_i32, %c0_i32_0 : i32, i32
  }
  func.func @transform_12(%arg0: i32, %arg1: i32) -> (i32, i32, i32) {
    %c0_i32 = arith.constant 0 : i32
    %c0_i32_0 = arith.constant 0 : i32
    return %arg0, %c0_i32, %arg1 : i32, i32, i32
  }
}

</mosaic_0001>

<llo_original>
// kernel: tpu_custom_call.1
$region0: #{tpu_custom_call.1}
  #allocation0 [shape = 'u32[]', space=smem, size = 0x4, offset = 0x4, fixed_abs, tag = 'smem constant byte address 0x4 - core index']
  #allocation1 [shape = 'u32[72,128]{1,0:T(1,128)}', space=vmem, size = 0x9000, scoped, tag = 'internal scratch']
  #allocation2 [shape = 'f32[64,1]{1,0:T(8,128)}', space=vmem, size = 0x8000, scoped, tag = 'scratch operand']
  #allocation3 [shape = 'f32[64,1]{1,0:T(8,128)}', space=vmem, size = 0x8000, scoped, tag = 'scratch operand']
  #allocation4 [shape = 'f32[64,256]{1,0:T(8,128)}', space=vmem, size = 0x10000, scoped, tag = 'scratch operand']
  #allocation5 [shape = 'f32[256,64]{1,0:T(8,128)}', space=vmem, size = 0x20000, scoped, tag = 'scratch operand']
  %s0 = inlined_call_operand.hbm [shape: f32[2,64,256], index: 0, kind: input, shape index: {}]
  %s1 = inlined_call_operand.vmem [shape: f32[64,64], index: 1, kind: input, shape index: {}]
  %s2 = inlined_call_operand.vmem [shape: f32[64,1], index: 2, kind: input, shape index: {}]
  %s3 = inlined_call_operand.vmem [shape: f32[64,1], index: 3, kind: input, shape index: {}]
  %s4 = inlined_call_operand.vmem [shape: f32[64,64], index: 4, kind: input, shape index: {}]
  %s5 = inlined_call_operand.vmem [shape: f32[1,64], index: 5, kind: input, shape index: {}]
  %s6 = inlined_call_operand.vmem [shape: f32[64,64], index: 6, kind: input, shape index: {}]
  %s7 = inlined_call_operand.vmem [shape: f32[64,1], index: 7, kind: input, shape index: {}]
  %s8 = inlined_call_operand.vmem [shape: f32[64,64], index: 8, kind: input, shape index: {}]
  %s9 = inlined_call_operand.vmem [shape: f32[1,64], index: 9, kind: input, shape index: {}]
  %s10 = inlined_call_operand.hbm [shape: f32[64,64], index: 10, kind: input, shape index: {}]
  %s11 = inlined_call_operand.vmem [shape: f32[64,1], index: 11, kind: input, shape index: {}]
  %s12 = inlined_call_operand.hbm [shape: f32[2,64,256], index: 12, kind: output, shape index: {}]
  %s13 = sld [smem:[#allocation0]]
  $region93: #{tpu_custom_call.1} parent=0
    _
  %s15 = ssub.s32 1, %s13
  %s16 = scalar_select 0, %s15, %s13
  $region1: #{tpu_custom_call.1} parent=0
    #allocation6 [shape = 'u8[131072]{0}', space=vmem, size = 0x20000, scoped, tag = 'input window, operand 0']
    #allocation7 [shape = 's32[2]{0}', space=sflag, size = 0x8, scoped, tag = 'scoped memory for tpu_custom_call.1']
    #allocation8 [shape = 's32[2]{0}', space=sflag, size = 0x8, scoped, tag = 'scoped memory for tpu_custom_call.1']
    #allocation9 [shape = 'u8[32768]{0}', space=vmem, size = 0x8000, scoped, tag = 'input window, operand 10, single buffered']
    #allocation10 [shape = 's32[1]{0}', space=sflag, size = 0x4, scoped, tag = 'scoped memory for tpu_custom_call.1']
    #allocation11 [shape = 'u8[131072]{0}', space=vmem, size = 0x20000, scoped, tag = 'output window, operand 0']
    %17 = vsyncpa [#allocation7], 0
    %s18 = scalar_lea.sflag [#allocation7], 1
    %19 = vsyncpa %s18, 0
    %20 = vsyncpa [#allocation10], 0
    %21 = vsyncpa [#allocation8], 0
    %s22 = scalar_lea.sflag [#allocation8], 1
    %23 = vsyncpa %s22, 0
    loop: start=0, step=1, limit=4
    $region2: #{tpu_custom_call.1} parent=1 // loop_pre_header
      _
    $region3: #{tpu_custom_call.1} parent=1 // loop_header
      %s25 = sphi 0, %s29
      %p26 = scmp.ge.s32.totalorder %s25, 4
      %s32 = sphi 0, %s44
      %s33 = sphi 0, %s40
      %s34 = sphi 0, %s32
      %s35 = sphi 0, %s33
      %s36 = sphi 0, %s34
      %s37 = sphi 0, %s35
      %s47 = sphi 0, %s49
      %s50 = sphi 0, %s47
      %s51 = sphi 0, %s50
      %s67 = sphi 0, %s51
      %s71 = sphi 0, %s71
      %s73 = sphi 0, %s71
      %s74 = sphi 0, %s73
      %s88 = sphi 0, %s74
      %s92 = sphi 0, %s92
      %s94 = sphi 0, %s92
      %s95 = sphi 0, %s94
      %s109 = sphi 0, %s95
      %s113 = sphi 0, %s113
      %s115 = sphi 0, %s113
      %s116 = sphi 0, %s115
      %s130 = sphi 0, %s116
      %s134 = sphi 0, %s134
      %s136 = sphi 0, %s134
      %s137 = sphi 0, %s136
      %s151 = sphi 0, %s137
      %s155 = sphi 0, %s155
      %s157 = sphi 0, %s155
      %s158 = sphi 0, %s157
      %s172 = sphi 0, %s158
      %s176 = sphi 0, %s176
      %s178 = sphi 0, %s176
      %s179 = sphi 0, %s178
      %s193 = sphi 0, %s179
      %s197 = sphi 0, %s197
      %s199 = sphi 0, %s197
      %s200 = sphi 0, %s199
      %s214 = sphi 0, %s200
      %s218 = sphi 0, %s218
      %s220 = sphi 0, %s218
      %s221 = sphi 0, %s220
      %s235 = sphi 0, %s221
      %s239 = sphi 0, %s239
      %s241 = sphi 0, %s239
      %s242 = sphi 0, %s241
      %s256 = sphi 0, %s242
      %s260 = sphi 0, %s260
      %s262 = sphi 0, %s260
      %s263 = sphi 0, %s262
      %s277 = sphi 0, %s263
      %s281 = sphi 0, %s281
      %s283 = sphi 0, %s281
      %s284 = sphi 0, %s283
      %s298 = sphi 0, %s284
      %s306 = sphi 0, %s308
      %s309 = sphi 0, %s306
      %s310 = sphi 0, %s309
      %s326 = sphi 0, %s310
    $region4: #{tpu_custom_call.1} parent=1 // loop_header_branch
      %28 = sbr.rel (%p26) target = $region8
    $region5: #{tpu_custom_call.1} parent=1 // loop_body
      %s30 = ssub.s32 %s25, 1
      %s31 = ssub.s32 %s25, 2
      %s38 = sadd.s32 1, %s33
      %p39 = scmp.ge.s32.totalorder %s38, 1
      %s40 = scalar_select %p39, 0, %s38
      %s41 = sadd.s32 1, %s32
      %s42 = scalar_select %p39, %s41, %s32
      %p43 = scmp.ge.s32.totalorder %s42, 2
      %s44 = scalar_select %p43, 0, %s42
      %s45 = ssub.s32 %s32, %s44
      %p46 = scmp.eq.s32.totalorder %s45, 0
      %s48 = sadd.s32 %s47, 1
      %s49 = scalar_select %p46, %s47, %s48
      %p52 = pneg %p46
      %p53 = scmp.eq.s32.totalorder %s25, 1
      %p54 = por %p52, %p53
      %p55 = scmp.ne.s32.totalorder %s47, %s50
      %p56 = scmp.eq.s32.totalorder %s25, 0
      %p57 = por %p55, %p56
      %p58 = scmp.ne.s32.totalorder %s47, %s50
      %p59 = scmp.eq.s32.totalorder %s30, 1
      %p60 = por %p58, %p59
      %p61 = scmp.ne.s32.totalorder %s50, %s51
      %p62 = scmp.eq.s32.totalorder %s30, 0
      %p63 = por %p61, %p62
      %p64 = scmp.ne.s32.totalorder %s50, %s51
      %p65 = scmp.eq.s32.totalorder %s31, 1
      %p66 = por %p64, %p65
      %p68 = scmp.ne.s32.totalorder %s51, %s67
      %p69 = scmp.eq.s32.totalorder %s31, 0
      %p70 = por %p68, %p69
      %s72 = sadd.s32 %s71, 1
      %p75 = scmp.eq.s32.totalorder %s25, 1
      %p76 = scmp.ne.s32.totalorder %s71, %s73
      %p77 = scmp.eq.s32.totalorder %s25, 0
      %p78 = por %p76, %p77
      %p79 = scmp.ne.s32.totalorder %s71, %s73
      %p80 = scmp.eq.s32.totalorder %s30, 1
      %p81 = por %p79, %p80
      %p82 = scmp.ne.s32.totalorder %s73, %s74
      %p83 = scmp.eq.s32.totalorder %s30, 0
      %p84 = por %p82, %p83
      %p85 = scmp.ne.s32.totalorder %s73, %s74
      %p86 = scmp.eq.s32.totalorder %s31, 1
      %p87 = por %p85, %p86
      %p89 = scmp.ne.s32.totalorder %s74, %s88
      %p90 = scmp.eq.s32.totalorder %s31, 0
      %p91 = por %p89, %p90
      %s93 = sadd.s32 %s92, 1
      %p96 = scmp.eq.s32.totalorder %s25, 1
      %p97 = scmp.ne.s32.totalorder %s92, %s94
      %p98 = scmp.eq.s32.totalorder %s25, 0
      %p99 = por %p97, %p98
      %p100 = scmp.ne.s32.totalorder %s92, %s94
      %p101 = scmp.eq.s32.totalorder %s30, 1
      %p102 = por %p100, %p101
      %p103 = scmp.ne.s32.totalorder %s94, %s95
      %p104 = scmp.eq.s32.totalorder %s30, 0
      %p105 = por %p103, %p104
      %p106 = scmp.ne.s32.totalorder %s94, %s95
      %p107 = scmp.eq.s32.totalorder %s31, 1
      %p108 = por %p106, %p107
      %p110 = scmp.ne.s32.totalorder %s95, %s109
      %p111 = scmp.eq.s32.totalorder %s31, 0
      %p112 = por %p110, %p111
      %s114 = sadd.s32 %s113, 1
      %p117 = scmp.eq.s32.totalorder %s25, 1
      %p118 = scmp.ne.s32.totalorder %s113, %s115
      %p119 = scmp.eq.s32.totalorder %s25, 0
      %p120 = por %p118, %p119
      %p121 = scmp.ne.s32.totalorder %s113, %s115
      %p122 = scmp.eq.s32.totalorder %s30, 1
      %p123 = por %p121, %p122
      %p124 = scmp.ne.s32.totalorder %s115, %s116
      %p125 = scmp.eq.s32.totalorder %s30, 0
      %p126 = por %p124, %p125
      %p127 = scmp.ne.s32.totalorder %s115, %s116
      %p128 = scmp.eq.s32.totalorder %s31, 1
      %p129 = por %p127, %p128
      %p131 = scmp.ne.s32.totalorder %s116, %s130
      %p132 = scmp.eq.s32.totalorder %s31, 0
      %p133 = por %p131, %p132
      %s135 = sadd.s32 %s134, 1
      %p138 = scmp.eq.s32.totalorder %s25, 1
      %p139 = scmp.ne.s32.totalorder %s134, %s136
      %p140 = scmp.eq.s32.totalorder %s25, 0
      %p141 = por %p139, %p140
      %p142 = scmp.ne.s32.totalorder %s134, %s136
      %p143 = scmp.eq.s32.totalorder %s30, 1
      %p144 = por %p142, %p143
      %p145 = scmp.ne.s32.totalorder %s136, %s137
      %p146 = scmp.eq.s32.totalorder %s30, 0
      %p147 = por %p145, %p146
      %p148 = scmp.ne.s32.totalorder %s136, %s137
      %p149 = scmp.eq.s32.totalorder %s31, 1
      %p150 = por %p148, %p149
      %p152 = scmp.ne.s32.totalorder %s137, %s151
      %p153 = scmp.eq.s32.totalorder %s31, 0
      %p154 = por %p152, %p153
      %s156 = sadd.s32 %s155, 1
      %p159 = scmp.eq.s32.totalorder %s25, 1
      %p160 = scmp.ne.s32.totalorder %s155, %s157
      %p161 = scmp.eq.s32.totalorder %s25, 0
      %p162 = por %p160, %p161
      %p163 = scmp.ne.s32.totalorder %s155, %s157
      %p164 = scmp.eq.s32.totalorder %s30, 1
      %p165 = por %p163, %p164
      %p166 = scmp.ne.s32.totalorder %s157, %s158
      %p167 = scmp.eq.s32.totalorder %s30, 0
      %p168 = por %p166, %p167
      %p169 = scmp.ne.s32.totalorder %s157, %s158
      %p170 = scmp.eq.s32.totalorder %s31, 1
      %p171 = por %p169, %p170
      %p173 = scmp.ne.s32.totalorder %s158, %s172
      %p174 = scmp.eq.s32.totalorder %s31, 0
      %p175 = por %p173, %p174
      %s177 = sadd.s32 %s176, 1
      %p180 = scmp.eq.s32.totalorder %s25, 1
      %p181 = scmp.ne.s32.totalorder %s176, %s178
      %p182 = scmp.eq.s32.totalorder %s25, 0
      %p183 = por %p181, %p182
      %p184 = scmp.ne.s32.totalorder %s176, %s178
      %p185 = scmp.eq.s32.totalorder %s30, 1
      %p186 = por %p184, %p185
      %p187 = scmp.ne.s32.totalorder %s178, %s179
      %p188 = scmp.eq.s32.totalorder %s30, 0
      %p189 = por %p187, %p188
      %p190 = scmp.ne.s32.totalorder %s178, %s179
      %p191 = scmp.eq.s32.totalorder %s31, 1
      %p192 = por %p190, %p191
      %p194 = scmp.ne.s32.totalorder %s179, %s193
      %p195 = scmp.eq.s32.totalorder %s31, 0
      %p196 = por %p194, %p195
      %s198 = sadd.s32 %s197, 1
      %p201 = scmp.eq.s32.totalorder %s25, 1
      %p202 = scmp.ne.s32.totalorder %s197, %s199
      %p203 = scmp.eq.s32.totalorder %s25, 0
      %p204 = por %p202, %p203
      %p205 = scmp.ne.s32.totalorder %s197, %s199
      %p206 = scmp.eq.s32.totalorder %s30, 1
      %p207 = por %p205, %p206
      %p208 = scmp.ne.s32.totalorder %s199, %s200
      %p209 = scmp.eq.s32.totalorder %s30, 0
      %p210 = por %p208, %p209
      %p211 = scmp.ne.s32.totalorder %s199, %s200
      %p212 = scmp.eq.s32.totalorder %s31, 1
      %p213 = por %p211, %p212
      %p215 = scmp.ne.s32.totalorder %s200, %s214
      %p216 = scmp.eq.s32.totalorder %s31, 0
      %p217 = por %p215, %p216
      %s219 = sadd.s32 %s218, 1
      %p222 = scmp.eq.s32.totalorder %s25, 1
      %p223 = scmp.ne.s32.totalorder %s218, %s220
      %p224 = scmp.eq.s32.totalorder %s25, 0
      %p225 = por %p223, %p224
      %p226 = scmp.ne.s32.totalorder %s218, %s220
      %p227 = scmp.eq.s32.totalorder %s30, 1
      %p228 = por %p226, %p227
      %p229 = scmp.ne.s32.totalorder %s220, %s221
      %p230 = scmp.eq.s32.totalorder %s30, 0
      %p231 = por %p229, %p230
      %p232 = scmp.ne.s32.totalorder %s220, %s221
      %p233 = scmp.eq.s32.totalorder %s31, 1
      %p234 = por %p232, %p233
      %p236 = scmp.ne.s32.totalorder %s221, %s235
      %p237 = scmp.eq.s32.totalorder %s31, 0
      %p238 = por %p236, %p237
      %s240 = sadd.s32 %s239, 1
      %p243 = scmp.eq.s32.totalorder %s25, 1
      %p244 = scmp.ne.s32.totalorder %s239, %s241
      %p245 = scmp.eq.s32.totalorder %s25, 0
      %p246 = por %p244, %p245
      %p247 = scmp.ne.s32.totalorder %s239, %s241
      %p248 = scmp.eq.s32.totalorder %s30, 1
      %p249 = por %p247, %p248
      %p250 = scmp.ne.s32.totalorder %s241, %s242
      %p251 = scmp.eq.s32.totalorder %s30, 0
      %p252 = por %p250, %p251
      %p253 = scmp.ne.s32.totalorder %s241, %s242
      %p254 = scmp.eq.s32.totalorder %s31, 1
      %p255 = por %p253, %p254
      %p257 = scmp.ne.s32.totalorder %s242, %s256
      %p258 = scmp.eq.s32.totalorder %s31, 0
      %p259 = por %p257, %p258
      %s261 = sadd.s32 %s260, 1
      %p264 = scmp.eq.s32.totalorder %s25, 1
      %p265 = scmp.ne.s32.totalorder %s260, %s262
      %p266 = scmp.eq.s32.totalorder %s25, 0
      %p267 = por %p265, %p266
      %p268 = scmp.ne.s32.totalorder %s260, %s262
      %p269 = scmp.eq.s32.totalorder %s30, 1
      %p270 = por %p268, %p269
      %p271 = scmp.ne.s32.totalorder %s262, %s263
      %p272 = scmp.eq.s32.totalorder %s30, 0
      %p273 = por %p271, %p272
      %p274 = scmp.ne.s32.totalorder %s262, %s263
      %p275 = scmp.eq.s32.totalorder %s31, 1
      %p276 = por %p274, %p275
      %p278 = scmp.ne.s32.totalorder %s263, %s277
      %p279 = scmp.eq.s32.totalorder %s31, 0
      %p280 = por %p278, %p279
      %s282 = sadd.s32 %s281, 1
      %p285 = scmp.eq.s32.totalorder %s25, 1
      %p286 = scmp.ne.s32.totalorder %s281, %s283
      %p287 = scmp.eq.s32.totalorder %s25, 0
      %p288 = por %p286, %p287
      %p289 = scmp.ne.s32.totalorder %s281, %s283
      %p290 = scmp.eq.s32.totalorder %s30, 1
      %p291 = por %p289, %p290
      %p292 = scmp.ne.s32.totalorder %s283, %s284
      %p293 = scmp.eq.s32.totalorder %s30, 0
      %p294 = por %p292, %p293
      %p295 = scmp.ne.s32.totalorder %s283, %s284
      %p296 = scmp.eq.s32.totalorder %s31, 1
      %p297 = por %p295, %p296
      %p299 = scmp.ne.s32.totalorder %s284, %s298
      %p300 = scmp.eq.s32.totalorder %s31, 0
      %p301 = por %p299, %p300
      %s302 = ssub.s32 %s32, %s44
      %s303 = ssub.s32 %s33, %s40
      %s304 = sor.u32 %s302, %s303
      %p305 = scmp.eq.s32.totalorder %s304, 0
      %s307 = sadd.s32 %s306, 1
      %s308 = scalar_select %p305, %s306, %s307
      %p311 = pneg %p305
      %p312 = scmp.eq.s32.totalorder %s25, 1
      %p313 = por %p311, %p312
      %p314 = scmp.ne.s32.totalorder %s306, %s309
      %p315 = scmp.eq.s32.totalorder %s25, 0
      %p316 = por %p314, %p315
      %p317 = scmp.ne.s32.totalorder %s306, %s309
      %p318 = scmp.eq.s32.totalorder %s30, 1
      %p319 = por %p317, %p318
      %p320 = scmp.ne.s32.totalorder %s309, %s310
      %p321 = scmp.eq.s32.totalorder %s30, 0
      %p322 = por %p320, %p321
      %p323 = scmp.ne.s32.totalorder %s309, %s310
      %p324 = scmp.eq.s32.totalorder %s31, 1
      %p325 = por %p323, %p324
      %p327 = scmp.ne.s32.totalorder %s310, %s326
      %p328 = scmp.eq.s32.totalorder %s31, 0
      %p329 = por %p327, %p328
      %p330 = scmp.le.s32.totalorder 1, %s25
      %p331 = scmp.lt.s32.totalorder %s25, 3
      %p332 = pnand %p330, %p331
      %p333 = pneg %p332
      // Predicated region
      $region9: #{tpu_custom_call.1} parent=5 // pred_check
        _
      $region10: #{tpu_custom_call.1} parent=5 // pred_check_branch
        %335 = sbr.rel (%p332) target = $region12
      $region11: #{tpu_custom_call.1} parent=5 // pred_region
        %s336 = ssub.s32 %s25, 1
        // Predicated region
        $region13: #{tpu_custom_call.1} parent=11 // pred_check
          %p337 = pneg %p84
        $region14: #{tpu_custom_call.1} parent=11 // pred_check_branch
          %339 = sbr.rel (%p337) target = $region16
        $region15: #{tpu_custom_call.1} parent=11 // pred_region
          _
        $region16: #{tpu_custom_call.1} parent=11 // pred_fallthru
          _
        // Predicated region
        $region17: #{tpu_custom_call.1} parent=11 // pred_check
          %p340 = pneg %p105
        $region18: #{tpu_custom_call.1} parent=11 // pred_check_branch
          %342 = sbr.rel (%p340) target = $region20
        $region19: #{tpu_custom_call.1} parent=11 // pred_region
          _
        $region20: #{tpu_custom_call.1} parent=11 // pred_fallthru
          _
        // Predicated region
        $region21: #{tpu_custom_call.1} parent=11 // pred_check
          %p343 = pneg %p126
        $region22: #{tpu_custom_call.1} parent=11 // pred_check_branch
          %345 = sbr.rel (%p343) target = $region24
        $region23: #{tpu_custom_call.1} parent=11 // pred_region
          _
        $region24: #{tpu_custom_call.1} parent=11 // pred_fallthru
          _
        // Predicated region
        $region25: #{tpu_custom_call.1} parent=11 // pred_check
          %p346 = pneg %p147
        $region26: #{tpu_custom_call.1} parent=11 // pred_check_branch
          %348 = sbr.rel (%p346) target = $region28
        $region27: #{tpu_custom_call.1} parent=11 // pred_region
          _
        $region28: #{tpu_custom_call.1} parent=11 // pred_fallthru
          _
        // Predicated region
        $region29: #{tpu_custom_call.1} parent=11 // pred_check
          %p349 = pneg %p168
        $region30: #{tpu_custom_call.1} parent=11 // pred_check_branch
          %351 = sbr.rel (%p349) target = $region32
        $region31: #{tpu_custom_call.1} parent=11 // pred_region
          _
        $region32: #{tpu_custom_call.1} parent=11 // pred_fallthru
          _
        // Predicated region
        $region33: #{tpu_custom_call.1} parent=11 // pred_check
          %p352 = pneg %p189
        $region34: #{tpu_custom_call.1} parent=11 // pred_check_branch
          %354 = sbr.rel (%p352) target = $region36
        $region35: #{tpu_custom_call.1} parent=11 // pred_region
          _
        $region36: #{tpu_custom_call.1} parent=11 // pred_fallthru
          _
        // Predicated region
        $region37: #{tpu_custom_call.1} parent=11 // pred_check
          %p355 = pneg %p210
        $region38: #{tpu_custom_call.1} parent=11 // pred_check_branch
          %357 = sbr.rel (%p355) target = $region40
        $region39: #{tpu_custom_call.1} parent=11 // pred_region
          _
        $region40: #{tpu_custom_call.1} parent=11 // pred_fallthru
          _
        // Predicated region
        $region41: #{tpu_custom_call.1} parent=11 // pred_check
          %p358 = pneg %p231
        $region42: #{tpu_custom_call.1} parent=11 // pred_check_branch
          %360 = sbr.rel (%p358) target = $region44
        $region43: #{tpu_custom_call.1} parent=11 // pred_region
          _
        $region44: #{tpu_custom_call.1} parent=11 // pred_fallthru
          _
        // Predicated region
        $region45: #{tpu_custom_call.1} parent=11 // pred_check
          %p361 = pneg %p252
        $region46: #{tpu_custom_call.1} parent=11 // pred_check_branch
          %363 = sbr.rel (%p361) target = $region48
        $region47: #{tpu_custom_call.1} parent=11 // pred_region
          _
        $region48: #{tpu_custom_call.1} parent=11 // pred_fallthru
          _
        // Predicated region
        $region49: #{tpu_custom_call.1} parent=11 // pred_check
          %p364 = pneg %p273
        $region50: #{tpu_custom_call.1} parent=11 // pred_check_branch
          %366 = sbr.rel (%p364) target = $region52
        $region51: #{tpu_custom_call.1} parent=11 // pred_region
          %368 = vsyncadd [#allocation10], 0
          %s369 = sshll.u32 %s10, 4
          %s370 = int_to_ptr.hbm [resolvable:$true] %s369
          %s371 = sshll.u32 [#allocation9], 4
          %s372 = int_to_ptr.vmem [resolvable:$true] %s371
          %377 = dma.hbm_to_vmem [thread:$0]  %s370, 1024, %s372, [#allocation10], 128, 128, 8
        $region52: #{tpu_custom_call.1} parent=11 // pred_fallthru
          _
        // Predicated region
        $region53: #{tpu_custom_call.1} parent=11 // pred_check
          %p378 = pneg %p294
        $region54: #{tpu_custom_call.1} parent=11 // pred_check_branch
          %380 = sbr.rel (%p378) target = $region56
        $region55: #{tpu_custom_call.1} parent=11 // pred_region
          _
        $region56: #{tpu_custom_call.1} parent=11 // pred_fallthru
          _
      $region12: #{tpu_custom_call.1} parent=5 // pred_fallthru
        _
      %p381 = scmp.lt.s32.totalorder %s25, 2
      // Predicated region
      $region57: #{tpu_custom_call.1} parent=5 // pred_check
        %p382 = pneg %p381
      $region58: #{tpu_custom_call.1} parent=5 // pred_check_branch
        %384 = sbr.rel (%p382) target = $region60
      $region59: #{tpu_custom_call.1} parent=5 // pred_region
        // Predicated region
        $region61: #{tpu_custom_call.1} parent=59 // pred_check
          %p385 = pneg %p57
        $region62: #{tpu_custom_call.1} parent=59 // pred_check_branch
          %387 = sbr.rel (%p385) target = $region64
        $region63: #{tpu_custom_call.1} parent=59 // pred_region
          %s388 = sand.u32 %s47, 1
          %s389 = scalar_lea.sflag [#allocation7], %s388
          %s390 = sand.u32 %s47, 1
          %s391 = smul.addr %s390, 128
          %s392 = scalar_lea.vmem [#allocation6], %s391
          %394 = vsyncadd %s389, 0
          %s395 = smul.addr %s32, 16
          %s396 = smul.addr %s395, 8
          %s397 = scalar_lea.hbm %s0, %s396
          %s398 = sshll.u32 %s397, 4
          %s399 = int_to_ptr.hbm [resolvable:$true] %s398
          %s400 = sshll.u32 %s392, 4
          %s401 = int_to_ptr.vmem [resolvable:$true] %s400
          %406 = dma.hbm_to_vmem [thread:$0]  %s399, 2048, %s401, %s389, 256, 256, 16
        $region64: #{tpu_custom_call.1} parent=59 // pred_fallthru
          _
      $region60: #{tpu_custom_call.1} parent=5 // pred_fallthru
        _
      %p407 = scmp.le.s32.totalorder 1, %s25
      %p408 = scmp.lt.s32.totalorder %s25, 3
      %p409 = pnand %p407, %p408
      %p410 = pneg %p409
      // Predicated region
      $region65: #{tpu_custom_call.1} parent=5 // pred_check
        _
      $region66: #{tpu_custom_call.1} parent=5 // pred_check_branch
        %412 = sbr.rel (%p409) target = $region68
      $region67: #{tpu_custom_call.1} parent=5 // pred_region
        %s413 = ssub.s32 %s25, 1
        %s414 = sand.u32 %s50, 1
        %s415 = scalar_lea.sflag [#allocation7], %s414
        %s416 = sand.u32 %s50, 1
        %s417 = smul.addr %s416, 128
        %s418 = scalar_lea.vmem [#allocation6], %s417
        // Predicated region
        $region69: #{tpu_custom_call.1} parent=67 // pred_check
          %p419 = pneg %p63
        $region70: #{tpu_custom_call.1} parent=67 // pred_check_branch
          %421 = sbr.rel (%p419) target = $region72
        $region71: #{tpu_custom_call.1} parent=67 // pred_region
          %423 = dma.done %s415, 2048
        $region72: #{tpu_custom_call.1} parent=67 // pred_fallthru
          _
        // Predicated region
        $region73: #{tpu_custom_call.1} parent=67 // pred_check
          %p424 = pneg %p273
        $region74: #{tpu_custom_call.1} parent=67 // pred_check_branch
          %426 = sbr.rel (%p424) target = $region76
        $region75: #{tpu_custom_call.1} parent=67 // pred_region
          %428 = dma.done [#allocation10], 1024
        $region76: #{tpu_custom_call.1} parent=67 // pred_fallthru
          _
        %s429 = sand.u32 %s50, 1
        %s430 = scalar_lea.sflag [#allocation7], %s429
        %s431 = sand.u32 %s50, 1
        %s432 = smul.addr %s431, 128
        %s433 = scalar_lea.vmem [#allocation6], %s432
        %p434 = pneg %p63
        %p435 = pneg %p60
        %p436 = pneg %p84
        %p437 = pneg %p81
        %p438 = pneg %p105
        %p439 = pneg %p102
        %p440 = pneg %p126
        %p441 = pneg %p123
        %p442 = pneg %p147
        %p443 = pneg %p144
        %p444 = pneg %p168
        %p445 = pneg %p165
        %p446 = pneg %p189
        %p447 = pneg %p186
        %p448 = pneg %p210
        %p449 = pneg %p207
        %p450 = pneg %p231
        %p451 = pneg %p228
        %p452 = pneg %p252
        %p453 = pneg %p249
        %p454 = pneg %p273
        %p455 = pneg %p270
        %p456 = pneg %p294
        %p457 = pneg %p291
        %p458 = pneg %p322
        %p459 = pneg %p319
        %s460 = sand.u32 %s309, 1
        %s461 = scalar_lea.sflag [#allocation8], %s460
        %s462 = sand.u32 %s309, 1
        %s463 = smul.addr %s462, 128
        %s464 = scalar_lea.vmem [#allocation11], %s463
        %s465 = smul.u32 2, %s35
        %p466 = scmp.eq.s32.totalorder %s35, 0
        // Predicated region
        $region77: #{tpu_custom_call.1} parent=67 // pred_check
          %p467 = pneg %p466
        $region78: #{tpu_custom_call.1} parent=67 // pred_check_branch
          %469 = sbr.rel (%p467) target = $region80
        $region79: #{tpu_custom_call.1} parent=67 // pred_region
          %v470 = vld [vmem:[%s418] sm:$0xff]
          %v471 = vld [vmem:[%s418 + $0x8] sm:$0xff]
          %v472 = vld [vmem:[%s418 + $0x10] sm:$0xff]
          %v473 = vld [vmem:[%s418 + $0x18] sm:$0xff]
          %v474 = vld [vmem:[%s418 + $0x20] sm:$0xff]
          %v475 = vld [vmem:[%s418 + $0x28] sm:$0xff]
          %v476 = vld [vmem:[%s418 + $0x30] sm:$0xff]
          %v477 = vld [vmem:[%s418 + $0x38] sm:$0xff]
          %v478 = vld [vmem:[%s418 + $0x40] sm:$0xff]
          %v479 = vld [vmem:[%s418 + $0x48] sm:$0xff]
          %v480 = vld [vmem:[%s418 + $0x50] sm:$0xff]
          %v481 = vld [vmem:[%s418 + $0x58] sm:$0xff]
          %v482 = vld [vmem:[%s418 + $0x60] sm:$0xff]
          %v483 = vld [vmem:[%s418 + $0x68] sm:$0xff]
          %v484 = vld [vmem:[%s418 + $0x70] sm:$0xff]
          %v485 = vld [vmem:[%s418 + $0x78] sm:$0xff]
          %v486 = vadd.f32 %v470, %v471
          %487 = vadd.xlane.f32.xlu0 %v486
          %v488 = vpop.xlane.xlu0 %487
          %v489 = vadd.f32 %v472, %v473
          %490 = vadd.xlane.f32.xlu0 %v489
          %v491 = vpop.xlane.xlu0 %490
          %v492 = vadd.f32 %v474, %v475
          %493 = vadd.xlane.f32.xlu0 %v492
          %v494 = vpop.xlane.xlu0 %493
          %v495 = vadd.f32 %v476, %v477
          %496 = vadd.xlane.f32.xlu0 %v495
          %v497 = vpop.xlane.xlu0 %496
          %v498 = vadd.f32 %v478, %v479
          %499 = vadd.xlane.f32.xlu0 %v498
          %v500 = vpop.xlane.xlu0 %499
          %v501 = vadd.f32 %v480, %v481
          %502 = vadd.xlane.f32.xlu0 %v501
          %v503 = vpop.xlane.xlu0 %502
          %v504 = vadd.f32 %v482, %v483
          %505 = vadd.xlane.f32.xlu0 %v504
          %v506 = vpop.xlane.xlu0 %505
          %v507 = vadd.f32 %v484, %v485
          %508 = vadd.xlane.f32.xlu0 %v507
          %v509 = vpop.xlane.xlu0 %508
          %v510 = vmul.f32 %v470, %v470
          %v511 = vmul.f32 %v471, %v471
          %v512 = vmul.f32 %v472, %v472
          %v513 = vmul.f32 %v473, %v473
          %v514 = vmul.f32 %v474, %v474
          %v515 = vmul.f32 %v475, %v475
          %v516 = vmul.f32 %v476, %v476
          %v517 = vmul.f32 %v477, %v477
          %v518 = vmul.f32 %v478, %v478
          %v519 = vmul.f32 %v479, %v479
          %v520 = vmul.f32 %v480, %v480
          %v521 = vmul.f32 %v481, %v481
          %v522 = vmul.f32 %v482, %v482
          %v523 = vmul.f32 %v483, %v483
          %v524 = vmul.f32 %v484, %v484
          %v525 = vmul.f32 %v485, %v485
          %v526 = vadd.f32 %v510, %v511
          %527 = vadd.xlane.f32.xlu0 %v526
          %v528 = vpop.xlane.xlu0 %527
          %v529 = vadd.f32 %v512, %v513
          %530 = vadd.xlane.f32.xlu0 %v529
          %v531 = vpop.xlane.xlu0 %530
          %v532 = vadd.f32 %v514, %v515
          %533 = vadd.xlane.f32.xlu0 %v532
          %v534 = vpop.xlane.xlu0 %533
          %v535 = vadd.f32 %v516, %v517
          %536 = vadd.xlane.f32.xlu0 %v535
          %v537 = vpop.xlane.xlu0 %536
          %v538 = vadd.f32 %v518, %v519
          %539 = vadd.xlane.f32.xlu0 %v538
          %v540 = vpop.xlane.xlu0 %539
          %v541 = vadd.f32 %v520, %v521
          %542 = vadd.xlane.f32.xlu0 %v541
          %v543 = vpop.xlane.xlu0 %542
          %v544 = vadd.f32 %v522, %v523
          %545 = vadd.xlane.f32.xlu0 %v544
          %v546 = vpop.xlane.xlu0 %545
          %v547 = vadd.f32 %v524, %v525
          %548 = vadd.xlane.f32.xlu0 %v547
          %v549 = vpop.xlane.xlu0 %548
          %v550 = vld [vmem:[%s1] sm:$0xff]
          %v551 = vld [vmem:[%s1 + $0x8] sm:$0xff]
          %v552 = vld [vmem:[%s1 + $0x10] sm:$0xff]
          %v553 = vld [vmem:[%s1 + $0x18] sm:$0xff]
          %v554 = vld [vmem:[%s1 + $0x20] sm:$0xff]
          %v555 = vld [vmem:[%s1 + $0x28] sm:$0xff]
          %v556 = vld [vmem:[%s1 + $0x30] sm:$0xff]
          %v557 = vld [vmem:[%s1 + $0x38] sm:$0xff]
          %vm558 = vcmask 523264
          %v560 = vsel %vm558, %v550, 0
          %v563 = vsel %vm558, %v551, 0
          %v566 = vsel %vm558, %v552, 0
          %v569 = vsel %vm558, %v553, 0
          %v572 = vsel %vm558, %v554, 0
          %v575 = vsel %vm558, %v555, 0
          %v578 = vsel %vm558, %v556, 0
          %v581 = vsel %vm558, %v557, 0
          %583 = vmatpush.msra.mxu0 0.0
          %584 = vmatpush.msra.mxu0 0.0
          %585 = vmatpush.msra.mxu0 0.0
          %586 = vmatpush.msra.mxu0 0.0
          %587 = vmatpush.msra.mxu0 0.0
          %588 = vmatpush.msra.mxu0 0.0
          %589 = vmatpush.msra.mxu0 0.0
          %590 = vmatpush.msra.mxu0 0.0
          %591 = vmatpush.msra.mxu0 %v509
          %592 = vmatpush.msra.mxu0 %v506
          %593 = vmatpush.msra.mxu0 %v503
          %594 = vmatpush.msra.mxu0 %v500
          %595 = vmatpush.msra.mxu0 %v497
          %596 = vmatpush.msra.mxu0 %v494
          %597 = vmatpush.msra.mxu0 %v491
          %598 = vmatpush.msra.mxu0 %v488
          %599 = vmatmul.f32.gmra.mxu0 %v560
          %v600 = vpop.f32.mrf.mxu0
          %v601 = vadd.f32 0.0, %v600
          %602 = vmatmul.f32.gmra.mxu0 %v563
          %v603 = vpop.f32.mrf.mxu0
          %v604 = vadd.f32 0.0, %v603
          %605 = vmatmul.f32.gmra.mxu0 %v566
          %v606 = vpop.f32.mrf.mxu0
          %v607 = vadd.f32 0.0, %v606
          %608 = vmatmul.f32.gmra.mxu0 %v569
          %v609 = vpop.f32.mrf.mxu0
          %v610 = vadd.f32 0.0, %v609
          %611 = vmatmul.f32.gmra.mxu0 %v572
          %v612 = vpop.f32.mrf.mxu0
          %v613 = vadd.f32 0.0, %v612
          %614 = vmatmul.f32.gmra.mxu0 %v575
          %v615 = vpop.f32.mrf.mxu0
          %v616 = vadd.f32 0.0, %v615
          %617 = vmatmul.f32.gmra.mxu0 %v578
          %v618 = vpop.f32.mrf.mxu0
          %v619 = vadd.f32 0.0, %v618
          %620 = vmatmul.f32.gmra.mxu0 %v581
          %v621 = vpop.f32.mrf.mxu0
          %v622 = vadd.f32 0.0, %v621
          %623 = vdwg.mxu0
          %v624 = vmul.f32 %v601, 0.00390625
          %v625 = vmul.f32 %v604, 0.00390625
          %v626 = vmul.f32 %v607, 0.00390625
          %v627 = vmul.f32 %v610, 0.00390625
          %v628 = vmul.f32 %v613, 0.00390625
          %v629 = vmul.f32 %v616, 0.00390625
          %v630 = vmul.f32 %v619, 0.00390625
          %v631 = vmul.f32 %v622, 0.00390625
          %632 = vmatpush.msra.mxu0 0.0
          %633 = vmatpush.msra.mxu0 0.0
          %634 = vmatpush.msra.mxu0 0.0
          %635 = vmatpush.msra.mxu0 0.0
          %636 = vmatpush.msra.mxu0 0.0
          %637 = vmatpush.msra.mxu0 0.0
          %638 = vmatpush.msra.mxu0 0.0
          %639 = vmatpush.msra.mxu0 0.0
          %640 = vmatpush.msra.mxu0 %v549
          %641 = vmatpush.msra.mxu0 %v546
          %642 = vmatpush.msra.mxu0 %v543
          %643 = vmatpush.msra.mxu0 %v540
          %644 = vmatpush.msra.mxu0 %v537
          %645 = vmatpush.msra.mxu0 %v534
          %646 = vmatpush.msra.mxu0 %v531
          %647 = vmatpush.msra.mxu0 %v528
          %648 = vmatmul.f32.gmra.mxu0 %v560
          %v649 = vpop.f32.mrf.mxu0
          %v650 = vadd.f32 0.0, %v649
          %651 = vmatmul.f32.gmra.mxu0 %v563
          %v652 = vpop.f32.mrf.mxu0
          %v653 = vadd.f32 0.0, %v652
          %654 = vmatmul.f32.gmra.mxu0 %v566
          %v655 = vpop.f32.mrf.mxu0
          %v656 = vadd.f32 0.0, %v655
          %657 = vmatmul.f32.gmra.mxu0 %v569
          %v658 = vpop.f32.mrf.mxu0
          %v659 = vadd.f32 0.0, %v658
          %660 = vmatmul.f32.gmra.mxu0 %v572
          %v661 = vpop.f32.mrf.mxu0
          %v662 = vadd.f32 0.0, %v661
          %663 = vmatmul.f32.gmra.mxu0 %v575
          %v664 = vpop.f32.mrf.mxu0
          %v665 = vadd.f32 0.0, %v664
          %666 = vmatmul.f32.gmra.mxu0 %v578
          %v667 = vpop.f32.mrf.mxu0
          %v668 = vadd.f32 0.0, %v667
          %669 = vmatmul.f32.gmra.mxu0 %v581
          %v670 = vpop.f32.mrf.mxu0
          %v671 = vadd.f32 0.0, %v670
          %672 = vdwg.mxu0
          %v673 = vmul.f32 %v650, 0.00390625
          %v674 = vmul.f32 %v653, 0.00390625
          %v675 = vmul.f32 %v656, 0.00390625
          %v676 = vmul.f32 %v659, 0.00390625
          %v677 = vmul.f32 %v662, 0.00390625
          %v678 = vmul.f32 %v665, 0.00390625
          %v679 = vmul.f32 %v668, 0.00390625
          %v680 = vmul.f32 %v671, 0.00390625
          %v681 = vmul.f32 %v624, %v624
          %v682 = vmul.f32 %v625, %v625
          %v683 = vmul.f32 %v626, %v626
          %v684 = vmul.f32 %v627, %v627
          %v685 = vmul.f32 %v628, %v628
          %v686 = vmul.f32 %v629, %v629
          %v687 = vmul.f32 %v630, %v630
          %v688 = vmul.f32 %v631, %v631
          %v689 = vsub.f32 %v673, %v681
          %v690 = vsub.f32 %v674, %v682
          %v691 = vsub.f32 %v675, %v683
          %v692 = vsub.f32 %v676, %v684
          %v693 = vsub.f32 %v677, %v685
          %v694 = vsub.f32 %v678, %v686
          %v695 = vsub.f32 %v679, %v687
          %v696 = vsub.f32 %v680, %v688
          %v697 = vadd.f32 %v689, 1e-06
          %v698 = vadd.f32 %v690, 1e-06
          %v699 = vadd.f32 %v691, 1e-06
          %v700 = vadd.f32 %v692, 1e-06
          %v701 = vadd.f32 %v693, 1e-06
          %v702 = vadd.f32 %v694, 1e-06
          %v703 = vadd.f32 %v695, 1e-06
          %v704 = vadd.f32 %v696, 1e-06
          %v705 = vrsqrt.pop %v697
          %v706 = vmul.f32 %v705, %v697
          %v707 = vmul.f32 %v706, %v705
          %v708 = vmul.f32 0.5, %v707
          %v709 = vsub.f32 1.5, %v708
          %v710 = vmul.f32 %v705, %v709
          %vm711 = vweird.f32 %v697
          %vm712 = vweird.f32 %v705
          %vm713 = vmor %vm711, %vm712
          %v714 = vsel %vm713, %v705, %v710
          %v715 = vrsqrt.pop %v698
          %v716 = vmul.f32 %v715, %v698
          %v717 = vmul.f32 %v716, %v715
          %v718 = vmul.f32 0.5, %v717
          %v719 = vsub.f32 1.5, %v718
          %v720 = vmul.f32 %v715, %v719
          %vm721 = vweird.f32 %v698
          %vm722 = vweird.f32 %v715
          %vm723 = vmor %vm721, %vm722
          %v724 = vsel %vm723, %v715, %v720
          %v725 = vrsqrt.pop %v699
          %v726 = vmul.f32 %v725, %v699
          %v727 = vmul.f32 %v726, %v725
          %v728 = vmul.f32 0.5, %v727
          %v729 = vsub.f32 1.5, %v728
          %v730 = vmul.f32 %v725, %v729
          %vm731 = vweird.f32 %v699
          %vm732 = vweird.f32 %v725
          %vm733 = vmor %vm731, %vm732
          %v734 = vsel %vm733, %v725, %v730
          %v735 = vrsqrt.pop %v700
          %v736 = vmul.f32 %v735, %v700
          %v737 = vmul.f32 %v736, %v735
          %v738 = vmul.f32 0.5, %v737
          %v739 = vsub.f32 1.5, %v738
          %v740 = vmul.f32 %v735, %v739
          %vm741 = vweird.f32 %v700
          %vm742 = vweird.f32 %v735
          %vm743 = vmor %vm741, %vm742
          %v744 = vsel %vm743, %v735, %v740
          %v745 = vrsqrt.pop %v701
          %v746 = vmul.f32 %v745, %v701
          %v747 = vmul.f32 %v746, %v745
          %v748 = vmul.f32 0.5, %v747
          %v749 = vsub.f32 1.5, %v748
          %v750 = vmul.f32 %v745, %v749
          %vm751 = vweird.f32 %v701
          %vm752 = vweird.f32 %v745
          %vm753 = vmor %vm751, %vm752
          %v754 = vsel %vm753, %v745, %v750
          %v755 = vrsqrt.pop %v702
          %v756 = vmul.f32 %v755, %v702
          %v757 = vmul.f32 %v756, %v755
          %v758 = vmul.f32 0.5, %v757
          %v759 = vsub.f32 1.5, %v758
          %v760 = vmul.f32 %v755, %v759
          %vm761 = vweird.f32 %v702
          %vm762 = vweird.f32 %v755
          %vm763 = vmor %vm761, %vm762
          %v764 = vsel %vm763, %v755, %v760
          %v765 = vrsqrt.pop %v703
          %v766 = vmul.f32 %v765, %v703
          %v767 = vmul.f32 %v766, %v765
          %v768 = vmul.f32 0.5, %v767
          %v769 = vsub.f32 1.5, %v768
          %v770 = vmul.f32 %v765, %v769
          %vm771 = vweird.f32 %v703
          %vm772 = vweird.f32 %v765
          %vm773 = vmor %vm771, %vm772
          %v774 = vsel %vm773, %v765, %v770
          %v775 = vrsqrt.pop %v704
          %v776 = vmul.f32 %v775, %v704
          %v777 = vmul.f32 %v776, %v775
          %v778 = vmul.f32 0.5, %v777
          %v779 = vsub.f32 1.5, %v778
          %v780 = vmul.f32 %v775, %v779
          %vm781 = vweird.f32 %v704
          %vm782 = vweird.f32 %v775
          %vm783 = vmor %vm781, %vm782
          %v784 = vsel %vm783, %v775, %v780
          %v785 = vld [vmem:[%s2] sm:$0xff]
          %v786 = vld [vmem:[%s2 + $0x8] sm:$0xff]
          %v787 = vld [vmem:[%s2 + $0x10] sm:$0xff]
          %v788 = vld [vmem:[%s2 + $0x18] sm:$0xff]
          %v789 = vld [vmem:[%s2 + $0x20] sm:$0xff]
          %v790 = vld [vmem:[%s2 + $0x28] sm:$0xff]
          %v791 = vld [vmem:[%s2 + $0x30] sm:$0xff]
          %v792 = vld [vmem:[%s2 + $0x38] sm:$0xff]
          %v793 = vmul.f32 %v714, %v785
          %v794 = vmul.f32 %v724, %v786
          %v795 = vmul.f32 %v734, %v787
          %v796 = vmul.f32 %v744, %v788
          %v797 = vmul.f32 %v754, %v789
          %v798 = vmul.f32 %v764, %v790
          %v799 = vmul.f32 %v774, %v791
          %v800 = vmul.f32 %v784, %v792
          %v801 = vld [vmem:[%s3] sm:$0xff]
          %v802 = vld [vmem:[%s3 + $0x8] sm:$0xff]
          %v803 = vld [vmem:[%s3 + $0x10] sm:$0xff]
          %v804 = vld [vmem:[%s3 + $0x18] sm:$0xff]
          %v805 = vld [vmem:[%s3 + $0x20] sm:$0xff]
          %v806 = vld [vmem:[%s3 + $0x28] sm:$0xff]
          %v807 = vld [vmem:[%s3 + $0x30] sm:$0xff]
          %v808 = vld [vmem:[%s3 + $0x38] sm:$0xff]
          %v809 = vmul.f32 %v624, %v793
          %v810 = vmul.f32 %v625, %v794
          %v811 = vmul.f32 %v626, %v795
          %v812 = vmul.f32 %v627, %v796
          %v813 = vmul.f32 %v628, %v797
          %v814 = vmul.f32 %v629, %v798
          %v815 = vmul.f32 %v630, %v799
          %v816 = vmul.f32 %v631, %v800
          %v817 = vsub.f32 %v801, %v809
          %v818 = vsub.f32 %v802, %v810
          %v819 = vsub.f32 %v803, %v811
          %v820 = vsub.f32 %v804, %v812
          %v821 = vsub.f32 %v805, %v813
          %v822 = vsub.f32 %v806, %v814
          %v823 = vsub.f32 %v807, %v815
          %v824 = vsub.f32 %v808, %v816
          %vm825 = vcmask 7168
          %826 = vst.msk [vmem:[#allocation2] sm:$0xff] %vm825, %v793
          %827 = vst.msk [vmem:[#allocation2 + $0x8] sm:$0xff] %vm825, %v794
          %828 = vst.msk [vmem:[#allocation2 + $0x10] sm:$0xff] %vm825, %v795
          %829 = vst.msk [vmem:[#allocation2 + $0x18] sm:$0xff] %vm825, %v796
          %830 = vst.msk [vmem:[#allocation2 + $0x20] sm:$0xff] %vm825, %v797
          %831 = vst.msk [vmem:[#allocation2 + $0x28] sm:$0xff] %vm825, %v798
          %832 = vst.msk [vmem:[#allocation2 + $0x30] sm:$0xff] %vm825, %v799
          %833 = vst.msk [vmem:[#allocation2 + $0x38] sm:$0xff] %vm825, %v800
          %834 = vst.msk [vmem:[#allocation3] sm:$0xff] %vm825, %v817
          %835 = vst.msk [vmem:[#allocation3 + $0x8] sm:$0xff] %vm825, %v818
          %836 = vst.msk [vmem:[#allocation3 + $0x10] sm:$0xff] %vm825, %v819
          %837 = vst.msk [vmem:[#allocation3 + $0x18] sm:$0xff] %vm825, %v820
          %838 = vst.msk [vmem:[#allocation3 + $0x20] sm:$0xff] %vm825, %v821
          %839 = vst.msk [vmem:[#allocation3 + $0x28] sm:$0xff] %vm825, %v822
          %840 = vst.msk [vmem:[#allocation3 + $0x30] sm:$0xff] %vm825, %v823
          %841 = vst.msk [vmem:[#allocation3 + $0x38] sm:$0xff] %vm825, %v824
          %843 = vset.pattern.permute.xlu0 0
          %844 = vperm.xlu0 %843, %v793
          %v845 = vpop.permute.xlu0 %844
          %848 = vset.pattern.permute.xlu0 0
          %849 = vperm.xlu0 %848, %v794
          %v850 = vpop.permute.xlu0 %849
          %853 = vset.pattern.permute.xlu0 0
          %854 = vperm.xlu0 %853, %v795
          %v855 = vpop.permute.xlu0 %854
          %858 = vset.pattern.permute.xlu0 0
          %859 = vperm.xlu0 %858, %v796
          %v860 = vpop.permute.xlu0 %859
          %863 = vset.pattern.permute.xlu0 0
          %864 = vperm.xlu0 %863, %v797
          %v865 = vpop.permute.xlu0 %864
          %868 = vset.pattern.permute.xlu0 0
          %869 = vperm.xlu0 %868, %v798
          %v870 = vpop.permute.xlu0 %869
          %873 = vset.pattern.permute.xlu0 0
          %874 = vperm.xlu0 %873, %v799
          %v875 = vpop.permute.xlu0 %874
          %878 = vset.pattern.permute.xlu0 0
          %879 = vperm.xlu0 %878, %v800
          %v880 = vpop.permute.xlu0 %879
          %v882 = vmul.f32 %v470, %v845
          %v883 = vmul.f32 %v471, %v845
          %v884 = vmul.f32 %v472, %v850
          %v885 = vmul.f32 %v473, %v850
          %v886 = vmul.f32 %v474, %v855
          %v887 = vmul.f32 %v475, %v855
          %v888 = vmul.f32 %v476, %v860
          %v889 = vmul.f32 %v477, %v860
          %v890 = vmul.f32 %v478, %v865
          %v891 = vmul.f32 %v479, %v865
          %v892 = vmul.f32 %v480, %v870
          %v893 = vmul.f32 %v481, %v870
          %v894 = vmul.f32 %v482, %v875
          %v895 = vmul.f32 %v483, %v875
          %v896 = vmul.f32 %v484, %v880
          %v897 = vmul.f32 %v485, %v880
          %899 = vset.pattern.permute.xlu0 0
          %900 = vperm.xlu0 %899, %v817
          %v901 = vpop.permute.xlu0 %900
          %904 = vset.pattern.permute.xlu0 0
          %905 = vperm.xlu0 %904, %v818
          %v906 = vpop.permute.xlu0 %905
          %909 = vset.pattern.permute.xlu0 0
          %910 = vperm.xlu0 %909, %v819
          %v911 = vpop.permute.xlu0 %910
          %914 = vset.pattern.permute.xlu0 0
          %915 = vperm.xlu0 %914, %v820
          %v916 = vpop.permute.xlu0 %915
          %919 = vset.pattern.permute.xlu0 0
          %920 = vperm.xlu0 %919, %v821
          %v921 = vpop.permute.xlu0 %920
          %924 = vset.pattern.permute.xlu0 0
          %925 = vperm.xlu0 %924, %v822
          %v926 = vpop.permute.xlu0 %925
          %929 = vset.pattern.permute.xlu0 0
          %930 = vperm.xlu0 %929, %v823
          %v931 = vpop.permute.xlu0 %930
          %934 = vset.pattern.permute.xlu0 0
          %935 = vperm.xlu0 %934, %v824
          %v936 = vpop.permute.xlu0 %935
          %v938 = vadd.f32 %v882, %v901
          %v939 = vadd.f32 %v883, %v901
          %v940 = vadd.f32 %v884, %v906
          %v941 = vadd.f32 %v885, %v906
          %v942 = vadd.f32 %v886, %v911
          %v943 = vadd.f32 %v887, %v911
          %v944 = vadd.f32 %v888, %v916
          %v945 = vadd.f32 %v889, %v916
          %v946 = vadd.f32 %v890, %v921
          %v947 = vadd.f32 %v891, %v921
          %v948 = vadd.f32 %v892, %v926
          %v949 = vadd.f32 %v893, %v926
          %v950 = vadd.f32 %v894, %v931
          %v951 = vadd.f32 %v895, %v931
          %v952 = vadd.f32 %v896, %v936
          %v953 = vadd.f32 %v897, %v936
          %v954 = vld [vmem:[%s6] sm:$0xff]
          %v955 = vld [vmem:[%s6 + $0x8] sm:$0xff]
          %v956 = vld [vmem:[%s6 + $0x10] sm:$0xff]
          %v957 = vld [vmem:[%s6 + $0x18] sm:$0xff]
          %v958 = vld [vmem:[%s6 + $0x20] sm:$0xff]
          %v959 = vld [vmem:[%s6 + $0x28] sm:$0xff]
          %v960 = vld [vmem:[%s6 + $0x30] sm:$0xff]
          %v961 = vld [vmem:[%s6 + $0x38] sm:$0xff]
          %v962 = vld [vmem:[%s7] sm:$0xff]
          %v963 = vld [vmem:[%s7 + $0x8] sm:$0xff]
          %v964 = vld [vmem:[%s7 + $0x10] sm:$0xff]
          %v965 = vld [vmem:[%s7 + $0x18] sm:$0xff]
          %v966 = vld [vmem:[%s7 + $0x20] sm:$0xff]
          %v967 = vld [vmem:[%s7 + $0x28] sm:$0xff]
          %v968 = vld [vmem:[%s7 + $0x30] sm:$0xff]
          %v969 = vld [vmem:[%s7 + $0x38] sm:$0xff]
          %971 = vset.pattern.permute.xlu0 0
          %972 = vperm.xlu0 %971, %v962
          %v973 = vpop.permute.xlu0 %972
          %976 = vset.pattern.permute.xlu0 0
          %977 = vperm.xlu0 %976, %v963
          %v978 = vpop.permute.xlu0 %977
          %981 = vset.pattern.permute.xlu0 0
          %982 = vperm.xlu0 %981, %v964
          %v983 = vpop.permute.xlu0 %982
          %986 = vset.pattern.permute.xlu0 0
          %987 = vperm.xlu0 %986, %v965
          %v988 = vpop.permute.xlu0 %987
          %991 = vset.pattern.permute.xlu0 0
          %992 = vperm.xlu0 %991, %v966
          %v993 = vpop.permute.xlu0 %992
          %996 = vset.pattern.permute.xlu0 0
          %997 = vperm.xlu0 %996, %v967
          %v998 = vpop.permute.xlu0 %997
          %1001 = vset.pattern.permute.xlu0 0
          %1002 = vperm.xlu0 %1001, %v968
          %v1003 = vpop.permute.xlu0 %1002
          %1006 = vset.pattern.permute.xlu0 0
          %1007 = vperm.xlu0 %1006, %v969
          %v1008 = vpop.permute.xlu0 %1007
          %v1011 = vsel %vm558, %v954, 0
          %v1014 = vsel %vm558, %v955, 0
          %v1017 = vsel %vm558, %v956, 0
          %v1020 = vsel %vm558, %v957, 0
          %v1023 = vsel %vm558, %v958, 0
          %v1026 = vsel %vm558, %v959, 0
          %v1029 = vsel %vm558, %v960, 0
          %v1032 = vsel %vm558, %v961, 0
          %1034 = vmatpush.msra.mxu0 0.0
          %1035 = vmatpush.msra.mxu0 0.0
          %1036 = vmatpush.msra.mxu0 0.0
          %1037 = vmatpush.msra.mxu0 0.0
          %1038 = vmatpush.msra.mxu0 0.0
          %1039 = vmatpush.msra.mxu0 0.0
          %1040 = vmatpush.msra.mxu0 0.0
          %1041 = vmatpush.msra.mxu0 0.0
          %1042 = vmatpush.msra.mxu0 %v952
          %1043 = vmatpush.msra.mxu0 %v950
          %1044 = vmatpush.msra.mxu0 %v948
          %1045 = vmatpush.msra.mxu0 %v946
          %1046 = vmatpush.msra.mxu0 %v944
          %1047 = vmatpush.msra.mxu0 %v942
          %1048 = vmatpush.msra.mxu0 %v940
          %1049 = vmatpush.msra.mxu0 %v938
          %1050 = vmatmul.f32.gmra.mxu0 %v1011
          %v1051 = vpop.f32.mrf.mxu0
          %v1052 = vadd.f32 %v973, %v1051
          %1053 = vmatmul.f32.gmra.mxu0 %v1014
          %v1054 = vpop.f32.mrf.mxu0
          %v1055 = vadd.f32 %v978, %v1054
          %1056 = vmatmul.f32.gmra.mxu0 %v1017
          %v1057 = vpop.f32.mrf.mxu0
          %v1058 = vadd.f32 %v983, %v1057
          %1059 = vmatmul.f32.gmra.mxu0 %v1020
          %v1060 = vpop.f32.mrf.mxu0
          %v1061 = vadd.f32 %v988, %v1060
          %1062 = vmatmul.f32.gmra.mxu0 %v1023
          %v1063 = vpop.f32.mrf.mxu0
          %v1064 = vadd.f32 %v993, %v1063
          %1065 = vmatmul.f32.gmra.mxu0 %v1026
          %v1066 = vpop.f32.mrf.mxu0
          %v1067 = vadd.f32 %v998, %v1066
          %1068 = vmatmul.f32.gmra.mxu0 %v1029
          %v1069 = vpop.f32.mrf.mxu0
          %v1070 = vadd.f32 %v1003, %v1069
          %1071 = vmatmul.f32.gmra.mxu0 %v1032
          %v1072 = vpop.f32.mrf.mxu0
          %v1073 = vadd.f32 %v1008, %v1072
          %1074 = vdwg.mxu0
          %1075 = vmatpush.msra.mxu0 0.0
          %1076 = vmatpush.msra.mxu0 0.0
          %1077 = vmatpush.msra.mxu0 0.0
          %1078 = vmatpush.msra.mxu0 0.0
          %1079 = vmatpush.msra.mxu0 0.0
          %1080 = vmatpush.msra.mxu0 0.0
          %1081 = vmatpush.msra.mxu0 0.0
          %1082 = vmatpush.msra.mxu0 0.0
          %1083 = vmatpush.msra.mxu0 %v953
          %1084 = vmatpush.msra.mxu0 %v951
          %1085 = vmatpush.msra.mxu0 %v949
          %1086 = vmatpush.msra.mxu0 %v947
          %1087 = vmatpush.msra.mxu0 %v945
          %1088 = vmatpush.msra.mxu0 %v943
          %1089 = vmatpush.msra.mxu0 %v941
          %1090 = vmatpush.msra.mxu0 %v939
          %1091 = vmatmul.f32.gmra.mxu0 %v1011
          %v1092 = vpop.f32.mrf.mxu0
          %v1093 = vadd.f32 %v973, %v1092
          %1094 = vmatmul.f32.gmra.mxu0 %v1014
          %v1095 = vpop.f32.mrf.mxu0
          %v1096 = vadd.f32 %v978, %v1095
          %1097 = vmatmul.f32.gmra.mxu0 %v1017
          %v1098 = vpop.f32.mrf.mxu0
          %v1099 = vadd.f32 %v983, %v1098
          %1100 = vmatmul.f32.gmra.mxu0 %v1020
          %v1101 = vpop.f32.mrf.mxu0
          %v1102 = vadd.f32 %v988, %v1101
          %1103 = vmatmul.f32.gmra.mxu0 %v1023
          %v1104 = vpop.f32.mrf.mxu0
          %v1105 = vadd.f32 %v993, %v1104
          %1106 = vmatmul.f32.gmra.mxu0 %v1026
          %v1107 = vpop.f32.mrf.mxu0
          %v1108 = vadd.f32 %v998, %v1107
          %1109 = vmatmul.f32.gmra.mxu0 %v1029
          %v1110 = vpop.f32.mrf.mxu0
          %v1111 = vadd.f32 %v1003, %v1110
          %1112 = vmatmul.f32.gmra.mxu0 %v1032
          %v1113 = vpop.f32.mrf.mxu0
          %v1114 = vadd.f32 %v1008, %v1113
          %1115 = vdwg.mxu0
          %1116 = vst [vmem:[#allocation4] sm:$0xff] %v1052
          %1117 = vst [vmem:[#allocation4 + $0x8] sm:$0xff] %v1093
          %1118 = vst [vmem:[#allocation4 + $0x10] sm:$0xff] %v1055
          %1119 = vst [vmem:[#allocation4 + $0x18] sm:$0xff] %v1096
          %1120 = vst [vmem:[#allocation4 + $0x20] sm:$0xff] %v1058
          %1121 = vst [vmem:[#allocation4 + $0x28] sm:$0xff] %v1099
          %1122 = vst [vmem:[#allocation4 + $0x30] sm:$0xff] %v1061
          %1123 = vst [vmem:[#allocation4 + $0x38] sm:$0xff] %v1102
          %1124 = vst [vmem:[#allocation4 + $0x40] sm:$0xff] %v1064
          %1125 = vst [vmem:[#allocation4 + $0x48] sm:$0xff] %v1105
          %1126 = vst [vmem:[#allocation4 + $0x50] sm:$0xff] %v1067
          %1127 = vst [vmem:[#allocation4 + $0x58] sm:$0xff] %v1108
          %1128 = vst [vmem:[#allocation4 + $0x60] sm:$0xff] %v1070
          %1129 = vst [vmem:[#allocation4 + $0x68] sm:$0xff] %v1111
          %1130 = vst [vmem:[#allocation4 + $0x70] sm:$0xff] %v1073
          %1131 = vst [vmem:[#allocation4 + $0x78] sm:$0xff] %v1114
          %1132 = vxpose.xlu0.b32.start [1/16] %v938, 128
          %1133 = vxpose.xlu0.b32.cont [2/16] %v940, 128
          %1134 = vxpose.xlu0.b32.cont [3/16] %v942, 128
          %1135 = vxpose.xlu0.b32.cont [4/16] %v944, 128
          %1136 = vxpose.xlu0.b32.cont [5/16] %v946, 128
          %1137 = vxpose.xlu0.b32.cont [6/16] %v948, 128
          %1138 = vxpose.xlu0.b32.cont [7/16] %v950, 128
          %1139 = vxpose.xlu0.b32.cont [8/16] %v952, 128
          %1140 = vxpose.xlu0.b32.cont [9/16] 0.0, 128
          %1141 = vxpose.xlu0.b32.cont [10/16] 0.0, 128
          %1142 = vxpose.xlu0.b32.cont [11/16] 0.0, 128
          %1143 = vxpose.xlu0.b32.cont [12/16] 0.0, 128
          %1144 = vxpose.xlu0.b32.cont [13/16] 0.0, 128
          %1145 = vxpose.xlu0.b32.cont [14/16] 0.0, 128
          %1146 = vxpose.xlu0.b32.cont [15/16] 0.0, 128
          %1147 = vxpose.xlu0.b32.end [16/16] 0.0, 128
          %v1148 = vpop.trf.xlu0
          %v1149 = vpop.trf.xlu0
          %v1150 = vpop.trf.xlu0
          %v1151 = vpop.trf.xlu0
          %v1152 = vpop.trf.xlu0
          %v1153 = vpop.trf.xlu0
          %v1154 = vpop.trf.xlu0
          %v1155 = vpop.trf.xlu0
          %v1156 = vpop.trf.xlu0
          %v1157 = vpop.trf.xlu0
          %v1158 = vpop.trf.xlu0
          %v1159 = vpop.trf.xlu0
          %v1160 = vpop.trf.xlu0
          %v1161 = vpop.trf.xlu0
          %v1162 = vpop.trf.xlu0
          %v1163 = vpop.trf.xlu0
          %1164 = vxpose.xlu0.b32.start [1/16] %v939, 128
          %1165 = vxpose.xlu0.b32.cont [2/16] %v941, 128
          %1166 = vxpose.xlu0.b32.cont [3/16] %v943, 128
          %1167 = vxpose.xlu0.b32.cont [4/16] %v945, 128
          %1168 = vxpose.xlu0.b32.cont [5/16] %v947, 128
          %1169 = vxpose.xlu0.b32.cont [6/16] %v949, 128
          %1170 = vxpose.xlu0.b32.cont [7/16] %v951, 128
          %1171 = vxpose.xlu0.b32.cont [8/16] %v953, 128
          %1172 = vxpose.xlu0.b32.cont [9/16] 0.0, 128
          %1173 = vxpose.xlu0.b32.cont [10/16] 0.0, 128
          %1174 = vxpose.xlu0.b32.cont [11/16] 0.0, 128
          %1175 = vxpose.xlu0.b32.cont [12/16] 0.0, 128
          %1176 = vxpose.xlu0.b32.cont [13/16] 0.0, 128
          %1177 = vxpose.xlu0.b32.cont [14/16] 0.0, 128
          %1178 = vxpose.xlu0.b32.cont [15/16] 0.0, 128
          %1179 = vxpose.xlu0.b32.end [16/16] 0.0, 128
          %v1180 = vpop.trf.xlu0
          %v1181 = vpop.trf.xlu0
          %v1182 = vpop.trf.xlu0
          %v1183 = vpop.trf.xlu0
          %v1184 = vpop.trf.xlu0
          %v1185 = vpop.trf.xlu0
          %v1186 = vpop.trf.xlu0
          %v1187 = vpop.trf.xlu0
          %v1188 = vpop.trf.xlu0
          %v1189 = vpop.trf.xlu0
          %v1190 = vpop.trf.xlu0
          %v1191 = vpop.trf.xlu0
          %v1192 = vpop.trf.xlu0
          %v1193 = vpop.trf.xlu0
          %v1194 = vpop.trf.xlu0
          %v1195 = vpop.trf.xlu0
          %v1196 = vld [vmem:[%s8] sm:$0xff]
          %v1197 = vld [vmem:[%s8 + $0x8] sm:$0xff]
          %v1198 = vld [vmem:[%s8 + $0x10] sm:$0xff]
          %v1199 = vld [vmem:[%s8 + $0x18] sm:$0xff]
          %v1200 = vld [vmem:[%s8 + $0x20] sm:$0xff]
          %v1201 = vld [vmem:[%s8 + $0x28] sm:$0xff]
          %v1202 = vld [vmem:[%s8 + $0x30] sm:$0xff]
          %v1203 = vld [vmem:[%s8 + $0x38] sm:$0xff]
          %v1204 = vld [vmem:[%s9] sm:$0x1]
          %v1206 = vperm.slane %v1204, 0
          %v1209 = vsel %vm558, %v1148, 0
          %v1212 = vsel %vm558, %v1149, 0
          %v1215 = vsel %vm558, %v1150, 0
          %v1218 = vsel %vm558, %v1151, 0
          %v1221 = vsel %vm558, %v1152, 0
          %v1224 = vsel %vm558, %v1153, 0
          %v1227 = vsel %vm558, %v1154, 0
          %v1230 = vsel %vm558, %v1155, 0
          %v1233 = vsel %vm558, %v1156, 0
          %v1236 = vsel %vm558, %v1157, 0
          %v1239 = vsel %vm558, %v1158, 0
          %v1242 = vsel %vm558, %v1159, 0
          %v1245 = vsel %vm558, %v1160, 0
          %v1248 = vsel %vm558, %v1161, 0
          %v1251 = vsel %vm558, %v1162, 0
          %v1254 = vsel %vm558, %v1163, 0
          %v1257 = vsel %vm558, %v1180, 0
          %v1260 = vsel %vm558, %v1181, 0
          %v1263 = vsel %vm558, %v1182, 0
          %v1266 = vsel %vm558, %v1183, 0
          %v1269 = vsel %vm558, %v1184, 0
          %v1272 = vsel %vm558, %v1185, 0
          %v1275 = vsel %vm558, %v1186, 0
          %v1278 = vsel %vm558, %v1187, 0
          %v1281 = vsel %vm558, %v1188, 0
          %v1284 = vsel %vm558, %v1189, 0
          %v1287 = vsel %vm558, %v1190, 0
          %v1290 = vsel %vm558, %v1191, 0
          %v1293 = vsel %vm558, %v1192, 0
          %v1296 = vsel %vm558, %v1193, 0
          %v1299 = vsel %vm558, %v1194, 0
          %v1302 = vsel %vm558, %v1195, 0
          %v1305 = vsel %vm558, %v1196, 0
          %v1308 = vsel %vm558, %v1197, 0
          %v1311 = vsel %vm558, %v1198, 0
          %v1314 = vsel %vm558, %v1199, 0
          %v1317 = vsel %vm558, %v1200, 0
          %v1320 = vsel %vm558, %v1201, 0
          %v1323 = vsel %vm558, %v1202, 0
          %v1326 = vsel %vm558, %v1203, 0
          %1328 = vmatpush.xpose.msra.mxu0 0.0
          %1329 = vmatpush.xpose.msra.mxu0 0.0
          %1330 = vmatpush.xpose.msra.mxu0 0.0
          %1331 = vmatpush.xpose.msra.mxu0 0.0
          %1332 = vmatpush.xpose.msra.mxu0 0.0
          %1333 = vmatpush.xpose.msra.mxu0 0.0
          %1334 = vmatpush.xpose.msra.mxu0 0.0
          %1335 = vmatpush.xpose.msra.mxu0 0.0
          %1336 = vmatpush.xpose.msra.mxu0 %v1326
          %1337 = vmatpush.xpose.msra.mxu0 %v1323
          %1338 = vmatpush.xpose.msra.mxu0 %v1320
          %1339 = vmatpush.xpose.msra.mxu0 %v1317
          %1340 = vmatpush.xpose.msra.mxu0 %v1314
          %1341 = vmatpush.xpose.msra.mxu0 %v1311
          %1342 = vmatpush.xpose.msra.mxu0 %v1308
          %1343 = vmatpush.xpose.msra.mxu0 %v1305
          %1344 = vmatmul.f32.gmra.mxu0 %v1209
          %v1345 = vpop.f32.mrf.mxu0
          %v1346 = vadd.f32 %v1206, %v1345
          %1347 = vmatmul.f32.gmra.mxu0 %v1212
          %v1348 = vpop.f32.mrf.mxu0
          %v1349 = vadd.f32 %v1206, %v1348
          %1350 = vmatmul.f32.gmra.mxu0 %v1215
          %v1351 = vpop.f32.mrf.mxu0
          %v1352 = vadd.f32 %v1206, %v1351
          %1353 = vmatmul.f32.gmra.mxu0 %v1218
          %v1354 = vpop.f32.mrf.mxu0
          %v1355 = vadd.f32 %v1206, %v1354
          %1356 = vmatmul.f32.gmra.mxu0 %v1221
          %v1357 = vpop.f32.mrf.mxu0
          %v1358 = vadd.f32 %v1206, %v1357
          %1359 = vmatmul.f32.gmra.mxu0 %v1224
          %v1360 = vpop.f32.mrf.mxu0
          %v1361 = vadd.f32 %v1206, %v1360
          %1362 = vmatmul.f32.gmra.mxu0 %v1227
          %v1363 = vpop.f32.mrf.mxu0
          %v1364 = vadd.f32 %v1206, %v1363
          %1365 = vmatmul.f32.gmra.mxu0 %v1230
          %v1366 = vpop.f32.mrf.mxu0
          %v1367 = vadd.f32 %v1206, %v1366
          %1368 = vmatmul.f32.gmra.mxu0 %v1233
          %v1369 = vpop.f32.mrf.mxu0
          %v1370 = vadd.f32 %v1206, %v1369
          %1371 = vmatmul.f32.gmra.mxu0 %v1236
          %v1372 = vpop.f32.mrf.mxu0
          %v1373 = vadd.f32 %v1206, %v1372
          %1374 = vmatmul.f32.gmra.mxu0 %v1239
          %v1375 = vpop.f32.mrf.mxu0
          %v1376 = vadd.f32 %v1206, %v1375
          %1377 = vmatmul.f32.gmra.mxu0 %v1242
          %v1378 = vpop.f32.mrf.mxu0
          %v1379 = vadd.f32 %v1206, %v1378
          %1380 = vmatmul.f32.gmra.mxu0 %v1245
          %v1381 = vpop.f32.mrf.mxu0
          %v1382 = vadd.f32 %v1206, %v1381
          %1383 = vmatmul.f32.gmra.mxu0 %v1248
          %v1384 = vpop.f32.mrf.mxu0
          %v1385 = vadd.f32 %v1206, %v1384
          %1386 = vmatmul.f32.gmra.mxu0 %v1251
          %v1387 = vpop.f32.mrf.mxu0
          %v1388 = vadd.f32 %v1206, %v1387
          %1389 = vmatmul.f32.gmra.mxu0 %v1254
          %v1390 = vpop.f32.mrf.mxu0
          %v1391 = vadd.f32 %v1206, %v1390
          %1392 = vmatmul.f32.gmra.mxu0 %v1257
          %v1393 = vpop.f32.mrf.mxu0
          %v1394 = vadd.f32 %v1206, %v1393
          %1395 = vmatmul.f32.gmra.mxu0 %v1260
          %v1396 = vpop.f32.mrf.mxu0
          %v1397 = vadd.f32 %v1206, %v1396
          %1398 = vmatmul.f32.gmra.mxu0 %v1263
          %v1399 = vpop.f32.mrf.mxu0
          %v1400 = vadd.f32 %v1206, %v1399
          %1401 = vmatmul.f32.gmra.mxu0 %v1266
          %v1402 = vpop.f32.mrf.mxu0
          %v1403 = vadd.f32 %v1206, %v1402
          %1404 = vmatmul.f32.gmra.mxu0 %v1269
          %v1405 = vpop.f32.mrf.mxu0
          %v1406 = vadd.f32 %v1206, %v1405
          %1407 = vmatmul.f32.gmra.mxu0 %v1272
          %v1408 = vpop.f32.mrf.mxu0
          %v1409 = vadd.f32 %v1206, %v1408
          %1410 = vmatmul.f32.gmra.mxu0 %v1275
          %v1411 = vpop.f32.mrf.mxu0
          %v1412 = vadd.f32 %v1206, %v1411
          %1413 = vmatmul.f32.gmra.mxu0 %v1278
          %v1414 = vpop.f32.mrf.mxu0
          %v1415 = vadd.f32 %v1206, %v1414
          %1416 = vmatmul.f32.gmra.mxu0 %v1281
          %v1417 = vpop.f32.mrf.mxu0
          %v1418 = vadd.f32 %v1206, %v1417
          %1419 = vmatmul.f32.gmra.mxu0 %v1284
          %v1420 = vpop.f32.mrf.mxu0
          %v1421 = vadd.f32 %v1206, %v1420
          %1422 = vmatmul.f32.gmra.mxu0 %v1287
          %v1423 = vpop.f32.mrf.mxu0
          %v1424 = vadd.f32 %v1206, %v1423
          %1425 = vmatmul.f32.gmra.mxu0 %v1290
          %v1426 = vpop.f32.mrf.mxu0
          %v1427 = vadd.f32 %v1206, %v1426
          %1428 = vmatmul.f32.gmra.mxu0 %v1293
          %v1429 = vpop.f32.mrf.mxu0
          %v1430 = vadd.f32 %v1206, %v1429
          %1431 = vmatmul.f32.gmra.mxu0 %v1296
          %v1432 = vpop.f32.mrf.mxu0
          %v1433 = vadd.f32 %v1206, %v1432
          %1434 = vmatmul.f32.gmra.mxu0 %v1299
          %v1435 = vpop.f32.mrf.mxu0
          %v1436 = vadd.f32 %v1206, %v1435
          %1437 = vmatmul.f32.gmra.mxu0 %v1302
          %v1438 = vpop.f32.mrf.mxu0
          %v1439 = vadd.f32 %v1206, %v1438
          %1440 = vdwg.mxu0
          %1441 = vst.msk [vmem:[#allocation5] sm:$0xff] %vm558, %v1346
          %1442 = vst.msk [vmem:[#allocation5 + $0x8] sm:$0xff] %vm558, %v1349
          %1443 = vst.msk [vmem:[#allocation5 + $0x10] sm:$0xff] %vm558, %v1352
          %1444 = vst.msk [vmem:[#allocation5 + $0x18] sm:$0xff] %vm558, %v1355
          %1445 = vst.msk [vmem:[#allocation5 + $0x20] sm:$0xff] %vm558, %v1358
          %1446 = vst.msk [vmem:[#allocation5 + $0x28] sm:$0xff] %vm558, %v1361
          %1447 = vst.msk [vmem:[#allocation5 + $0x30] sm:$0xff] %vm558, %v1364
          %1448 = vst.msk [vmem:[#allocation5 + $0x38] sm:$0xff] %vm558, %v1367
          %1449 = vst.msk [vmem:[#allocation5 + $0x40] sm:$0xff] %vm558, %v1370
          %1450 = vst.msk [vmem:[#allocation5 + $0x48] sm:$0xff] %vm558, %v1373
          %1451 = vst.msk [vmem:[#allocation5 + $0x50] sm:$0xff] %vm558, %v1376
          %1452 = vst.msk [vmem:[#allocation5 + $0x58] sm:$0xff] %vm558, %v1379
          %1453 = vst.msk [vmem:[#allocation5 + $0x60] sm:$0xff] %vm558, %v1382
          %1454 = vst.msk [vmem:[#allocation5 + $0x68] sm:$0xff] %vm558, %v1385
          %1455 = vst.msk [vmem:[#allocation5 + $0x70] sm:$0xff] %vm558, %v1388
          %1456 = vst.msk [vmem:[#allocation5 + $0x78] sm:$0xff] %vm558, %v1391
          %1457 = vst.msk [vmem:[#allocation5 + $0x80] sm:$0xff] %vm558, %v1394
          %1458 = vst.msk [vmem:[#allocation5 + $0x88] sm:$0xff] %vm558, %v1397
          %1459 = vst.msk [vmem:[#allocation5 + $0x90] sm:$0xff] %vm558, %v1400
          %1460 = vst.msk [vmem:[#allocation5 + $0x98] sm:$0xff] %vm558, %v1403
          %1461 = vst.msk [vmem:[#allocation5 + $0xa0] sm:$0xff] %vm558, %v1406
          %1462 = vst.msk [vmem:[#allocation5 + $0xa8] sm:$0xff] %vm558, %v1409
          %1463 = vst.msk [vmem:[#allocation5 + $0xb0] sm:$0xff] %vm558, %v1412
          %1464 = vst.msk [vmem:[#allocation5 + $0xb8] sm:$0xff] %vm558, %v1415
          %1465 = vst.msk [vmem:[#allocation5 + $0xc0] sm:$0xff] %vm558, %v1418
          %1466 = vst.msk [vmem:[#allocation5 + $0xc8] sm:$0xff] %vm558, %v1421
          %1467 = vst.msk [vmem:[#allocation5 + $0xd0] sm:$0xff] %vm558, %v1424
          %1468 = vst.msk [vmem:[#allocation5 + $0xd8] sm:$0xff] %vm558, %v1427
          %1469 = vst.msk [vmem:[#allocation5 + $0xe0] sm:$0xff] %vm558, %v1430
          %1470 = vst.msk [vmem:[#allocation5 + $0xe8] sm:$0xff] %vm558, %v1433
          %1471 = vst.msk [vmem:[#allocation5 + $0xf0] sm:$0xff] %vm558, %v1436
          %1472 = vst.msk [vmem:[#allocation5 + $0xf8] sm:$0xff] %vm558, %v1439
        $region80: #{tpu_custom_call.1} parent=67 // pred_fallthru
          _
        %s1473 = smul.u32 %s35, 256
        %s1474 = sshra.s32 %s1473, 7
        %s1475 = sand.u32 %s1473, 127
        %s1476 = smul.addr %s1474, 8
        %s1477 = scalar_lea.vmem %s418, %s1476 [#allocation6]
        %v1478 = vld [vmem:[%s1477] sm:$0xff]
        %v1479 = vld [vmem:[%s1477 + $0x8] sm:$0xff]
        %v1480 = vld [vmem:[%s1477 + $0x10] sm:$0xff]
        %v1481 = vld [vmem:[%s1477 + $0x18] sm:$0xff]
        %v1482 = vld [vmem:[%s1477 + $0x20] sm:$0xff]
        %v1483 = vld [vmem:[%s1477 + $0x28] sm:$0xff]
        %v1484 = vld [vmem:[%s1477 + $0x30] sm:$0xff]
        %v1485 = vld [vmem:[%s1477 + $0x38] sm:$0xff]
        %v1486 = vld [vmem:[%s1477 + $0x40] sm:$0xff]
        %v1487 = vld [vmem:[%s1477 + $0x48] sm:$0xff]
        %v1488 = vld [vmem:[%s1477 + $0x50] sm:$0xff]
        %v1489 = vld [vmem:[%s1477 + $0x58] sm:$0xff]
        %v1490 = vld [vmem:[%s1477 + $0x60] sm:$0xff]
        %v1491 = vld [vmem:[%s1477 + $0x68] sm:$0xff]
        %v1492 = vld [vmem:[%s1477 + $0x70] sm:$0xff]
        %v1493 = vld [vmem:[%s1477 + $0x78] sm:$0xff]
        %v1494 = vld [vmem:[#allocation2] sm:$0xff]
        %v1495 = vld [vmem:[#allocation2 + $0x8] sm:$0xff]
        %v1496 = vld [vmem:[#allocation2 + $0x10] sm:$0xff]
        %v1497 = vld [vmem:[#allocation2 + $0x18] sm:$0xff]
        %v1498 = vld [vmem:[#allocation2 + $0x20] sm:$0xff]
        %v1499 = vld [vmem:[#allocation2 + $0x28] sm:$0xff]
        %v1500 = vld [vmem:[#allocation2 + $0x30] sm:$0xff]
        %v1501 = vld [vmem:[#allocation2 + $0x38] sm:$0xff]
        %1503 = vset.pattern.permute.xlu0 0
        %1504 = vperm.xlu0 %1503, %v1494
        %v1505 = vpop.permute.xlu0 %1504
        %1508 = vset.pattern.permute.xlu0 0
        %1509 = vperm.xlu0 %1508, %v1495
        %v1510 = vpop.permute.xlu0 %1509
        %1513 = vset.pattern.permute.xlu0 0
        %1514 = vperm.xlu0 %1513, %v1496
        %v1515 = vpop.permute.xlu0 %1514
        %1518 = vset.pattern.permute.xlu0 0
        %1519 = vperm.xlu0 %1518, %v1497
        %v1520 = vpop.permute.xlu0 %1519
        %1523 = vset.pattern.permute.xlu0 0
        %1524 = vperm.xlu0 %1523, %v1498
        %v1525 = vpop.permute.xlu0 %1524
        %1528 = vset.pattern.permute.xlu0 0
        %1529 = vperm.xlu0 %1528, %v1499
        %v1530 = vpop.permute.xlu0 %1529
        %1533 = vset.pattern.permute.xlu0 0
        %1534 = vperm.xlu0 %1533, %v1500
        %v1535 = vpop.permute.xlu0 %1534
        %1538 = vset.pattern.permute.xlu0 0
        %1539 = vperm.xlu0 %1538, %v1501
        %v1540 = vpop.permute.xlu0 %1539
        %v1542 = vmul.f32 %v1478, %v1505
        %v1543 = vmul.f32 %v1479, %v1505
        %v1544 = vmul.f32 %v1480, %v1510
        %v1545 = vmul.f32 %v1481, %v1510
        %v1546 = vmul.f32 %v1482, %v1515
        %v1547 = vmul.f32 %v1483, %v1515
        %v1548 = vmul.f32 %v1484, %v1520
        %v1549 = vmul.f32 %v1485, %v1520
        %v1550 = vmul.f32 %v1486, %v1525
        %v1551 = vmul.f32 %v1487, %v1525
        %v1552 = vmul.f32 %v1488, %v1530
        %v1553 = vmul.f32 %v1489, %v1530
        %v1554 = vmul.f32 %v1490, %v1535
        %v1555 = vmul.f32 %v1491, %v1535
        %v1556 = vmul.f32 %v1492, %v1540
        %v1557 = vmul.f32 %v1493, %v1540
        %v1558 = vld [vmem:[#allocation3] sm:$0xff]
        %v1559 = vld [vmem:[#allocation3 + $0x8] sm:$0xff]
        %v1560 = vld [vmem:[#allocation3 + $0x10] sm:$0xff]
        %v1561 = vld [vmem:[#allocation3 + $0x18] sm:$0xff]
        %v1562 = vld [vmem:[#allocation3 + $0x20] sm:$0xff]
        %v1563 = vld [vmem:[#allocation3 + $0x28] sm:$0xff]
        %v1564 = vld [vmem:[#allocation3 + $0x30] sm:$0xff]
        %v1565 = vld [vmem:[#allocation3 + $0x38] sm:$0xff]
        %1567 = vset.pattern.permute.xlu0 0
        %1568 = vperm.xlu0 %1567, %v1558
        %v1569 = vpop.permute.xlu0 %1568
        %1572 = vset.pattern.permute.xlu0 0
        %1573 = vperm.xlu0 %1572, %v1559
        %v1574 = vpop.permute.xlu0 %1573
        %1577 = vset.pattern.permute.xlu0 0
        %1578 = vperm.xlu0 %1577, %v1560
        %v1579 = vpop.permute.xlu0 %1578
        %1582 = vset.pattern.permute.xlu0 0
        %1583 = vperm.xlu0 %1582, %v1561
        %v1584 = vpop.permute.xlu0 %1583
        %1587 = vset.pattern.permute.xlu0 0
        %1588 = vperm.xlu0 %1587, %v1562
        %v1589 = vpop.permute.xlu0 %1588
        %1592 = vset.pattern.permute.xlu0 0
        %1593 = vperm.xlu0 %1592, %v1563
        %v1594 = vpop.permute.xlu0 %1593
        %1597 = vset.pattern.permute.xlu0 0
        %1598 = vperm.xlu0 %1597, %v1564
        %v1599 = vpop.permute.xlu0 %1598
        %1602 = vset.pattern.permute.xlu0 0
        %1603 = vperm.xlu0 %1602, %v1565
        %v1604 = vpop.permute.xlu0 %1603
        %v1606 = vadd.f32 %v1542, %v1569
        %v1607 = vadd.f32 %v1543, %v1569
        %v1608 = vadd.f32 %v1544, %v1574
        %v1609 = vadd.f32 %v1545, %v1574
        %v1610 = vadd.f32 %v1546, %v1579
        %v1611 = vadd.f32 %v1547, %v1579
        %v1612 = vadd.f32 %v1548, %v1584
        %v1613 = vadd.f32 %v1549, %v1584
        %v1614 = vadd.f32 %v1550, %v1589
        %v1615 = vadd.f32 %v1551, %v1589
        %v1616 = vadd.f32 %v1552, %v1594
        %v1617 = vadd.f32 %v1553, %v1594
        %v1618 = vadd.f32 %v1554, %v1599
        %v1619 = vadd.f32 %v1555, %v1599
        %v1620 = vadd.f32 %v1556, %v1604
        %v1621 = vadd.f32 %v1557, %v1604
        %1622 = vxpose.xlu0.b32.start [1/16] %v1606, 128
        %1623 = vxpose.xlu0.b32.cont [2/16] %v1608, 128
        %1624 = vxpose.xlu0.b32.cont [3/16] %v1610, 128
        %1625 = vxpose.xlu0.b32.cont [4/16] %v1612, 128
        %1626 = vxpose.xlu0.b32.cont [5/16] %v1614, 128
        %1627 = vxpose.xlu0.b32.cont [6/16] %v1616, 128
        %1628 = vxpose.xlu0.b32.cont [7/16] %v1618, 128
        %1629 = vxpose.xlu0.b32.cont [8/16] %v1620, 128
        %1630 = vxpose.xlu0.b32.cont [9/16] 0.0, 128
        %1631 = vxpose.xlu0.b32.cont [10/16] 0.0, 128
        %1632 = vxpose.xlu0.b32.cont [11/16] 0.0, 128
        %1633 = vxpose.xlu0.b32.cont [12/16] 0.0, 128
        %1634 = vxpose.xlu0.b32.cont [13/16] 0.0, 128
        %1635 = vxpose.xlu0.b32.cont [14/16] 0.0, 128
        %1636 = vxpose.xlu0.b32.cont [15/16] 0.0, 128
        %1637 = vxpose.xlu0.b32.end [16/16] 0.0, 128
        %v1638 = vpop.trf.xlu0
        %v1639 = vpop.trf.xlu0
        %v1640 = vpop.trf.xlu0
        %v1641 = vpop.trf.xlu0
        %v1642 = vpop.trf.xlu0
        %v1643 = vpop.trf.xlu0
        %v1644 = vpop.trf.xlu0
        %v1645 = vpop.trf.xlu0
        %v1646 = vpop.trf.xlu0
        %v1647 = vpop.trf.xlu0
        %v1648 = vpop.trf.xlu0
        %v1649 = vpop.trf.xlu0
        %v1650 = vpop.trf.xlu0
        %v1651 = vpop.trf.xlu0
        %v1652 = vpop.trf.xlu0
        %v1653 = vpop.trf.xlu0
        %1654 = vxpose.xlu0.b32.start [1/16] %v1607, 128
        %1655 = vxpose.xlu0.b32.cont [2/16] %v1609, 128
        %1656 = vxpose.xlu0.b32.cont [3/16] %v1611, 128
        %1657 = vxpose.xlu0.b32.cont [4/16] %v1613, 128
        %1658 = vxpose.xlu0.b32.cont [5/16] %v1615, 128
        %1659 = vxpose.xlu0.b32.cont [6/16] %v1617, 128
        %1660 = vxpose.xlu0.b32.cont [7/16] %v1619, 128
        %1661 = vxpose.xlu0.b32.cont [8/16] %v1621, 128
        %1662 = vxpose.xlu0.b32.cont [9/16] 0.0, 128
        %1663 = vxpose.xlu0.b32.cont [10/16] 0.0, 128
        %1664 = vxpose.xlu0.b32.cont [11/16] 0.0, 128
        %1665 = vxpose.xlu0.b32.cont [12/16] 0.0, 128
        %1666 = vxpose.xlu0.b32.cont [13/16] 0.0, 128
        %1667 = vxpose.xlu0.b32.cont [14/16] 0.0, 128
        %1668 = vxpose.xlu0.b32.cont [15/16] 0.0, 128
        %1669 = vxpose.xlu0.b32.end [16/16] 0.0, 128
        %v1670 = vpop.trf.xlu0
        %v1671 = vpop.trf.xlu0
        %v1672 = vpop.trf.xlu0
        %v1673 = vpop.trf.xlu0
        %v1674 = vpop.trf.xlu0
        %v1675 = vpop.trf.xlu0
        %v1676 = vpop.trf.xlu0
        %v1677 = vpop.trf.xlu0
        %v1678 = vpop.trf.xlu0
        %v1679 = vpop.trf.xlu0
        %v1680 = vpop.trf.xlu0
        %v1681 = vpop.trf.xlu0
        %v1682 = vpop.trf.xlu0
        %v1683 = vpop.trf.xlu0
        %v1684 = vpop.trf.xlu0
        %v1685 = vpop.trf.xlu0
        %v1686 = vld [vmem:[%s4] sm:$0xff]
        %v1687 = vld [vmem:[%s4 + $0x8] sm:$0xff]
        %v1688 = vld [vmem:[%s4 + $0x10] sm:$0xff]
        %v1689 = vld [vmem:[%s4 + $0x18] sm:$0xff]
        %v1690 = vld [vmem:[%s4 + $0x20] sm:$0xff]
        %v1691 = vld [vmem:[%s4 + $0x28] sm:$0xff]
        %v1692 = vld [vmem:[%s4 + $0x30] sm:$0xff]
        %v1693 = vld [vmem:[%s4 + $0x38] sm:$0xff]
        %v1694 = vld [vmem:[%s5] sm:$0x1]
        %v1696 = vperm.slane %v1694, 0
        %vm1698 = vcmask 523264
        %v1700 = vsel %vm1698, %v1638, 0
        %v1703 = vsel %vm1698, %v1639, 0
        %v1706 = vsel %vm1698, %v1640, 0
        %v1709 = vsel %vm1698, %v1641, 0
        %v1712 = vsel %vm1698, %v1642, 0
        %v1715 = vsel %vm1698, %v1643, 0
        %v1718 = vsel %vm1698, %v1644, 0
        %v1721 = vsel %vm1698, %v1645, 0
        %v1724 = vsel %vm1698, %v1646, 0
        %v1727 = vsel %vm1698, %v1647, 0
        %v1730 = vsel %vm1698, %v1648, 0
        %v1733 = vsel %vm1698, %v1649, 0
        %v1736 = vsel %vm1698, %v1650, 0
        %v1739 = vsel %vm1698, %v1651, 0
        %v1742 = vsel %vm1698, %v1652, 0
        %v1745 = vsel %vm1698, %v1653, 0
        %v1748 = vsel %vm1698, %v1670, 0
        %v1751 = vsel %vm1698, %v1671, 0
        %v1754 = vsel %vm1698, %v1672, 0
        %v1757 = vsel %vm1698, %v1673, 0
        %v1760 = vsel %vm1698, %v1674, 0
        %v1763 = vsel %vm1698, %v1675, 0
        %v1766 = vsel %vm1698, %v1676, 0
        %v1769 = vsel %vm1698, %v1677, 0
        %v1772 = vsel %vm1698, %v1678, 0
        %v1775 = vsel %vm1698, %v1679, 0
        %v1778 = vsel %vm1698, %v1680, 0
        %v1781 = vsel %vm1698, %v1681, 0
        %v1784 = vsel %vm1698, %v1682, 0
        %v1787 = vsel %vm1698, %v1683, 0
        %v1790 = vsel %vm1698, %v1684, 0
        %v1793 = vsel %vm1698, %v1685, 0
        %v1796 = vsel %vm1698, %v1686, 0
        %v1799 = vsel %vm1698, %v1687, 0
        %v1802 = vsel %vm1698, %v1688, 0
        %v1805 = vsel %vm1698, %v1689, 0
        %v1808 = vsel %vm1698, %v1690, 0
        %v1811 = vsel %vm1698, %v1691, 0
        %v1814 = vsel %vm1698, %v1692, 0
        %v1817 = vsel %vm1698, %v1693, 0
        %1819 = vmatpush.xpose.msra.mxu0 0.0
        %1820 = vmatpush.xpose.msra.mxu0 0.0
        %1821 = vmatpush.xpose.msra.mxu0 0.0
        %1822 = vmatpush.xpose.msra.mxu0 0.0
        %1823 = vmatpush.xpose.msra.mxu0 0.0
        %1824 = vmatpush.xpose.msra.mxu0 0.0
        %1825 = vmatpush.xpose.msra.mxu0 0.0
        %1826 = vmatpush.xpose.msra.mxu0 0.0
        %1827 = vmatpush.xpose.msra.mxu0 %v1817
        %1828 = vmatpush.xpose.msra.mxu0 %v1814
        %1829 = vmatpush.xpose.msra.mxu0 %v1811
        %1830 = vmatpush.xpose.msra.mxu0 %v1808
        %1831 = vmatpush.xpose.msra.mxu0 %v1805
        %1832 = vmatpush.xpose.msra.mxu0 %v1802
        %1833 = vmatpush.xpose.msra.mxu0 %v1799
        %1834 = vmatpush.xpose.msra.mxu0 %v1796
        %1835 = vmatmul.f32.gmra.mxu0 %v1700
        %v1836 = vpop.f32.mrf.mxu0
        %v1837 = vadd.f32 %v1696, %v1836
        %1838 = vmatmul.f32.gmra.mxu0 %v1703
        %v1839 = vpop.f32.mrf.mxu0
        %v1840 = vadd.f32 %v1696, %v1839
        %1841 = vmatmul.f32.gmra.mxu0 %v1706
        %v1842 = vpop.f32.mrf.mxu0
        %v1843 = vadd.f32 %v1696, %v1842
        %1844 = vmatmul.f32.gmra.mxu0 %v1709
        %v1845 = vpop.f32.mrf.mxu0
        %v1846 = vadd.f32 %v1696, %v1845
        %1847 = vmatmul.f32.gmra.mxu0 %v1712
        %v1848 = vpop.f32.mrf.mxu0
        %v1849 = vadd.f32 %v1696, %v1848
        %1850 = vmatmul.f32.gmra.mxu0 %v1715
        %v1851 = vpop.f32.mrf.mxu0
        %v1852 = vadd.f32 %v1696, %v1851
        %1853 = vmatmul.f32.gmra.mxu0 %v1718
        %v1854 = vpop.f32.mrf.mxu0
        %v1855 = vadd.f32 %v1696, %v1854
        %1856 = vmatmul.f32.gmra.mxu0 %v1721
        %v1857 = vpop.f32.mrf.mxu0
        %v1858 = vadd.f32 %v1696, %v1857
        %1859 = vmatmul.f32.gmra.mxu0 %v1724
        %v1860 = vpop.f32.mrf.mxu0
        %v1861 = vadd.f32 %v1696, %v1860
        %1862 = vmatmul.f32.gmra.mxu0 %v1727
        %v1863 = vpop.f32.mrf.mxu0
        %v1864 = vadd.f32 %v1696, %v1863
        %1865 = vmatmul.f32.gmra.mxu0 %v1730
        %v1866 = vpop.f32.mrf.mxu0
        %v1867 = vadd.f32 %v1696, %v1866
        %1868 = vmatmul.f32.gmra.mxu0 %v1733
        %v1869 = vpop.f32.mrf.mxu0
        %v1870 = vadd.f32 %v1696, %v1869
        %1871 = vmatmul.f32.gmra.mxu0 %v1736
        %v1872 = vpop.f32.mrf.mxu0
        %v1873 = vadd.f32 %v1696, %v1872
        %1874 = vmatmul.f32.gmra.mxu0 %v1739
        %v1875 = vpop.f32.mrf.mxu0
        %v1876 = vadd.f32 %v1696, %v1875
        %1877 = vmatmul.f32.gmra.mxu0 %v1742
        %v1878 = vpop.f32.mrf.mxu0
        %v1879 = vadd.f32 %v1696, %v1878
        %1880 = vmatmul.f32.gmra.mxu0 %v1745
        %v1881 = vpop.f32.mrf.mxu0
        %v1882 = vadd.f32 %v1696, %v1881
        %1883 = vmatmul.f32.gmra.mxu0 %v1748
        %v1884 = vpop.f32.mrf.mxu0
        %v1885 = vadd.f32 %v1696, %v1884
        %1886 = vmatmul.f32.gmra.mxu0 %v1751
        %v1887 = vpop.f32.mrf.mxu0
        %v1888 = vadd.f32 %v1696, %v1887
        %1889 = vmatmul.f32.gmra.mxu0 %v1754
        %v1890 = vpop.f32.mrf.mxu0
        %v1891 = vadd.f32 %v1696, %v1890
        %1892 = vmatmul.f32.gmra.mxu0 %v1757
        %v1893 = vpop.f32.mrf.mxu0
        %v1894 = vadd.f32 %v1696, %v1893
        %1895 = vmatmul.f32.gmra.mxu0 %v1760
        %v1896 = vpop.f32.mrf.mxu0
        %v1897 = vadd.f32 %v1696, %v1896
        %1898 = vmatmul.f32.gmra.mxu0 %v1763
        %v1899 = vpop.f32.mrf.mxu0
        %v1900 = vadd.f32 %v1696, %v1899
        %1901 = vmatmul.f32.gmra.mxu0 %v1766
        %v1902 = vpop.f32.mrf.mxu0
        %v1903 = vadd.f32 %v1696, %v1902
        %1904 = vmatmul.f32.gmra.mxu0 %v1769
        %v1905 = vpop.f32.mrf.mxu0
        %v1906 = vadd.f32 %v1696, %v1905
        %1907 = vmatmul.f32.gmra.mxu0 %v1772
        %v1908 = vpop.f32.mrf.mxu0
        %v1909 = vadd.f32 %v1696, %v1908
        %1910 = vmatmul.f32.gmra.mxu0 %v1775
        %v1911 = vpop.f32.mrf.mxu0
        %v1912 = vadd.f32 %v1696, %v1911
        %1913 = vmatmul.f32.gmra.mxu0 %v1778
        %v1914 = vpop.f32.mrf.mxu0
        %v1915 = vadd.f32 %v1696, %v1914
        %1916 = vmatmul.f32.gmra.mxu0 %v1781
        %v1917 = vpop.f32.mrf.mxu0
        %v1918 = vadd.f32 %v1696, %v1917
        %1919 = vmatmul.f32.gmra.mxu0 %v1784
        %v1920 = vpop.f32.mrf.mxu0
        %v1921 = vadd.f32 %v1696, %v1920
        %1922 = vmatmul.f32.gmra.mxu0 %v1787
        %v1923 = vpop.f32.mrf.mxu0
        %v1924 = vadd.f32 %v1696, %v1923
        %1925 = vmatmul.f32.gmra.mxu0 %v1790
        %v1926 = vpop.f32.mrf.mxu0
        %v1927 = vadd.f32 %v1696, %v1926
        %1928 = vmatmul.f32.gmra.mxu0 %v1793
        %v1929 = vpop.f32.mrf.mxu0
        %v1930 = vadd.f32 %v1696, %v1929
        %1931 = vdwg.mxu0
        %v1932 = vld [vmem:[#allocation4] sm:$0xff]
        %v1933 = vld [vmem:[#allocation4 + $0x8] sm:$0xff]
        %v1934 = vld [vmem:[#allocation4 + $0x10] sm:$0xff]
        %v1935 = vld [vmem:[#allocation4 + $0x18] sm:$0xff]
        %v1936 = vld [vmem:[#allocation4 + $0x20] sm:$0xff]
        %v1937 = vld [vmem:[#allocation4 + $0x28] sm:$0xff]
        %v1938 = vld [vmem:[#allocation4 + $0x30] sm:$0xff]
        %v1939 = vld [vmem:[#allocation4 + $0x38] sm:$0xff]
        %v1940 = vld [vmem:[#allocation4 + $0x40] sm:$0xff]
        %v1941 = vld [vmem:[#allocation4 + $0x48] sm:$0xff]
        %v1942 = vld [vmem:[#allocation4 + $0x50] sm:$0xff]
        %v1943 = vld [vmem:[#allocation4 + $0x58] sm:$0xff]
        %v1944 = vld [vmem:[#allocation4 + $0x60] sm:$0xff]
        %v1945 = vld [vmem:[#allocation4 + $0x68] sm:$0xff]
        %v1946 = vld [vmem:[#allocation4 + $0x70] sm:$0xff]
        %v1947 = vld [vmem:[#allocation4 + $0x78] sm:$0xff]
        %v1949 = vsel %vm1698, %v1837, 0
        %v1952 = vsel %vm1698, %v1840, 0
        %v1955 = vsel %vm1698, %v1843, 0
        %v1958 = vsel %vm1698, %v1846, 0
        %v1961 = vsel %vm1698, %v1849, 0
        %v1964 = vsel %vm1698, %v1852, 0
        %v1967 = vsel %vm1698, %v1855, 0
        %v1970 = vsel %vm1698, %v1858, 0
        %v1973 = vsel %vm1698, %v1861, 0
        %v1976 = vsel %vm1698, %v1864, 0
        %v1979 = vsel %vm1698, %v1867, 0
        %v1982 = vsel %vm1698, %v1870, 0
        %v1985 = vsel %vm1698, %v1873, 0
        %v1988 = vsel %vm1698, %v1876, 0
        %v1991 = vsel %vm1698, %v1879, 0
        %v1994 = vsel %vm1698, %v1882, 0
        %v1997 = vsel %vm1698, %v1885, 0
        %v2000 = vsel %vm1698, %v1888, 0
        %v2003 = vsel %vm1698, %v1891, 0
        %v2006 = vsel %vm1698, %v1894, 0
        %v2009 = vsel %vm1698, %v1897, 0
        %v2012 = vsel %vm1698, %v1900, 0
        %v2015 = vsel %vm1698, %v1903, 0
        %v2018 = vsel %vm1698, %v1906, 0
        %v2021 = vsel %vm1698, %v1909, 0
        %v2024 = vsel %vm1698, %v1912, 0
        %v2027 = vsel %vm1698, %v1915, 0
        %v2030 = vsel %vm1698, %v1918, 0
        %v2033 = vsel %vm1698, %v1921, 0
        %v2036 = vsel %vm1698, %v1924, 0
        %v2039 = vsel %vm1698, %v1927, 0
        %v2042 = vsel %vm1698, %v1930, 0
        %2044 = vmatpush.msra.mxu0 0.0
        %2045 = vmatpush.msra.mxu0 0.0
        %2046 = vmatpush.msra.mxu0 0.0
        %2047 = vmatpush.msra.mxu0 0.0
        %2048 = vmatpush.msra.mxu0 0.0
        %2049 = vmatpush.msra.mxu0 0.0
        %2050 = vmatpush.msra.mxu0 0.0
        %2051 = vmatpush.msra.mxu0 0.0
        %2052 = vmatpush.msra.mxu0 %v1946
        %2053 = vmatpush.msra.mxu0 %v1944
        %2054 = vmatpush.msra.mxu0 %v1942
        %2055 = vmatpush.msra.mxu0 %v1940
        %2056 = vmatpush.msra.mxu0 %v1938
        %2057 = vmatpush.msra.mxu0 %v1936
        %2058 = vmatpush.msra.mxu0 %v1934
        %2059 = vmatpush.msra.mxu0 %v1932
        %2060 = vmatmul.f32.gmra.mxu0 %v1949
        %v2061 = vpop.f32.mrf.mxu0
        %v2062 = vadd.f32 0.0, %v2061
        %2063 = vmatmul.f32.gmra.mxu0 %v1952
        %v2064 = vpop.f32.mrf.mxu0
        %v2065 = vadd.f32 0.0, %v2064
        %2066 = vmatmul.f32.gmra.mxu0 %v1955
        %v2067 = vpop.f32.mrf.mxu0
        %v2068 = vadd.f32 0.0, %v2067
        %2069 = vmatmul.f32.gmra.mxu0 %v1958
        %v2070 = vpop.f32.mrf.mxu0
        %v2071 = vadd.f32 0.0, %v2070
        %2072 = vmatmul.f32.gmra.mxu0 %v1961
        %v2073 = vpop.f32.mrf.mxu0
        %v2074 = vadd.f32 0.0, %v2073
        %2075 = vmatmul.f32.gmra.mxu0 %v1964
        %v2076 = vpop.f32.mrf.mxu0
        %v2077 = vadd.f32 0.0, %v2076
        %2078 = vmatmul.f32.gmra.mxu0 %v1967
        %v2079 = vpop.f32.mrf.mxu0
        %v2080 = vadd.f32 0.0, %v2079
        %2081 = vmatmul.f32.gmra.mxu0 %v1970
        %v2082 = vpop.f32.mrf.mxu0
        %v2083 = vadd.f32 0.0, %v2082
        %2084 = vmatmul.f32.gmra.mxu0 %v1973
        %v2085 = vpop.f32.mrf.mxu0
        %v2086 = vadd.f32 0.0, %v2085
        %2087 = vmatmul.f32.gmra.mxu0 %v1976
        %v2088 = vpop.f32.mrf.mxu0
        %v2089 = vadd.f32 0.0, %v2088
        %2090 = vmatmul.f32.gmra.mxu0 %v1979
        %v2091 = vpop.f32.mrf.mxu0
        %v2092 = vadd.f32 0.0, %v2091
        %2093 = vmatmul.f32.gmra.mxu0 %v1982
        %v2094 = vpop.f32.mrf.mxu0
        %v2095 = vadd.f32 0.0, %v2094
        %2096 = vmatmul.f32.gmra.mxu0 %v1985
        %v2097 = vpop.f32.mrf.mxu0
        %v2098 = vadd.f32 0.0, %v2097
        %2099 = vmatmul.f32.gmra.mxu0 %v1988
        %v2100 = vpop.f32.mrf.mxu0
        %v2101 = vadd.f32 0.0, %v2100
        %2102 = vmatmul.f32.gmra.mxu0 %v1991
        %v2103 = vpop.f32.mrf.mxu0
        %v2104 = vadd.f32 0.0, %v2103
        %2105 = vmatmul.f32.gmra.mxu0 %v1994
        %v2106 = vpop.f32.mrf.mxu0
        %v2107 = vadd.f32 0.0, %v2106
        %2108 = vmatmul.f32.gmra.mxu0 %v1997
        %v2109 = vpop.f32.mrf.mxu0
        %v2110 = vadd.f32 0.0, %v2109
        %2111 = vmatmul.f32.gmra.mxu0 %v2000
        %v2112 = vpop.f32.mrf.mxu0
        %v2113 = vadd.f32 0.0, %v2112
        %2114 = vmatmul.f32.gmra.mxu0 %v2003
        %v2115 = vpop.f32.mrf.mxu0
        %v2116 = vadd.f32 0.0, %v2115
        %2117 = vmatmul.f32.gmra.mxu0 %v2006
        %v2118 = vpop.f32.mrf.mxu0
        %v2119 = vadd.f32 0.0, %v2118
        %2120 = vmatmul.f32.gmra.mxu0 %v2009
        %v2121 = vpop.f32.mrf.mxu0
        %v2122 = vadd.f32 0.0, %v2121
        %2123 = vmatmul.f32.gmra.mxu0 %v2012
        %v2124 = vpop.f32.mrf.mxu0
        %v2125 = vadd.f32 0.0, %v2124
        %2126 = vmatmul.f32.gmra.mxu0 %v2015
        %v2127 = vpop.f32.mrf.mxu0
        %v2128 = vadd.f32 0.0, %v2127
        %2129 = vmatmul.f32.gmra.mxu0 %v2018
        %v2130 = vpop.f32.mrf.mxu0
        %v2131 = vadd.f32 0.0, %v2130
        %2132 = vmatmul.f32.gmra.mxu0 %v2021
        %v2133 = vpop.f32.mrf.mxu0
        %v2134 = vadd.f32 0.0, %v2133
        %2135 = vmatmul.f32.gmra.mxu0 %v2024
        %v2136 = vpop.f32.mrf.mxu0
        %v2137 = vadd.f32 0.0, %v2136
        %2138 = vmatmul.f32.gmra.mxu0 %v2027
        %v2139 = vpop.f32.mrf.mxu0
        %v2140 = vadd.f32 0.0, %v2139
        %2141 = vmatmul.f32.gmra.mxu0 %v2030
        %v2142 = vpop.f32.mrf.mxu0
        %v2143 = vadd.f32 0.0, %v2142
        %2144 = vmatmul.f32.gmra.mxu0 %v2033
        %v2145 = vpop.f32.mrf.mxu0
        %v2146 = vadd.f32 0.0, %v2145
        %2147 = vmatmul.f32.gmra.mxu0 %v2036
        %v2148 = vpop.f32.mrf.mxu0
        %v2149 = vadd.f32 0.0, %v2148
        %2150 = vmatmul.f32.gmra.mxu0 %v2039
        %v2151 = vpop.f32.mrf.mxu0
        %v2152 = vadd.f32 0.0, %v2151
        %2153 = vmatmul.f32.gmra.mxu0 %v2042
        %v2154 = vpop.f32.mrf.mxu0
        %v2155 = vadd.f32 0.0, %v2154
        %2156 = vdwg.mxu0
        %2157 = vmatpush.msra.mxu0 0.0
        %2158 = vmatpush.msra.mxu0 0.0
        %2159 = vmatpush.msra.mxu0 0.0
        %2160 = vmatpush.msra.mxu0 0.0
        %2161 = vmatpush.msra.mxu0 0.0
        %2162 = vmatpush.msra.mxu0 0.0
        %2163 = vmatpush.msra.mxu0 0.0
        %2164 = vmatpush.msra.mxu0 0.0
        %2165 = vmatpush.msra.mxu0 %v1947
        %2166 = vmatpush.msra.mxu0 %v1945
        %2167 = vmatpush.msra.mxu0 %v1943
        %2168 = vmatpush.msra.mxu0 %v1941
        %2169 = vmatpush.msra.mxu0 %v1939
        %2170 = vmatpush.msra.mxu0 %v1937
        %2171 = vmatpush.msra.mxu0 %v1935
        %2172 = vmatpush.msra.mxu0 %v1933
        %2173 = vmatmul.f32.gmra.mxu0 %v1949
        %v2174 = vpop.f32.mrf.mxu0
        %v2175 = vadd.f32 0.0, %v2174
        %2176 = vmatmul.f32.gmra.mxu0 %v1952
        %v2177 = vpop.f32.mrf.mxu0
        %v2178 = vadd.f32 0.0, %v2177
        %2179 = vmatmul.f32.gmra.mxu0 %v1955
        %v2180 = vpop.f32.mrf.mxu0
        %v2181 = vadd.f32 0.0, %v2180
        %2182 = vmatmul.f32.gmra.mxu0 %v1958
        %v2183 = vpop.f32.mrf.mxu0
        %v2184 = vadd.f32 0.0, %v2183
        %2185 = vmatmul.f32.gmra.mxu0 %v1961
        %v2186 = vpop.f32.mrf.mxu0
        %v2187 = vadd.f32 0.0, %v2186
        %2188 = vmatmul.f32.gmra.mxu0 %v1964
        %v2189 = vpop.f32.mrf.mxu0
        %v2190 = vadd.f32 0.0, %v2189
        %2191 = vmatmul.f32.gmra.mxu0 %v1967
        %v2192 = vpop.f32.mrf.mxu0
        %v2193 = vadd.f32 0.0, %v2192
        %2194 = vmatmul.f32.gmra.mxu0 %v1970
        %v2195 = vpop.f32.mrf.mxu0
        %v2196 = vadd.f32 0.0, %v2195
        %2197 = vmatmul.f32.gmra.mxu0 %v1973
        %v2198 = vpop.f32.mrf.mxu0
        %v2199 = vadd.f32 0.0, %v2198
        %2200 = vmatmul.f32.gmra.mxu0 %v1976
        %v2201 = vpop.f32.mrf.mxu0
        %v2202 = vadd.f32 0.0, %v2201
        %2203 = vmatmul.f32.gmra.mxu0 %v1979
        %v2204 = vpop.f32.mrf.mxu0
        %v2205 = vadd.f32 0.0, %v2204
        %2206 = vmatmul.f32.gmra.mxu0 %v1982
        %v2207 = vpop.f32.mrf.mxu0
        %v2208 = vadd.f32 0.0, %v2207
        %2209 = vmatmul.f32.gmra.mxu0 %v1985
        %v2210 = vpop.f32.mrf.mxu0
        %v2211 = vadd.f32 0.0, %v2210
        %2212 = vmatmul.f32.gmra.mxu0 %v1988
        %v2213 = vpop.f32.mrf.mxu0
        %v2214 = vadd.f32 0.0, %v2213
        %2215 = vmatmul.f32.gmra.mxu0 %v1991
        %v2216 = vpop.f32.mrf.mxu0
        %v2217 = vadd.f32 0.0, %v2216
        %2218 = vmatmul.f32.gmra.mxu0 %v1994
        %v2219 = vpop.f32.mrf.mxu0
        %v2220 = vadd.f32 0.0, %v2219
        %2221 = vmatmul.f32.gmra.mxu0 %v1997
        %v2222 = vpop.f32.mrf.mxu0
        %v2223 = vadd.f32 0.0, %v2222
        %2224 = vmatmul.f32.gmra.mxu0 %v2000
        %v2225 = vpop.f32.mrf.mxu0
        %v2226 = vadd.f32 0.0, %v2225
        %2227 = vmatmul.f32.gmra.mxu0 %v2003
        %v2228 = vpop.f32.mrf.mxu0
        %v2229 = vadd.f32 0.0, %v2228
        %2230 = vmatmul.f32.gmra.mxu0 %v2006
        %v2231 = vpop.f32.mrf.mxu0
        %v2232 = vadd.f32 0.0, %v2231
        %2233 = vmatmul.f32.gmra.mxu0 %v2009
        %v2234 = vpop.f32.mrf.mxu0
        %v2235 = vadd.f32 0.0, %v2234
        %2236 = vmatmul.f32.gmra.mxu0 %v2012
        %v2237 = vpop.f32.mrf.mxu0
        %v2238 = vadd.f32 0.0, %v2237
        %2239 = vmatmul.f32.gmra.mxu0 %v2015
        %v2240 = vpop.f32.mrf.mxu0
        %v2241 = vadd.f32 0.0, %v2240
        %2242 = vmatmul.f32.gmra.mxu0 %v2018
        %v2243 = vpop.f32.mrf.mxu0
        %v2244 = vadd.f32 0.0, %v2243
        %2245 = vmatmul.f32.gmra.mxu0 %v2021
        %v2246 = vpop.f32.mrf.mxu0
        %v2247 = vadd.f32 0.0, %v2246
        %2248 = vmatmul.f32.gmra.mxu0 %v2024
        %v2249 = vpop.f32.mrf.mxu0
        %v2250 = vadd.f32 0.0, %v2249
        %2251 = vmatmul.f32.gmra.mxu0 %v2027
        %v2252 = vpop.f32.mrf.mxu0
        %v2253 = vadd.f32 0.0, %v2252
        %2254 = vmatmul.f32.gmra.mxu0 %v2030
        %v2255 = vpop.f32.mrf.mxu0
        %v2256 = vadd.f32 0.0, %v2255
        %2257 = vmatmul.f32.gmra.mxu0 %v2033
        %v2258 = vpop.f32.mrf.mxu0
        %v2259 = vadd.f32 0.0, %v2258
        %2260 = vmatmul.f32.gmra.mxu0 %v2036
        %v2261 = vpop.f32.mrf.mxu0
        %v2262 = vadd.f32 0.0, %v2261
        %2263 = vmatmul.f32.gmra.mxu0 %v2039
        %v2264 = vpop.f32.mrf.mxu0
        %v2265 = vadd.f32 0.0, %v2264
        %2266 = vmatmul.f32.gmra.mxu0 %v2042
        %v2267 = vpop.f32.mrf.mxu0
        %v2268 = vadd.f32 0.0, %v2267
        %2269 = vdwg.mxu0
        %v2270 = vmul.f32 %v2062, 0.125
        %v2271 = vmul.f32 %v2175, 0.125
        %v2272 = vmul.f32 %v2065, 0.125
        %v2273 = vmul.f32 %v2178, 0.125
        %v2274 = vmul.f32 %v2068, 0.125
        %v2275 = vmul.f32 %v2181, 0.125
        %v2276 = vmul.f32 %v2071, 0.125
        %v2277 = vmul.f32 %v2184, 0.125
        %v2278 = vmul.f32 %v2074, 0.125
        %v2279 = vmul.f32 %v2187, 0.125
        %v2280 = vmul.f32 %v2077, 0.125
        %v2281 = vmul.f32 %v2190, 0.125
        %v2282 = vmul.f32 %v2080, 0.125
        %v2283 = vmul.f32 %v2193, 0.125
        %v2284 = vmul.f32 %v2083, 0.125
        %v2285 = vmul.f32 %v2196, 0.125
        %v2286 = vmul.f32 %v2086, 0.125
        %v2287 = vmul.f32 %v2199, 0.125
        %v2288 = vmul.f32 %v2089, 0.125
        %v2289 = vmul.f32 %v2202, 0.125
        %v2290 = vmul.f32 %v2092, 0.125
        %v2291 = vmul.f32 %v2205, 0.125
        %v2292 = vmul.f32 %v2095, 0.125
        %v2293 = vmul.f32 %v2208, 0.125
        %v2294 = vmul.f32 %v2098, 0.125
        %v2295 = vmul.f32 %v2211, 0.125
        %v2296 = vmul.f32 %v2101, 0.125
        %v2297 = vmul.f32 %v2214, 0.125
        %v2298 = vmul.f32 %v2104, 0.125
        %v2299 = vmul.f32 %v2217, 0.125
        %v2300 = vmul.f32 %v2107, 0.125
        %v2301 = vmul.f32 %v2220, 0.125
        %v2302 = vmul.f32 %v2110, 0.125
        %v2303 = vmul.f32 %v2223, 0.125
        %v2304 = vmul.f32 %v2113, 0.125
        %v2305 = vmul.f32 %v2226, 0.125
        %v2306 = vmul.f32 %v2116, 0.125
        %v2307 = vmul.f32 %v2229, 0.125
        %v2308 = vmul.f32 %v2119, 0.125
        %v2309 = vmul.f32 %v2232, 0.125
        %v2310 = vmul.f32 %v2122, 0.125
        %v2311 = vmul.f32 %v2235, 0.125
        %v2312 = vmul.f32 %v2125, 0.125
        %v2313 = vmul.f32 %v2238, 0.125
        %v2314 = vmul.f32 %v2128, 0.125
        %v2315 = vmul.f32 %v2241, 0.125
        %v2316 = vmul.f32 %v2131, 0.125
        %v2317 = vmul.f32 %v2244, 0.125
        %v2318 = vmul.f32 %v2134, 0.125
        %v2319 = vmul.f32 %v2247, 0.125
        %v2320 = vmul.f32 %v2137, 0.125
        %v2321 = vmul.f32 %v2250, 0.125
        %v2322 = vmul.f32 %v2140, 0.125
        %v2323 = vmul.f32 %v2253, 0.125
        %v2324 = vmul.f32 %v2143, 0.125
        %v2325 = vmul.f32 %v2256, 0.125
        %v2326 = vmul.f32 %v2146, 0.125
        %v2327 = vmul.f32 %v2259, 0.125
        %v2328 = vmul.f32 %v2149, 0.125
        %v2329 = vmul.f32 %v2262, 0.125
        %v2330 = vmul.f32 %v2152, 0.125
        %v2331 = vmul.f32 %v2265, 0.125
        %v2332 = vmul.f32 %v2155, 0.125
        %v2333 = vmul.f32 %v2268, 0.125
        %v2334 = vmax.f32 %v2270, %v2271
        %2335 = vmax.xlane.f32.xlu0 %v2334
        %v2336 = vpop.xlane.xlu0 %2335
        %v2337 = vmax.f32 %v2272, %v2273
        %2338 = vmax.xlane.f32.xlu0 %v2337
        %v2339 = vpop.xlane.xlu0 %2338
        %v2340 = vmax.f32 %v2274, %v2275
        %2341 = vmax.xlane.f32.xlu0 %v2340
        %v2342 = vpop.xlane.xlu0 %2341
        %v2343 = vmax.f32 %v2276, %v2277
        %2344 = vmax.xlane.f32.xlu0 %v2343
        %v2345 = vpop.xlane.xlu0 %2344
        %v2346 = vmax.f32 %v2278, %v2279
        %2347 = vmax.xlane.f32.xlu0 %v2346
        %v2348 = vpop.xlane.xlu0 %2347
        %v2349 = vmax.f32 %v2280, %v2281
        %2350 = vmax.xlane.f32.xlu0 %v2349
        %v2351 = vpop.xlane.xlu0 %2350
        %v2352 = vmax.f32 %v2282, %v2283
        %2353 = vmax.xlane.f32.xlu0 %v2352
        %v2354 = vpop.xlane.xlu0 %2353
        %v2355 = vmax.f32 %v2284, %v2285
        %2356 = vmax.xlane.f32.xlu0 %v2355
        %v2357 = vpop.xlane.xlu0 %2356
        %v2358 = vmax.f32 %v2286, %v2287
        %2359 = vmax.xlane.f32.xlu0 %v2358
        %v2360 = vpop.xlane.xlu0 %2359
        %v2361 = vmax.f32 %v2288, %v2289
        %2362 = vmax.xlane.f32.xlu0 %v2361
        %v2363 = vpop.xlane.xlu0 %2362
        %v2364 = vmax.f32 %v2290, %v2291
        %2365 = vmax.xlane.f32.xlu0 %v2364
        %v2366 = vpop.xlane.xlu0 %2365
        %v2367 = vmax.f32 %v2292, %v2293
        %2368 = vmax.xlane.f32.xlu0 %v2367
        %v2369 = vpop.xlane.xlu0 %2368
        %v2370 = vmax.f32 %v2294, %v2295
        %2371 = vmax.xlane.f32.xlu0 %v2370
        %v2372 = vpop.xlane.xlu0 %2371
        %v2373 = vmax.f32 %v2296, %v2297
        %2374 = vmax.xlane.f32.xlu0 %v2373
        %v2375 = vpop.xlane.xlu0 %2374
        %v2376 = vmax.f32 %v2298, %v2299
        %2377 = vmax.xlane.f32.xlu0 %v2376
        %v2378 = vpop.xlane.xlu0 %2377
        %v2379 = vmax.f32 %v2300, %v2301
        %2380 = vmax.xlane.f32.xlu0 %v2379
        %v2381 = vpop.xlane.xlu0 %2380
        %v2382 = vmax.f32 %v2302, %v2303
        %2383 = vmax.xlane.f32.xlu0 %v2382
        %v2384 = vpop.xlane.xlu0 %2383
        %v2385 = vmax.f32 %v2304, %v2305
        %2386 = vmax.xlane.f32.xlu0 %v2385
        %v2387 = vpop.xlane.xlu0 %2386
        %v2388 = vmax.f32 %v2306, %v2307
        %2389 = vmax.xlane.f32.xlu0 %v2388
        %v2390 = vpop.xlane.xlu0 %2389
        %v2391 = vmax.f32 %v2308, %v2309
        %2392 = vmax.xlane.f32.xlu0 %v2391
        %v2393 = vpop.xlane.xlu0 %2392
        %v2394 = vmax.f32 %v2310, %v2311
        %2395 = vmax.xlane.f32.xlu0 %v2394
        %v2396 = vpop.xlane.xlu0 %2395
        %v2397 = vmax.f32 %v2312, %v2313
        %2398 = vmax.xlane.f32.xlu0 %v2397
        %v2399 = vpop.xlane.xlu0 %2398
        %v2400 = vmax.f32 %v2314, %v2315
        %2401 = vmax.xlane.f32.xlu0 %v2400
        %v2402 = vpop.xlane.xlu0 %2401
        %v2403 = vmax.f32 %v2316, %v2317
        %2404 = vmax.xlane.f32.xlu0 %v2403
        %v2405 = vpop.xlane.xlu0 %2404
        %v2406 = vmax.f32 %v2318, %v2319
        %2407 = vmax.xlane.f32.xlu0 %v2406
        %v2408 = vpop.xlane.xlu0 %2407
        %v2409 = vmax.f32 %v2320, %v2321
        %2410 = vmax.xlane.f32.xlu0 %v2409
        %v2411 = vpop.xlane.xlu0 %2410
        %v2412 = vmax.f32 %v2322, %v2323
        %2413 = vmax.xlane.f32.xlu0 %v2412
        %v2414 = vpop.xlane.xlu0 %2413
        %v2415 = vmax.f32 %v2324, %v2325
        %2416 = vmax.xlane.f32.xlu0 %v2415
        %v2417 = vpop.xlane.xlu0 %2416
        %v2418 = vmax.f32 %v2326, %v2327
        %2419 = vmax.xlane.f32.xlu0 %v2418
        %v2420 = vpop.xlane.xlu0 %2419
        %v2421 = vmax.f32 %v2328, %v2329
        %2422 = vmax.xlane.f32.xlu0 %v2421
        %v2423 = vpop.xlane.xlu0 %2422
        %v2424 = vmax.f32 %v2330, %v2331
        %2425 = vmax.xlane.f32.xlu0 %v2424
        %v2426 = vpop.xlane.xlu0 %2425
        %v2427 = vmax.f32 %v2332, %v2333
        %2428 = vmax.xlane.f32.xlu0 %v2427
        %v2429 = vpop.xlane.xlu0 %2428
        %v2430 = vsub.f32 %v2270, %v2336
        %v2431 = vsub.f32 %v2271, %v2336
        %v2432 = vsub.f32 %v2272, %v2339
        %v2433 = vsub.f32 %v2273, %v2339
        %v2434 = vsub.f32 %v2274, %v2342
        %v2435 = vsub.f32 %v2275, %v2342
        %v2436 = vsub.f32 %v2276, %v2345
        %v2437 = vsub.f32 %v2277, %v2345
        %v2438 = vsub.f32 %v2278, %v2348
        %v2439 = vsub.f32 %v2279, %v2348
        %v2440 = vsub.f32 %v2280, %v2351
        %v2441 = vsub.f32 %v2281, %v2351
        %v2442 = vsub.f32 %v2282, %v2354
        %v2443 = vsub.f32 %v2283, %v2354
        %v2444 = vsub.f32 %v2284, %v2357
        %v2445 = vsub.f32 %v2285, %v2357
        %v2446 = vsub.f32 %v2286, %v2360
        %v2447 = vsub.f32 %v2287, %v2360
        %v2448 = vsub.f32 %v2288, %v2363
        %v2449 = vsub.f32 %v2289, %v2363
        %v2450 = vsub.f32 %v2290, %v2366
        %v2451 = vsub.f32 %v2291, %v2366
        %v2452 = vsub.f32 %v2292, %v2369
        %v2453 = vsub.f32 %v2293, %v2369
        %v2454 = vsub.f32 %v2294, %v2372
        %v2455 = vsub.f32 %v2295, %v2372
        %v2456 = vsub.f32 %v2296, %v2375
        %v2457 = vsub.f32 %v2297, %v2375
        %v2458 = vsub.f32 %v2298, %v2378
        %v2459 = vsub.f32 %v2299, %v2378
        %v2460 = vsub.f32 %v2300, %v2381
        %v2461 = vsub.f32 %v2301, %v2381
        %v2462 = vsub.f32 %v2302, %v2384
        %v2463 = vsub.f32 %v2303, %v2384
        %v2464 = vsub.f32 %v2304, %v2387
        %v2465 = vsub.f32 %v2305, %v2387
        %v2466 = vsub.f32 %v2306, %v2390
        %v2467 = vsub.f32 %v2307, %v2390
        %v2468 = vsub.f32 %v2308, %v2393
        %v2469 = vsub.f32 %v2309, %v2393
        %v2470 = vsub.f32 %v2310, %v2396
        %v2471 = vsub.f32 %v2311, %v2396
        %v2472 = vsub.f32 %v2312, %v2399
        %v2473 = vsub.f32 %v2313, %v2399
        %v2474 = vsub.f32 %v2314, %v2402
        %v2475 = vsub.f32 %v2315, %v2402
        %v2476 = vsub.f32 %v2316, %v2405
        %v2477 = vsub.f32 %v2317, %v2405
        %v2478 = vsub.f32 %v2318, %v2408
        %v2479 = vsub.f32 %v2319, %v2408
        %v2480 = vsub.f32 %v2320, %v2411
        %v2481 = vsub.f32 %v2321, %v2411
        %v2482 = vsub.f32 %v2322, %v2414
        %v2483 = vsub.f32 %v2323, %v2414
        %v2484 = vsub.f32 %v2324, %v2417
        %v2485 = vsub.f32 %v2325, %v2417
        %v2486 = vsub.f32 %v2326, %v2420
        %v2487 = vsub.f32 %v2327, %v2420
        %v2488 = vsub.f32 %v2328, %v2423
        %v2489 = vsub.f32 %v2329, %v2423
        %v2490 = vsub.f32 %v2330, %v2426
        %v2491 = vsub.f32 %v2331, %v2426
        %v2492 = vsub.f32 %v2332, %v2429
        %v2493 = vsub.f32 %v2333, %v2429
        %v2494 = vmul.f32 %v2430, 1.442695
        %v2495 = vpow.pop %v2494
        %v2496 = vmul.f32 %v2431, 1.442695
        %v2497 = vpow.pop %v2496
        %v2498 = vmul.f32 %v2432, 1.442695
        %v2499 = vpow.pop %v2498
        %v2500 = vmul.f32 %v2433, 1.442695
        %v2501 = vpow.pop %v2500
        %v2502 = vmul.f32 %v2434, 1.442695
        %v2503 = vpow.pop %v2502
        %v2504 = vmul.f32 %v2435, 1.442695
        %v2505 = vpow.pop %v2504
        %v2506 = vmul.f32 %v2436, 1.442695
        %v2507 = vpow.pop %v2506
        %v2508 = vmul.f32 %v2437, 1.442695
        %v2509 = vpow.pop %v2508
        %v2510 = vmul.f32 %v2438, 1.442695
        %v2511 = vpow.pop %v2510
        %v2512 = vmul.f32 %v2439, 1.442695
        %v2513 = vpow.pop %v2512
        %v2514 = vmul.f32 %v2440, 1.442695
        %v2515 = vpow.pop %v2514
        %v2516 = vmul.f32 %v2441, 1.442695
        %v2517 = vpow.pop %v2516
        %v2518 = vmul.f32 %v2442, 1.442695
        %v2519 = vpow.pop %v2518
        %v2520 = vmul.f32 %v2443, 1.442695
        %v2521 = vpow.pop %v2520
        %v2522 = vmul.f32 %v2444, 1.442695
        %v2523 = vpow.pop %v2522
        %v2524 = vmul.f32 %v2445, 1.442695
        %v2525 = vpow.pop %v2524
        %v2526 = vmul.f32 %v2446, 1.442695
        %v2527 = vpow.pop %v2526
        %v2528 = vmul.f32 %v2447, 1.442695
        %v2529 = vpow.pop %v2528
        %v2530 = vmul.f32 %v2448, 1.442695
        %v2531 = vpow.pop %v2530
        %v2532 = vmul.f32 %v2449, 1.442695
        %v2533 = vpow.pop %v2532
        %v2534 = vmul.f32 %v2450, 1.442695
        %v2535 = vpow.pop %v2534
        %v2536 = vmul.f32 %v2451, 1.442695
        %v2537 = vpow.pop %v2536
        %v2538 = vmul.f32 %v2452, 1.442695
        %v2539 = vpow.pop %v2538
        %v2540 = vmul.f32 %v2453, 1.442695
        %v2541 = vpow.pop %v2540
        %v2542 = vmul.f32 %v2454, 1.442695
        %v2543 = vpow.pop %v2542
        %v2544 = vmul.f32 %v2455, 1.442695
        %v2545 = vpow.pop %v2544
        %v2546 = vmul.f32 %v2456, 1.442695
        %v2547 = vpow.pop %v2546
        %v2548 = vmul.f32 %v2457, 1.442695
        %v2549 = vpow.pop %v2548
        %v2550 = vmul.f32 %v2458, 1.442695
        %v2551 = vpow.pop %v2550
        %v2552 = vmul.f32 %v2459, 1.442695
        %v2553 = vpow.pop %v2552
        %v2554 = vmul.f32 %v2460, 1.442695
        %v2555 = vpow.pop %v2554
        %v2556 = vmul.f32 %v2461, 1.442695
        %v2557 = vpow.pop %v2556
        %v2558 = vmul.f32 %v2462, 1.442695
        %v2559 = vpow.pop %v2558
        %v2560 = vmul.f32 %v2463, 1.442695
        %v2561 = vpow.pop %v2560
        %v2562 = vmul.f32 %v2464, 1.442695
        %v2563 = vpow.pop %v2562
        %v2564 = vmul.f32 %v2465, 1.442695
        %v2565 = vpow.pop %v2564
        %v2566 = vmul.f32 %v2466, 1.442695
        %v2567 = vpow.pop %v2566
        %v2568 = vmul.f32 %v2467, 1.442695
        %v2569 = vpow.pop %v2568
        %v2570 = vmul.f32 %v2468, 1.442695
        %v2571 = vpow.pop %v2570
        %v2572 = vmul.f32 %v2469, 1.442695
        %v2573 = vpow.pop %v2572
        %v2574 = vmul.f32 %v2470, 1.442695
        %v2575 = vpow.pop %v2574
        %v2576 = vmul.f32 %v2471, 1.442695
        %v2577 = vpow.pop %v2576
        %v2578 = vmul.f32 %v2472, 1.442695
        %v2579 = vpow.pop %v2578
        %v2580 = vmul.f32 %v2473, 1.442695
        %v2581 = vpow.pop %v2580
        %v2582 = vmul.f32 %v2474, 1.442695
        %v2583 = vpow.pop %v2582
        %v2584 = vmul.f32 %v2475, 1.442695
        %v2585 = vpow.pop %v2584
        %v2586 = vmul.f32 %v2476, 1.442695
        %v2587 = vpow.pop %v2586
        %v2588 = vmul.f32 %v2477, 1.442695
        %v2589 = vpow.pop %v2588
        %v2590 = vmul.f32 %v2478, 1.442695
        %v2591 = vpow.pop %v2590
        %v2592 = vmul.f32 %v2479, 1.442695
        %v2593 = vpow.pop %v2592
        %v2594 = vmul.f32 %v2480, 1.442695
        %v2595 = vpow.pop %v2594
        %v2596 = vmul.f32 %v2481, 1.442695
        %v2597 = vpow.pop %v2596
        %v2598 = vmul.f32 %v2482, 1.442695
        %v2599 = vpow.pop %v2598
        %v2600 = vmul.f32 %v2483, 1.442695
        %v2601 = vpow.pop %v2600
        %v2602 = vmul.f32 %v2484, 1.442695
        %v2603 = vpow.pop %v2602
        %v2604 = vmul.f32 %v2485, 1.442695
        %v2605 = vpow.pop %v2604
        %v2606 = vmul.f32 %v2486, 1.442695
        %v2607 = vpow.pop %v2606
        %v2608 = vmul.f32 %v2487, 1.442695
        %v2609 = vpow.pop %v2608
        %v2610 = vmul.f32 %v2488, 1.442695
        %v2611 = vpow.pop %v2610
        %v2612 = vmul.f32 %v2489, 1.442695
        %v2613 = vpow.pop %v2612
        %v2614 = vmul.f32 %v2490, 1.442695
        %v2615 = vpow.pop %v2614
        %v2616 = vmul.f32 %v2491, 1.442695
        %v2617 = vpow.pop %v2616
        %v2618 = vmul.f32 %v2492, 1.442695
        %v2619 = vpow.pop %v2618
        %v2620 = vmul.f32 %v2493, 1.442695
        %v2621 = vpow.pop %v2620
        %v2622 = vadd.f32 %v2495, %v2497
        %2623 = vadd.xlane.f32.xlu0 %v2622
        %v2624 = vpop.xlane.xlu0 %2623
        %v2625 = vadd.f32 %v2499, %v2501
        %2626 = vadd.xlane.f32.xlu0 %v2625
        %v2627 = vpop.xlane.xlu0 %2626
        %v2628 = vadd.f32 %v2503, %v2505
        %2629 = vadd.xlane.f32.xlu0 %v2628
        %v2630 = vpop.xlane.xlu0 %2629
        %v2631 = vadd.f32 %v2507, %v2509
        %2632 = vadd.xlane.f32.xlu0 %v2631
        %v2633 = vpop.xlane.xlu0 %2632
        %v2634 = vadd.f32 %v2511, %v2513
        %2635 = vadd.xlane.f32.xlu0 %v2634
        %v2636 = vpop.xlane.xlu0 %2635
        %v2637 = vadd.f32 %v2515, %v2517
        %2638 = vadd.xlane.f32.xlu0 %v2637
        %v2639 = vpop.xlane.xlu0 %2638
        %v2640 = vadd.f32 %v2519, %v2521
        %2641 = vadd.xlane.f32.xlu0 %v2640
        %v2642 = vpop.xlane.xlu0 %2641
        %v2643 = vadd.f32 %v2523, %v2525
        %2644 = vadd.xlane.f32.xlu0 %v2643
        %v2645 = vpop.xlane.xlu0 %2644
        %v2646 = vadd.f32 %v2527, %v2529
        %2647 = vadd.xlane.f32.xlu0 %v2646
        %v2648 = vpop.xlane.xlu0 %2647
        %v2649 = vadd.f32 %v2531, %v2533
        %2650 = vadd.xlane.f32.xlu0 %v2649
        %v2651 = vpop.xlane.xlu0 %2650
        %v2652 = vadd.f32 %v2535, %v2537
        %2653 = vadd.xlane.f32.xlu0 %v2652
        %v2654 = vpop.xlane.xlu0 %2653
        %v2655 = vadd.f32 %v2539, %v2541
        %2656 = vadd.xlane.f32.xlu0 %v2655
        %v2657 = vpop.xlane.xlu0 %2656
        %v2658 = vadd.f32 %v2543, %v2545
        %2659 = vadd.xlane.f32.xlu0 %v2658
        %v2660 = vpop.xlane.xlu0 %2659
        %v2661 = vadd.f32 %v2547, %v2549
        %2662 = vadd.xlane.f32.xlu0 %v2661
        %v2663 = vpop.xlane.xlu0 %2662
        %v2664 = vadd.f32 %v2551, %v2553
        %2665 = vadd.xlane.f32.xlu0 %v2664
        %v2666 = vpop.xlane.xlu0 %2665
        %v2667 = vadd.f32 %v2555, %v2557
        %2668 = vadd.xlane.f32.xlu0 %v2667
        %v2669 = vpop.xlane.xlu0 %2668
        %v2670 = vadd.f32 %v2559, %v2561
        %2671 = vadd.xlane.f32.xlu0 %v2670
        %v2672 = vpop.xlane.xlu0 %2671
        %v2673 = vadd.f32 %v2563, %v2565
        %2674 = vadd.xlane.f32.xlu0 %v2673
        %v2675 = vpop.xlane.xlu0 %2674
        %v2676 = vadd.f32 %v2567, %v2569
        %2677 = vadd.xlane.f32.xlu0 %v2676
        %v2678 = vpop.xlane.xlu0 %2677
        %v2679 = vadd.f32 %v2571, %v2573
        %2680 = vadd.xlane.f32.xlu0 %v2679
        %v2681 = vpop.xlane.xlu0 %2680
        %v2682 = vadd.f32 %v2575, %v2577
        %2683 = vadd.xlane.f32.xlu0 %v2682
        %v2684 = vpop.xlane.xlu0 %2683
        %v2685 = vadd.f32 %v2579, %v2581
        %2686 = vadd.xlane.f32.xlu0 %v2685
        %v2687 = vpop.xlane.xlu0 %2686
        %v2688 = vadd.f32 %v2583, %v2585
        %2689 = vadd.xlane.f32.xlu0 %v2688
        %v2690 = vpop.xlane.xlu0 %2689
        %v2691 = vadd.f32 %v2587, %v2589
        %2692 = vadd.xlane.f32.xlu0 %v2691
        %v2693 = vpop.xlane.xlu0 %2692
        %v2694 = vadd.f32 %v2591, %v2593
        %2695 = vadd.xlane.f32.xlu0 %v2694
        %v2696 = vpop.xlane.xlu0 %2695
        %v2697 = vadd.f32 %v2595, %v2597
        %2698 = vadd.xlane.f32.xlu0 %v2697
        %v2699 = vpop.xlane.xlu0 %2698
        %v2700 = vadd.f32 %v2599, %v2601
        %2701 = vadd.xlane.f32.xlu0 %v2700
        %v2702 = vpop.xlane.xlu0 %2701
        %v2703 = vadd.f32 %v2603, %v2605
        %2704 = vadd.xlane.f32.xlu0 %v2703
        %v2705 = vpop.xlane.xlu0 %2704
        %v2706 = vadd.f32 %v2607, %v2609
        %2707 = vadd.xlane.f32.xlu0 %v2706
        %v2708 = vpop.xlane.xlu0 %2707
        %v2709 = vadd.f32 %v2611, %v2613
        %2710 = vadd.xlane.f32.xlu0 %v2709
        %v2711 = vpop.xlane.xlu0 %2710
        %v2712 = vadd.f32 %v2615, %v2617
        %2713 = vadd.xlane.f32.xlu0 %v2712
        %v2714 = vpop.xlane.xlu0 %2713
        %v2715 = vadd.f32 %v2619, %v2621
        %2716 = vadd.xlane.f32.xlu0 %v2715
        %v2717 = vpop.xlane.xlu0 %2716
        %v2718 = vld [vmem:[#allocation5] sm:$0xff]
        %v2719 = vld [vmem:[#allocation5 + $0x8] sm:$0xff]
        %v2720 = vld [vmem:[#allocation5 + $0x10] sm:$0xff]
        %v2721 = vld [vmem:[#allocation5 + $0x18] sm:$0xff]
        %v2722 = vld [vmem:[#allocation5 + $0x20] sm:$0xff]
        %v2723 = vld [vmem:[#allocation5 + $0x28] sm:$0xff]
        %v2724 = vld [vmem:[#allocation5 + $0x30] sm:$0xff]
        %v2725 = vld [vmem:[#allocation5 + $0x38] sm:$0xff]
        %v2726 = vld [vmem:[#allocation5 + $0x40] sm:$0xff]
        %v2727 = vld [vmem:[#allocation5 + $0x48] sm:$0xff]
        %v2728 = vld [vmem:[#allocation5 + $0x50] sm:$0xff]
        %v2729 = vld [vmem:[#allocation5 + $0x58] sm:$0xff]
        %v2730 = vld [vmem:[#allocation5 + $0x60] sm:$0xff]
        %v2731 = vld [vmem:[#allocation5 + $0x68] sm:$0xff]
        %v2732 = vld [vmem:[#allocation5 + $0x70] sm:$0xff]
        %v2733 = vld [vmem:[#allocation5 + $0x78] sm:$0xff]
        %v2734 = vld [vmem:[#allocation5 + $0x80] sm:$0xff]
        %v2735 = vld [vmem:[#allocation5 + $0x88] sm:$0xff]
        %v2736 = vld [vmem:[#allocation5 + $0x90] sm:$0xff]
        %v2737 = vld [vmem:[#allocation5 + $0x98] sm:$0xff]
        %v2738 = vld [vmem:[#allocation5 + $0xa0] sm:$0xff]
        %v2739 = vld [vmem:[#allocation5 + $0xa8] sm:$0xff]
        %v2740 = vld [vmem:[#allocation5 + $0xb0] sm:$0xff]
        %v2741 = vld [vmem:[#allocation5 + $0xb8] sm:$0xff]
        %v2742 = vld [vmem:[#allocation5 + $0xc0] sm:$0xff]
        %v2743 = vld [vmem:[#allocation5 + $0xc8] sm:$0xff]
        %v2744 = vld [vmem:[#allocation5 + $0xd0] sm:$0xff]
        %v2745 = vld [vmem:[#allocation5 + $0xd8] sm:$0xff]
        %v2746 = vld [vmem:[#allocation5 + $0xe0] sm:$0xff]
        %v2747 = vld [vmem:[#allocation5 + $0xe8] sm:$0xff]
        %v2748 = vld [vmem:[#allocation5 + $0xf0] sm:$0xff]
        %v2749 = vld [vmem:[#allocation5 + $0xf8] sm:$0xff]
        %2750 = vmatpush.msra.mxu0 %v2733
        %2751 = vmatpush.msra.mxu0 %v2732
        %2752 = vmatpush.msra.mxu0 %v2731
        %2753 = vmatpush.msra.mxu0 %v2730
        %2754 = vmatpush.msra.mxu0 %v2729
        %2755 = vmatpush.msra.mxu0 %v2728
        %2756 = vmatpush.msra.mxu0 %v2727
        %2757 = vmatpush.msra.mxu0 %v2726
        %2758 = vmatpush.msra.mxu0 %v2725
        %2759 = vmatpush.msra.mxu0 %v2724
        %2760 = vmatpush.msra.mxu0 %v2723
        %2761 = vmatpush.msra.mxu0 %v2722
        %2762 = vmatpush.msra.mxu0 %v2721
        %2763 = vmatpush.msra.mxu0 %v2720
        %2764 = vmatpush.msra.mxu0 %v2719
        %2765 = vmatpush.msra.mxu0 %v2718
        %2766 = vmatmul.f32.gmra.mxu0 %v2495
        %v2767 = vpop.f32.mrf.mxu0
        %v2768 = vadd.f32 0.0, %v2767
        %2769 = vmatmul.f32.gmra.mxu0 %v2499
        %v2770 = vpop.f32.mrf.mxu0
        %v2771 = vadd.f32 0.0, %v2770
        %2772 = vmatmul.f32.gmra.mxu0 %v2503
        %v2773 = vpop.f32.mrf.mxu0
        %v2774 = vadd.f32 0.0, %v2773
        %2775 = vmatmul.f32.gmra.mxu0 %v2507
        %v2776 = vpop.f32.mrf.mxu0
        %v2777 = vadd.f32 0.0, %v2776
        %2778 = vmatmul.f32.gmra.mxu0 %v2511
        %v2779 = vpop.f32.mrf.mxu0
        %v2780 = vadd.f32 0.0, %v2779
        %2781 = vmatmul.f32.gmra.mxu0 %v2515
        %v2782 = vpop.f32.mrf.mxu0
        %v2783 = vadd.f32 0.0, %v2782
        %2784 = vmatmul.f32.gmra.mxu0 %v2519
        %v2785 = vpop.f32.mrf.mxu0
        %v2786 = vadd.f32 0.0, %v2785
        %2787 = vmatmul.f32.gmra.mxu0 %v2523
        %v2788 = vpop.f32.mrf.mxu0
        %v2789 = vadd.f32 0.0, %v2788
        %2790 = vmatmul.f32.gmra.mxu0 %v2527
        %v2791 = vpop.f32.mrf.mxu0
        %v2792 = vadd.f32 0.0, %v2791
        %2793 = vmatmul.f32.gmra.mxu0 %v2531
        %v2794 = vpop.f32.mrf.mxu0
        %v2795 = vadd.f32 0.0, %v2794
        %2796 = vmatmul.f32.gmra.mxu0 %v2535
        %v2797 = vpop.f32.mrf.mxu0
        %v2798 = vadd.f32 0.0, %v2797
        %2799 = vmatmul.f32.gmra.mxu0 %v2539
        %v2800 = vpop.f32.mrf.mxu0
        %v2801 = vadd.f32 0.0, %v2800
        %2802 = vmatmul.f32.gmra.mxu0 %v2543
        %v2803 = vpop.f32.mrf.mxu0
        %v2804 = vadd.f32 0.0, %v2803
        %2805 = vmatmul.f32.gmra.mxu0 %v2547
        %v2806 = vpop.f32.mrf.mxu0
        %v2807 = vadd.f32 0.0, %v2806
        %2808 = vmatmul.f32.gmra.mxu0 %v2551
        %v2809 = vpop.f32.mrf.mxu0
        %v2810 = vadd.f32 0.0, %v2809
        %2811 = vmatmul.f32.gmra.mxu0 %v2555
        %v2812 = vpop.f32.mrf.mxu0
        %v2813 = vadd.f32 0.0, %v2812
        %2814 = vmatmul.f32.gmra.mxu0 %v2559
        %v2815 = vpop.f32.mrf.mxu0
        %v2816 = vadd.f32 0.0, %v2815
        %2817 = vmatmul.f32.gmra.mxu0 %v2563
        %v2818 = vpop.f32.mrf.mxu0
        %v2819 = vadd.f32 0.0, %v2818
        %2820 = vmatmul.f32.gmra.mxu0 %v2567
        %v2821 = vpop.f32.mrf.mxu0
        %v2822 = vadd.f32 0.0, %v2821
        %2823 = vmatmul.f32.gmra.mxu0 %v2571
        %v2824 = vpop.f32.mrf.mxu0
        %v2825 = vadd.f32 0.0, %v2824
        %2826 = vmatmul.f32.gmra.mxu0 %v2575
        %v2827 = vpop.f32.mrf.mxu0
        %v2828 = vadd.f32 0.0, %v2827
        %2829 = vmatmul.f32.gmra.mxu0 %v2579
        %v2830 = vpop.f32.mrf.mxu0
        %v2831 = vadd.f32 0.0, %v2830
        %2832 = vmatmul.f32.gmra.mxu0 %v2583
        %v2833 = vpop.f32.mrf.mxu0
        %v2834 = vadd.f32 0.0, %v2833
        %2835 = vmatmul.f32.gmra.mxu0 %v2587
        %v2836 = vpop.f32.mrf.mxu0
        %v2837 = vadd.f32 0.0, %v2836
        %2838 = vmatmul.f32.gmra.mxu0 %v2591
        %v2839 = vpop.f32.mrf.mxu0
        %v2840 = vadd.f32 0.0, %v2839
        %2841 = vmatmul.f32.gmra.mxu0 %v2595
        %v2842 = vpop.f32.mrf.mxu0
        %v2843 = vadd.f32 0.0, %v2842
        %2844 = vmatmul.f32.gmra.mxu0 %v2599
        %v2845 = vpop.f32.mrf.mxu0
        %v2846 = vadd.f32 0.0, %v2845
        %2847 = vmatmul.f32.gmra.mxu0 %v2603
        %v2848 = vpop.f32.mrf.mxu0
        %v2849 = vadd.f32 0.0, %v2848
        %2850 = vmatmul.f32.gmra.mxu0 %v2607
        %v2851 = vpop.f32.mrf.mxu0
        %v2852 = vadd.f32 0.0, %v2851
        %2853 = vmatmul.f32.gmra.mxu0 %v2611
        %v2854 = vpop.f32.mrf.mxu0
        %v2855 = vadd.f32 0.0, %v2854
        %2856 = vmatmul.f32.gmra.mxu0 %v2615
        %v2857 = vpop.f32.mrf.mxu0
        %v2858 = vadd.f32 0.0, %v2857
        %2859 = vmatmul.f32.gmra.mxu0 %v2619
        %v2860 = vpop.f32.mrf.mxu0
        %v2861 = vadd.f32 0.0, %v2860
        %2862 = vdwg.mxu0
        %2863 = vmatpush.msra.mxu0 %v2749
        %2864 = vmatpush.msra.mxu0 %v2748
        %2865 = vmatpush.msra.mxu0 %v2747
        %2866 = vmatpush.msra.mxu0 %v2746
        %2867 = vmatpush.msra.mxu0 %v2745
        %2868 = vmatpush.msra.mxu0 %v2744
        %2869 = vmatpush.msra.mxu0 %v2743
        %2870 = vmatpush.msra.mxu0 %v2742
        %2871 = vmatpush.msra.mxu0 %v2741
        %2872 = vmatpush.msra.mxu0 %v2740
        %2873 = vmatpush.msra.mxu0 %v2739
        %2874 = vmatpush.msra.mxu0 %v2738
        %2875 = vmatpush.msra.mxu0 %v2737
        %2876 = vmatpush.msra.mxu0 %v2736
        %2877 = vmatpush.msra.mxu0 %v2735
        %2878 = vmatpush.msra.mxu0 %v2734
        %2879 = vmatmul.f32.gmra.mxu0 %v2497
        %v2880 = vpop.f32.mrf.mxu0
        %v2881 = vadd.f32 %v2768, %v2880
        %2882 = vmatmul.f32.gmra.mxu0 %v2501
        %v2883 = vpop.f32.mrf.mxu0
        %v2884 = vadd.f32 %v2771, %v2883
        %2885 = vmatmul.f32.gmra.mxu0 %v2505
        %v2886 = vpop.f32.mrf.mxu0
        %v2887 = vadd.f32 %v2774, %v2886
        %2888 = vmatmul.f32.gmra.mxu0 %v2509
        %v2889 = vpop.f32.mrf.mxu0
        %v2890 = vadd.f32 %v2777, %v2889
        %2891 = vmatmul.f32.gmra.mxu0 %v2513
        %v2892 = vpop.f32.mrf.mxu0
        %v2893 = vadd.f32 %v2780, %v2892
        %2894 = vmatmul.f32.gmra.mxu0 %v2517
        %v2895 = vpop.f32.mrf.mxu0
        %v2896 = vadd.f32 %v2783, %v2895
        %2897 = vmatmul.f32.gmra.mxu0 %v2521
        %v2898 = vpop.f32.mrf.mxu0
        %v2899 = vadd.f32 %v2786, %v2898
        %2900 = vmatmul.f32.gmra.mxu0 %v2525
        %v2901 = vpop.f32.mrf.mxu0
        %v2902 = vadd.f32 %v2789, %v2901
        %2903 = vmatmul.f32.gmra.mxu0 %v2529
        %v2904 = vpop.f32.mrf.mxu0
        %v2905 = vadd.f32 %v2792, %v2904
        %2906 = vmatmul.f32.gmra.mxu0 %v2533
        %v2907 = vpop.f32.mrf.mxu0
        %v2908 = vadd.f32 %v2795, %v2907
        %2909 = vmatmul.f32.gmra.mxu0 %v2537
        %v2910 = vpop.f32.mrf.mxu0
        %v2911 = vadd.f32 %v2798, %v2910
        %2912 = vmatmul.f32.gmra.mxu0 %v2541
        %v2913 = vpop.f32.mrf.mxu0
        %v2914 = vadd.f32 %v2801, %v2913
        %2915 = vmatmul.f32.gmra.mxu0 %v2545
        %v2916 = vpop.f32.mrf.mxu0
        %v2917 = vadd.f32 %v2804, %v2916
        %2918 = vmatmul.f32.gmra.mxu0 %v2549
        %v2919 = vpop.f32.mrf.mxu0
        %v2920 = vadd.f32 %v2807, %v2919
        %2921 = vmatmul.f32.gmra.mxu0 %v2553
        %v2922 = vpop.f32.mrf.mxu0
        %v2923 = vadd.f32 %v2810, %v2922
        %2924 = vmatmul.f32.gmra.mxu0 %v2557
        %v2925 = vpop.f32.mrf.mxu0
        %v2926 = vadd.f32 %v2813, %v2925
        %2927 = vmatmul.f32.gmra.mxu0 %v2561
        %v2928 = vpop.f32.mrf.mxu0
        %v2929 = vadd.f32 %v2816, %v2928
        %2930 = vmatmul.f32.gmra.mxu0 %v2565
        %v2931 = vpop.f32.mrf.mxu0
        %v2932 = vadd.f32 %v2819, %v2931
        %2933 = vmatmul.f32.gmra.mxu0 %v2569
        %v2934 = vpop.f32.mrf.mxu0
        %v2935 = vadd.f32 %v2822, %v2934
        %2936 = vmatmul.f32.gmra.mxu0 %v2573
        %v2937 = vpop.f32.mrf.mxu0
        %v2938 = vadd.f32 %v2825, %v2937
        %2939 = vmatmul.f32.gmra.mxu0 %v2577
        %v2940 = vpop.f32.mrf.mxu0
        %v2941 = vadd.f32 %v2828, %v2940
        %2942 = vmatmul.f32.gmra.mxu0 %v2581
        %v2943 = vpop.f32.mrf.mxu0
        %v2944 = vadd.f32 %v2831, %v2943
        %2945 = vmatmul.f32.gmra.mxu0 %v2585
        %v2946 = vpop.f32.mrf.mxu0
        %v2947 = vadd.f32 %v2834, %v2946
        %2948 = vmatmul.f32.gmra.mxu0 %v2589
        %v2949 = vpop.f32.mrf.mxu0
        %v2950 = vadd.f32 %v2837, %v2949
        %2951 = vmatmul.f32.gmra.mxu0 %v2593
        %v2952 = vpop.f32.mrf.mxu0
        %v2953 = vadd.f32 %v2840, %v2952
        %2954 = vmatmul.f32.gmra.mxu0 %v2597
        %v2955 = vpop.f32.mrf.mxu0
        %v2956 = vadd.f32 %v2843, %v2955
        %2957 = vmatmul.f32.gmra.mxu0 %v2601
        %v2958 = vpop.f32.mrf.mxu0
        %v2959 = vadd.f32 %v2846, %v2958
        %2960 = vmatmul.f32.gmra.mxu0 %v2605
        %v2961 = vpop.f32.mrf.mxu0
        %v2962 = vadd.f32 %v2849, %v2961
        %2963 = vmatmul.f32.gmra.mxu0 %v2609
        %v2964 = vpop.f32.mrf.mxu0
        %v2965 = vadd.f32 %v2852, %v2964
        %2966 = vmatmul.f32.gmra.mxu0 %v2613
        %v2967 = vpop.f32.mrf.mxu0
        %v2968 = vadd.f32 %v2855, %v2967
        %2969 = vmatmul.f32.gmra.mxu0 %v2617
        %v2970 = vpop.f32.mrf.mxu0
        %v2971 = vadd.f32 %v2858, %v2970
        %2972 = vmatmul.f32.gmra.mxu0 %v2621
        %v2973 = vpop.f32.mrf.mxu0
        %v2974 = vadd.f32 %v2861, %v2973
        %2975 = vdwg.mxu0
        %v2976 = vrcp.pop %v2624
        %v2977 = vmul.f32 %v2624, %v2976
        %v2978 = vsub.f32 1.0, %v2977
        %v2979 = vmul.f32 %v2976, %v2978
        %v2980 = vadd.f32 %v2976, %v2979
        %vm2981 = vweird.f32 %v2624
        %vm2982 = vweird.f32 %v2976
        %vm2983 = vmor %vm2981, %vm2982
        %v2984 = vsel %vm2983, %v2976, %v2980
        %v2985 = vand.u32 2147483647, %v2624
        %vm2986 = vcmp.eq.f32.partialorder %v2985, 8.507059e+37
        %v2987 = vand.u32 %v2624, 2147483648
        %v2988 = vor.u32 1.1754944e-38, %v2987
        %v2989 = vsel %vm2986, %v2988, %v2984
        %v2990 = vrcp.pop %v2627
        %v2991 = vmul.f32 %v2627, %v2990
        %v2992 = vsub.f32 1.0, %v2991
        %v2993 = vmul.f32 %v2990, %v2992
        %v2994 = vadd.f32 %v2990, %v2993
        %vm2995 = vweird.f32 %v2627
        %vm2996 = vweird.f32 %v2990
        %vm2997 = vmor %vm2995, %vm2996
        %v2998 = vsel %vm2997, %v2990, %v2994
        %v2999 = vand.u32 2147483647, %v2627
        %vm3000 = vcmp.eq.f32.partialorder %v2999, 8.507059e+37
        %v3001 = vand.u32 %v2627, 2147483648
        %v3002 = vor.u32 1.1754944e-38, %v3001
        %v3003 = vsel %vm3000, %v3002, %v2998
        %v3004 = vrcp.pop %v2630
        %v3005 = vmul.f32 %v2630, %v3004
        %v3006 = vsub.f32 1.0, %v3005
        %v3007 = vmul.f32 %v3004, %v3006
        %v3008 = vadd.f32 %v3004, %v3007
        %vm3009 = vweird.f32 %v2630
        %vm3010 = vweird.f32 %v3004
        %vm3011 = vmor %vm3009, %vm3010
        %v3012 = vsel %vm3011, %v3004, %v3008
        %v3013 = vand.u32 2147483647, %v2630
        %vm3014 = vcmp.eq.f32.partialorder %v3013, 8.507059e+37
        %v3015 = vand.u32 %v2630, 2147483648
        %v3016 = vor.u32 1.1754944e-38, %v3015
        %v3017 = vsel %vm3014, %v3016, %v3012
        %v3018 = vrcp.pop %v2633
        %v3019 = vmul.f32 %v2633, %v3018
        %v3020 = vsub.f32 1.0, %v3019
        %v3021 = vmul.f32 %v3018, %v3020
        %v3022 = vadd.f32 %v3018, %v3021
        %vm3023 = vweird.f32 %v2633
        %vm3024 = vweird.f32 %v3018
        %vm3025 = vmor %vm3023, %vm3024
        %v3026 = vsel %vm3025, %v3018, %v3022
        %v3027 = vand.u32 2147483647, %v2633
        %vm3028 = vcmp.eq.f32.partialorder %v3027, 8.507059e+37
        %v3029 = vand.u32 %v2633, 2147483648
        %v3030 = vor.u32 1.1754944e-38, %v3029
        %v3031 = vsel %vm3028, %v3030, %v3026
        %v3032 = vrcp.pop %v2636
        %v3033 = vmul.f32 %v2636, %v3032
        %v3034 = vsub.f32 1.0, %v3033
        %v3035 = vmul.f32 %v3032, %v3034
        %v3036 = vadd.f32 %v3032, %v3035
        %vm3037 = vweird.f32 %v2636
        %vm3038 = vweird.f32 %v3032
        %vm3039 = vmor %vm3037, %vm3038
        %v3040 = vsel %vm3039, %v3032, %v3036
        %v3041 = vand.u32 2147483647, %v2636
        %vm3042 = vcmp.eq.f32.partialorder %v3041, 8.507059e+37
        %v3043 = vand.u32 %v2636, 2147483648
        %v3044 = vor.u32 1.1754944e-38, %v3043
        %v3045 = vsel %vm3042, %v3044, %v3040
        %v3046 = vrcp.pop %v2639
        %v3047 = vmul.f32 %v2639, %v3046
        %v3048 = vsub.f32 1.0, %v3047
        %v3049 = vmul.f32 %v3046, %v3048
        %v3050 = vadd.f32 %v3046, %v3049
        %vm3051 = vweird.f32 %v2639
        %vm3052 = vweird.f32 %v3046
        %vm3053 = vmor %vm3051, %vm3052
        %v3054 = vsel %vm3053, %v3046, %v3050
        %v3055 = vand.u32 2147483647, %v2639
        %vm3056 = vcmp.eq.f32.partialorder %v3055, 8.507059e+37
        %v3057 = vand.u32 %v2639, 2147483648
        %v3058 = vor.u32 1.1754944e-38, %v3057
        %v3059 = vsel %vm3056, %v3058, %v3054
        %v3060 = vrcp.pop %v2642
        %v3061 = vmul.f32 %v2642, %v3060
        %v3062 = vsub.f32 1.0, %v3061
        %v3063 = vmul.f32 %v3060, %v3062
        %v3064 = vadd.f32 %v3060, %v3063
        %vm3065 = vweird.f32 %v2642
        %vm3066 = vweird.f32 %v3060
        %vm3067 = vmor %vm3065, %vm3066
        %v3068 = vsel %vm3067, %v3060, %v3064
        %v3069 = vand.u32 2147483647, %v2642
        %vm3070 = vcmp.eq.f32.partialorder %v3069, 8.507059e+37
        %v3071 = vand.u32 %v2642, 2147483648
        %v3072 = vor.u32 1.1754944e-38, %v3071
        %v3073 = vsel %vm3070, %v3072, %v3068
        %v3074 = vrcp.pop %v2645
        %v3075 = vmul.f32 %v2645, %v3074
        %v3076 = vsub.f32 1.0, %v3075
        %v3077 = vmul.f32 %v3074, %v3076
        %v3078 = vadd.f32 %v3074, %v3077
        %vm3079 = vweird.f32 %v2645
        %vm3080 = vweird.f32 %v3074
        %vm3081 = vmor %vm3079, %vm3080
        %v3082 = vsel %vm3081, %v3074, %v3078
        %v3083 = vand.u32 2147483647, %v2645
        %vm3084 = vcmp.eq.f32.partialorder %v3083, 8.507059e+37
        %v3085 = vand.u32 %v2645, 2147483648
        %v3086 = vor.u32 1.1754944e-38, %v3085
        %v3087 = vsel %vm3084, %v3086, %v3082
        %v3088 = vrcp.pop %v2648
        %v3089 = vmul.f32 %v2648, %v3088
        %v3090 = vsub.f32 1.0, %v3089
        %v3091 = vmul.f32 %v3088, %v3090
        %v3092 = vadd.f32 %v3088, %v3091
        %vm3093 = vweird.f32 %v2648
        %vm3094 = vweird.f32 %v3088
        %vm3095 = vmor %vm3093, %vm3094
        %v3096 = vsel %vm3095, %v3088, %v3092
        %v3097 = vand.u32 2147483647, %v2648
        %vm3098 = vcmp.eq.f32.partialorder %v3097, 8.507059e+37
        %v3099 = vand.u32 %v2648, 2147483648
        %v3100 = vor.u32 1.1754944e-38, %v3099
        %v3101 = vsel %vm3098, %v3100, %v3096
        %v3102 = vrcp.pop %v2651
        %v3103 = vmul.f32 %v2651, %v3102
        %v3104 = vsub.f32 1.0, %v3103
        %v3105 = vmul.f32 %v3102, %v3104
        %v3106 = vadd.f32 %v3102, %v3105
        %vm3107 = vweird.f32 %v2651
        %vm3108 = vweird.f32 %v3102
        %vm3109 = vmor %vm3107, %vm3108
        %v3110 = vsel %vm3109, %v3102, %v3106
        %v3111 = vand.u32 2147483647, %v2651
        %vm3112 = vcmp.eq.f32.partialorder %v3111, 8.507059e+37
        %v3113 = vand.u32 %v2651, 2147483648
        %v3114 = vor.u32 1.1754944e-38, %v3113
        %v3115 = vsel %vm3112, %v3114, %v3110
        %v3116 = vrcp.pop %v2654
        %v3117 = vmul.f32 %v2654, %v3116
        %v3118 = vsub.f32 1.0, %v3117
        %v3119 = vmul.f32 %v3116, %v3118
        %v3120 = vadd.f32 %v3116, %v3119
        %vm3121 = vweird.f32 %v2654
        %vm3122 = vweird.f32 %v3116
        %vm3123 = vmor %vm3121, %vm3122
        %v3124 = vsel %vm3123, %v3116, %v3120
        %v3125 = vand.u32 2147483647, %v2654
        %vm3126 = vcmp.eq.f32.partialorder %v3125, 8.507059e+37
        %v3127 = vand.u32 %v2654, 2147483648
        %v3128 = vor.u32 1.1754944e-38, %v3127
        %v3129 = vsel %vm3126, %v3128, %v3124
        %v3130 = vrcp.pop %v2657
        %v3131 = vmul.f32 %v2657, %v3130
        %v3132 = vsub.f32 1.0, %v3131
        %v3133 = vmul.f32 %v3130, %v3132
        %v3134 = vadd.f32 %v3130, %v3133
        %vm3135 = vweird.f32 %v2657
        %vm3136 = vweird.f32 %v3130
        %vm3137 = vmor %vm3135, %vm3136
        %v3138 = vsel %vm3137, %v3130, %v3134
        %v3139 = vand.u32 2147483647, %v2657
        %vm3140 = vcmp.eq.f32.partialorder %v3139, 8.507059e+37
        %v3141 = vand.u32 %v2657, 2147483648
        %v3142 = vor.u32 1.1754944e-38, %v3141
        %v3143 = vsel %vm3140, %v3142, %v3138
        %v3144 = vrcp.pop %v2660
        %v3145 = vmul.f32 %v2660, %v3144
        %v3146 = vsub.f32 1.0, %v3145
        %v3147 = vmul.f32 %v3144, %v3146
        %v3148 = vadd.f32 %v3144, %v3147
        %vm3149 = vweird.f32 %v2660
        %vm3150 = vweird.f32 %v3144
        %vm3151 = vmor %vm3149, %vm3150
        %v3152 = vsel %vm3151, %v3144, %v3148
        %v3153 = vand.u32 2147483647, %v2660
        %vm3154 = vcmp.eq.f32.partialorder %v3153, 8.507059e+37
        %v3155 = vand.u32 %v2660, 2147483648
        %v3156 = vor.u32 1.1754944e-38, %v3155
        %v3157 = vsel %vm3154, %v3156, %v3152
        %v3158 = vrcp.pop %v2663
        %v3159 = vmul.f32 %v2663, %v3158
        %v3160 = vsub.f32 1.0, %v3159
        %v3161 = vmul.f32 %v3158, %v3160
        %v3162 = vadd.f32 %v3158, %v3161
        %vm3163 = vweird.f32 %v2663
        %vm3164 = vweird.f32 %v3158
        %vm3165 = vmor %vm3163, %vm3164
        %v3166 = vsel %vm3165, %v3158, %v3162
        %v3167 = vand.u32 2147483647, %v2663
        %vm3168 = vcmp.eq.f32.partialorder %v3167, 8.507059e+37
        %v3169 = vand.u32 %v2663, 2147483648
        %v3170 = vor.u32 1.1754944e-38, %v3169
        %v3171 = vsel %vm3168, %v3170, %v3166
        %v3172 = vrcp.pop %v2666
        %v3173 = vmul.f32 %v2666, %v3172
        %v3174 = vsub.f32 1.0, %v3173
        %v3175 = vmul.f32 %v3172, %v3174
        %v3176 = vadd.f32 %v3172, %v3175
        %vm3177 = vweird.f32 %v2666
        %vm3178 = vweird.f32 %v3172
        %vm3179 = vmor %vm3177, %vm3178
        %v3180 = vsel %vm3179, %v3172, %v3176
        %v3181 = vand.u32 2147483647, %v2666
        %vm3182 = vcmp.eq.f32.partialorder %v3181, 8.507059e+37
        %v3183 = vand.u32 %v2666, 2147483648
        %v3184 = vor.u32 1.1754944e-38, %v3183
        %v3185 = vsel %vm3182, %v3184, %v3180
        %v3186 = vrcp.pop %v2669
        %v3187 = vmul.f32 %v2669, %v3186
        %v3188 = vsub.f32 1.0, %v3187
        %v3189 = vmul.f32 %v3186, %v3188
        %v3190 = vadd.f32 %v3186, %v3189
        %vm3191 = vweird.f32 %v2669
        %vm3192 = vweird.f32 %v3186
        %vm3193 = vmor %vm3191, %vm3192
        %v3194 = vsel %vm3193, %v3186, %v3190
        %v3195 = vand.u32 2147483647, %v2669
        %vm3196 = vcmp.eq.f32.partialorder %v3195, 8.507059e+37
        %v3197 = vand.u32 %v2669, 2147483648
        %v3198 = vor.u32 1.1754944e-38, %v3197
        %v3199 = vsel %vm3196, %v3198, %v3194
        %v3200 = vrcp.pop %v2672
        %v3201 = vmul.f32 %v2672, %v3200
        %v3202 = vsub.f32 1.0, %v3201
        %v3203 = vmul.f32 %v3200, %v3202
        %v3204 = vadd.f32 %v3200, %v3203
        %vm3205 = vweird.f32 %v2672
        %vm3206 = vweird.f32 %v3200
        %vm3207 = vmor %vm3205, %vm3206
        %v3208 = vsel %vm3207, %v3200, %v3204
        %v3209 = vand.u32 2147483647, %v2672
        %vm3210 = vcmp.eq.f32.partialorder %v3209, 8.507059e+37
        %v3211 = vand.u32 %v2672, 2147483648
        %v3212 = vor.u32 1.1754944e-38, %v3211
        %v3213 = vsel %vm3210, %v3212, %v3208
        %v3214 = vrcp.pop %v2675
        %v3215 = vmul.f32 %v2675, %v3214
        %v3216 = vsub.f32 1.0, %v3215
        %v3217 = vmul.f32 %v3214, %v3216
        %v3218 = vadd.f32 %v3214, %v3217
        %vm3219 = vweird.f32 %v2675
        %vm3220 = vweird.f32 %v3214
        %vm3221 = vmor %vm3219, %vm3220
        %v3222 = vsel %vm3221, %v3214, %v3218
        %v3223 = vand.u32 2147483647, %v2675
        %vm3224 = vcmp.eq.f32.partialorder %v3223, 8.507059e+37
        %v3225 = vand.u32 %v2675, 2147483648
        %v3226 = vor.u32 1.1754944e-38, %v3225
        %v3227 = vsel %vm3224, %v3226, %v3222
        %v3228 = vrcp.pop %v2678
        %v3229 = vmul.f32 %v2678, %v3228
        %v3230 = vsub.f32 1.0, %v3229
        %v3231 = vmul.f32 %v3228, %v3230
        %v3232 = vadd.f32 %v3228, %v3231
        %vm3233 = vweird.f32 %v2678
        %vm3234 = vweird.f32 %v3228
        %vm3235 = vmor %vm3233, %vm3234
        %v3236 = vsel %vm3235, %v3228, %v3232
        %v3237 = vand.u32 2147483647, %v2678
        %vm3238 = vcmp.eq.f32.partialorder %v3237, 8.507059e+37
        %v3239 = vand.u32 %v2678, 2147483648
        %v3240 = vor.u32 1.1754944e-38, %v3239
        %v3241 = vsel %vm3238, %v3240, %v3236
        %v3242 = vrcp.pop %v2681
        %v3243 = vmul.f32 %v2681, %v3242
        %v3244 = vsub.f32 1.0, %v3243
        %v3245 = vmul.f32 %v3242, %v3244
        %v3246 = vadd.f32 %v3242, %v3245
        %vm3247 = vweird.f32 %v2681
        %vm3248 = vweird.f32 %v3242
        %vm3249 = vmor %vm3247, %vm3248
        %v3250 = vsel %vm3249, %v3242, %v3246
        %v3251 = vand.u32 2147483647, %v2681
        %vm3252 = vcmp.eq.f32.partialorder %v3251, 8.507059e+37
        %v3253 = vand.u32 %v2681, 2147483648
        %v3254 = vor.u32 1.1754944e-38, %v3253
        %v3255 = vsel %vm3252, %v3254, %v3250
        %v3256 = vrcp.pop %v2684
        %v3257 = vmul.f32 %v2684, %v3256
        %v3258 = vsub.f32 1.0, %v3257
        %v3259 = vmul.f32 %v3256, %v3258
        %v3260 = vadd.f32 %v3256, %v3259
        %vm3261 = vweird.f32 %v2684
        %vm3262 = vweird.f32 %v3256
        %vm3263 = vmor %vm3261, %vm3262
        %v3264 = vsel %vm3263, %v3256, %v3260
        %v3265 = vand.u32 2147483647, %v2684
        %vm3266 = vcmp.eq.f32.partialorder %v3265, 8.507059e+37
        %v3267 = vand.u32 %v2684, 2147483648
        %v3268 = vor.u32 1.1754944e-38, %v3267
        %v3269 = vsel %vm3266, %v3268, %v3264
        %v3270 = vrcp.pop %v2687
        %v3271 = vmul.f32 %v2687, %v3270
        %v3272 = vsub.f32 1.0, %v3271
        %v3273 = vmul.f32 %v3270, %v3272
        %v3274 = vadd.f32 %v3270, %v3273
        %vm3275 = vweird.f32 %v2687
        %vm3276 = vweird.f32 %v3270
        %vm3277 = vmor %vm3275, %vm3276
        %v3278 = vsel %vm3277, %v3270, %v3274
        %v3279 = vand.u32 2147483647, %v2687
        %vm3280 = vcmp.eq.f32.partialorder %v3279, 8.507059e+37
        %v3281 = vand.u32 %v2687, 2147483648
        %v3282 = vor.u32 1.1754944e-38, %v3281
        %v3283 = vsel %vm3280, %v3282, %v3278
        %v3284 = vrcp.pop %v2690
        %v3285 = vmul.f32 %v2690, %v3284
        %v3286 = vsub.f32 1.0, %v3285
        %v3287 = vmul.f32 %v3284, %v3286
        %v3288 = vadd.f32 %v3284, %v3287
        %vm3289 = vweird.f32 %v2690
        %vm3290 = vweird.f32 %v3284
        %vm3291 = vmor %vm3289, %vm3290
        %v3292 = vsel %vm3291, %v3284, %v3288
        %v3293 = vand.u32 2147483647, %v2690
        %vm3294 = vcmp.eq.f32.partialorder %v3293, 8.507059e+37
        %v3295 = vand.u32 %v2690, 2147483648
        %v3296 = vor.u32 1.1754944e-38, %v3295
        %v3297 = vsel %vm3294, %v3296, %v3292
        %v3298 = vrcp.pop %v2693
        %v3299 = vmul.f32 %v2693, %v3298
        %v3300 = vsub.f32 1.0, %v3299
        %v3301 = vmul.f32 %v3298, %v3300
        %v3302 = vadd.f32 %v3298, %v3301
        %vm3303 = vweird.f32 %v2693
        %vm3304 = vweird.f32 %v3298
        %vm3305 = vmor %vm3303, %vm3304
        %v3306 = vsel %vm3305, %v3298, %v3302
        %v3307 = vand.u32 2147483647, %v2693
        %vm3308 = vcmp.eq.f32.partialorder %v3307, 8.507059e+37
        %v3309 = vand.u32 %v2693, 2147483648
        %v3310 = vor.u32 1.1754944e-38, %v3309
        %v3311 = vsel %vm3308, %v3310, %v3306
        %v3312 = vrcp.pop %v2696
        %v3313 = vmul.f32 %v2696, %v3312
        %v3314 = vsub.f32 1.0, %v3313
        %v3315 = vmul.f32 %v3312, %v3314
        %v3316 = vadd.f32 %v3312, %v3315
        %vm3317 = vweird.f32 %v2696
        %vm3318 = vweird.f32 %v3312
        %vm3319 = vmor %vm3317, %vm3318
        %v3320 = vsel %vm3319, %v3312, %v3316
        %v3321 = vand.u32 2147483647, %v2696
        %vm3322 = vcmp.eq.f32.partialorder %v3321, 8.507059e+37
        %v3323 = vand.u32 %v2696, 2147483648
        %v3324 = vor.u32 1.1754944e-38, %v3323
        %v3325 = vsel %vm3322, %v3324, %v3320
        %v3326 = vrcp.pop %v2699
        %v3327 = vmul.f32 %v2699, %v3326
        %v3328 = vsub.f32 1.0, %v3327
        %v3329 = vmul.f32 %v3326, %v3328
        %v3330 = vadd.f32 %v3326, %v3329
        %vm3331 = vweird.f32 %v2699
        %vm3332 = vweird.f32 %v3326
        %vm3333 = vmor %vm3331, %vm3332
        %v3334 = vsel %vm3333, %v3326, %v3330
        %v3335 = vand.u32 2147483647, %v2699
        %vm3336 = vcmp.eq.f32.partialorder %v3335, 8.507059e+37
        %v3337 = vand.u32 %v2699, 2147483648
        %v3338 = vor.u32 1.1754944e-38, %v3337
        %v3339 = vsel %vm3336, %v3338, %v3334
        %v3340 = vrcp.pop %v2702
        %v3341 = vmul.f32 %v2702, %v3340
        %v3342 = vsub.f32 1.0, %v3341
        %v3343 = vmul.f32 %v3340, %v3342
        %v3344 = vadd.f32 %v3340, %v3343
        %vm3345 = vweird.f32 %v2702
        %vm3346 = vweird.f32 %v3340
        %vm3347 = vmor %vm3345, %vm3346
        %v3348 = vsel %vm3347, %v3340, %v3344
        %v3349 = vand.u32 2147483647, %v2702
        %vm3350 = vcmp.eq.f32.partialorder %v3349, 8.507059e+37
        %v3351 = vand.u32 %v2702, 2147483648
        %v3352 = vor.u32 1.1754944e-38, %v3351
        %v3353 = vsel %vm3350, %v3352, %v3348
        %v3354 = vrcp.pop %v2705
        %v3355 = vmul.f32 %v2705, %v3354
        %v3356 = vsub.f32 1.0, %v3355
        %v3357 = vmul.f32 %v3354, %v3356
        %v3358 = vadd.f32 %v3354, %v3357
        %vm3359 = vweird.f32 %v2705
        %vm3360 = vweird.f32 %v3354
        %vm3361 = vmor %vm3359, %vm3360
        %v3362 = vsel %vm3361, %v3354, %v3358
        %v3363 = vand.u32 2147483647, %v2705
        %vm3364 = vcmp.eq.f32.partialorder %v3363, 8.507059e+37
        %v3365 = vand.u32 %v2705, 2147483648
        %v3366 = vor.u32 1.1754944e-38, %v3365
        %v3367 = vsel %vm3364, %v3366, %v3362
        %v3368 = vrcp.pop %v2708
        %v3369 = vmul.f32 %v2708, %v3368
        %v3370 = vsub.f32 1.0, %v3369
        %v3371 = vmul.f32 %v3368, %v3370
        %v3372 = vadd.f32 %v3368, %v3371
        %vm3373 = vweird.f32 %v2708
        %vm3374 = vweird.f32 %v3368
        %vm3375 = vmor %vm3373, %vm3374
        %v3376 = vsel %vm3375, %v3368, %v3372
        %v3377 = vand.u32 2147483647, %v2708
        %vm3378 = vcmp.eq.f32.partialorder %v3377, 8.507059e+37
        %v3379 = vand.u32 %v2708, 2147483648
        %v3380 = vor.u32 1.1754944e-38, %v3379
        %v3381 = vsel %vm3378, %v3380, %v3376
        %v3382 = vrcp.pop %v2711
        %v3383 = vmul.f32 %v2711, %v3382
        %v3384 = vsub.f32 1.0, %v3383
        %v3385 = vmul.f32 %v3382, %v3384
        %v3386 = vadd.f32 %v3382, %v3385
        %vm3387 = vweird.f32 %v2711
        %vm3388 = vweird.f32 %v3382
        %vm3389 = vmor %vm3387, %vm3388
        %v3390 = vsel %vm3389, %v3382, %v3386
        %v3391 = vand.u32 2147483647, %v2711
        %vm3392 = vcmp.eq.f32.partialorder %v3391, 8.507059e+37
        %v3393 = vand.u32 %v2711, 2147483648
        %v3394 = vor.u32 1.1754944e-38, %v3393
        %v3395 = vsel %vm3392, %v3394, %v3390
        %v3396 = vrcp.pop %v2714
        %v3397 = vmul.f32 %v2714, %v3396
        %v3398 = vsub.f32 1.0, %v3397
        %v3399 = vmul.f32 %v3396, %v3398
        %v3400 = vadd.f32 %v3396, %v3399
        %vm3401 = vweird.f32 %v2714
        %vm3402 = vweird.f32 %v3396
        %vm3403 = vmor %vm3401, %vm3402
        %v3404 = vsel %vm3403, %v3396, %v3400
        %v3405 = vand.u32 2147483647, %v2714
        %vm3406 = vcmp.eq.f32.partialorder %v3405, 8.507059e+37
        %v3407 = vand.u32 %v2714, 2147483648
        %v3408 = vor.u32 1.1754944e-38, %v3407
        %v3409 = vsel %vm3406, %v3408, %v3404
        %v3410 = vrcp.pop %v2717
        %v3411 = vmul.f32 %v2717, %v3410
        %v3412 = vsub.f32 1.0, %v3411
        %v3413 = vmul.f32 %v3410, %v3412
        %v3414 = vadd.f32 %v3410, %v3413
        %vm3415 = vweird.f32 %v2717
        %vm3416 = vweird.f32 %v3410
        %vm3417 = vmor %vm3415, %vm3416
        %v3418 = vsel %vm3417, %v3410, %v3414
        %v3419 = vand.u32 2147483647, %v2717
        %vm3420 = vcmp.eq.f32.partialorder %v3419, 8.507059e+37
        %v3421 = vand.u32 %v2717, 2147483648
        %v3422 = vor.u32 1.1754944e-38, %v3421
        %v3423 = vsel %vm3420, %v3422, %v3418
        %v3424 = vmul.f32 %v2881, %v2989
        %v3425 = vmul.f32 %v2884, %v3003
        %v3426 = vmul.f32 %v2887, %v3017
        %v3427 = vmul.f32 %v2890, %v3031
        %v3428 = vmul.f32 %v2893, %v3045
        %v3429 = vmul.f32 %v2896, %v3059
        %v3430 = vmul.f32 %v2899, %v3073
        %v3431 = vmul.f32 %v2902, %v3087
        %v3432 = vmul.f32 %v2905, %v3101
        %v3433 = vmul.f32 %v2908, %v3115
        %v3434 = vmul.f32 %v2911, %v3129
        %v3435 = vmul.f32 %v2914, %v3143
        %v3436 = vmul.f32 %v2917, %v3157
        %v3437 = vmul.f32 %v2920, %v3171
        %v3438 = vmul.f32 %v2923, %v3185
        %v3439 = vmul.f32 %v2926, %v3199
        %v3440 = vmul.f32 %v2929, %v3213
        %v3441 = vmul.f32 %v2932, %v3227
        %v3442 = vmul.f32 %v2935, %v3241
        %v3443 = vmul.f32 %v2938, %v3255
        %v3444 = vmul.f32 %v2941, %v3269
        %v3445 = vmul.f32 %v2944, %v3283
        %v3446 = vmul.f32 %v2947, %v3297
        %v3447 = vmul.f32 %v2950, %v3311
        %v3448 = vmul.f32 %v2953, %v3325
        %v3449 = vmul.f32 %v2956, %v3339
        %v3450 = vmul.f32 %v2959, %v3353
        %v3451 = vmul.f32 %v2962, %v3367
        %v3452 = vmul.f32 %v2965, %v3381
        %v3453 = vmul.f32 %v2968, %v3395
        %v3454 = vmul.f32 %v2971, %v3409
        %v3455 = vmul.f32 %v2974, %v3423
        %v3456 = vld [vmem:[#allocation9] sm:$0xff]
        %v3457 = vld [vmem:[#allocation9 + $0x8] sm:$0xff]
        %v3458 = vld [vmem:[#allocation9 + $0x10] sm:$0xff]
        %v3459 = vld [vmem:[#allocation9 + $0x18] sm:$0xff]
        %v3460 = vld [vmem:[#allocation9 + $0x20] sm:$0xff]
        %v3461 = vld [vmem:[#allocation9 + $0x28] sm:$0xff]
        %v3462 = vld [vmem:[#allocation9 + $0x30] sm:$0xff]
        %v3463 = vld [vmem:[#allocation9 + $0x38] sm:$0xff]
        %v3464 = vld [vmem:[%s11] sm:$0xff]
        %v3465 = vld [vmem:[%s11 + $0x8] sm:$0xff]
        %v3466 = vld [vmem:[%s11 + $0x10] sm:$0xff]
        %v3467 = vld [vmem:[%s11 + $0x18] sm:$0xff]
        %v3468 = vld [vmem:[%s11 + $0x20] sm:$0xff]
        %v3469 = vld [vmem:[%s11 + $0x28] sm:$0xff]
        %v3470 = vld [vmem:[%s11 + $0x30] sm:$0xff]
        %v3471 = vld [vmem:[%s11 + $0x38] sm:$0xff]
        %3473 = vset.pattern.permute.xlu0 0
        %3474 = vperm.xlu0 %3473, %v3464
        %v3475 = vpop.permute.xlu0 %3474
        %3478 = vset.pattern.permute.xlu0 0
        %3479 = vperm.xlu0 %3478, %v3465
        %v3480 = vpop.permute.xlu0 %3479
        %3483 = vset.pattern.permute.xlu0 0
        %3484 = vperm.xlu0 %3483, %v3466
        %v3485 = vpop.permute.xlu0 %3484
        %3488 = vset.pattern.permute.xlu0 0
        %3489 = vperm.xlu0 %3488, %v3467
        %v3490 = vpop.permute.xlu0 %3489
        %3493 = vset.pattern.permute.xlu0 0
        %3494 = vperm.xlu0 %3493, %v3468
        %v3495 = vpop.permute.xlu0 %3494
        %3498 = vset.pattern.permute.xlu0 0
        %3499 = vperm.xlu0 %3498, %v3469
        %v3500 = vpop.permute.xlu0 %3499
        %3503 = vset.pattern.permute.xlu0 0
        %3504 = vperm.xlu0 %3503, %v3470
        %v3505 = vpop.permute.xlu0 %3504
        %3508 = vset.pattern.permute.xlu0 0
        %3509 = vperm.xlu0 %3508, %v3471
        %v3510 = vpop.permute.xlu0 %3509
        %v3513 = vsel %vm1698, %v3456, 0
        %v3516 = vsel %vm1698, %v3457, 0
        %v3519 = vsel %vm1698, %v3458, 0
        %v3522 = vsel %vm1698, %v3459, 0
        %v3525 = vsel %vm1698, %v3460, 0
        %v3528 = vsel %vm1698, %v3461, 0
        %v3531 = vsel %vm1698, %v3462, 0
        %v3534 = vsel %vm1698, %v3463, 0
        %v3537 = vsel %vm1698, %v3424, 0
        %v3540 = vsel %vm1698, %v3425, 0
        %v3543 = vsel %vm1698, %v3426, 0
        %v3546 = vsel %vm1698, %v3427, 0
        %v3549 = vsel %vm1698, %v3428, 0
        %v3552 = vsel %vm1698, %v3429, 0
        %v3555 = vsel %vm1698, %v3430, 0
        %v3558 = vsel %vm1698, %v3431, 0
        %v3561 = vsel %vm1698, %v3432, 0
        %v3564 = vsel %vm1698, %v3433, 0
        %v3567 = vsel %vm1698, %v3434, 0
        %v3570 = vsel %vm1698, %v3435, 0
        %v3573 = vsel %vm1698, %v3436, 0
        %v3576 = vsel %vm1698, %v3437, 0
        %v3579 = vsel %vm1698, %v3438, 0
        %v3582 = vsel %vm1698, %v3439, 0
        %v3585 = vsel %vm1698, %v3440, 0
        %v3588 = vsel %vm1698, %v3441, 0
        %v3591 = vsel %vm1698, %v3442, 0
        %v3594 = vsel %vm1698, %v3443, 0
        %v3597 = vsel %vm1698, %v3444, 0
        %v3600 = vsel %vm1698, %v3445, 0
        %v3603 = vsel %vm1698, %v3446, 0
        %v3606 = vsel %vm1698, %v3447, 0
        %v3609 = vsel %vm1698, %v3448, 0
        %v3612 = vsel %vm1698, %v3449, 0
        %v3615 = vsel %vm1698, %v3450, 0
        %v3618 = vsel %vm1698, %v3451, 0
        %v3621 = vsel %vm1698, %v3452, 0
        %v3624 = vsel %vm1698, %v3453, 0
        %v3627 = vsel %vm1698, %v3454, 0
        %v3630 = vsel %vm1698, %v3455, 0
        %3632 = vmatpush.xpose.msra.mxu0 %v3582
        %3633 = vmatpush.xpose.msra.mxu0 %v3579
        %3634 = vmatpush.xpose.msra.mxu0 %v3576
        %3635 = vmatpush.xpose.msra.mxu0 %v3573
        %3636 = vmatpush.xpose.msra.mxu0 %v3570
        %3637 = vmatpush.xpose.msra.mxu0 %v3567
        %3638 = vmatpush.xpose.msra.mxu0 %v3564
        %3639 = vmatpush.xpose.msra.mxu0 %v3561
        %3640 = vmatpush.xpose.msra.mxu0 %v3558
        %3641 = vmatpush.xpose.msra.mxu0 %v3555
        %3642 = vmatpush.xpose.msra.mxu0 %v3552
        %3643 = vmatpush.xpose.msra.mxu0 %v3549
        %3644 = vmatpush.xpose.msra.mxu0 %v3546
        %3645 = vmatpush.xpose.msra.mxu0 %v3543
        %3646 = vmatpush.xpose.msra.mxu0 %v3540
        %3647 = vmatpush.xpose.msra.mxu0 %v3537
        %3648 = vmatmul.f32.gmra.mxu0 %v3513
        %v3649 = vpop.f32.mrf.mxu0
        %v3650 = vadd.f32 %v3475, %v3649
        %3651 = vmatmul.f32.gmra.mxu0 %v3516
        %v3652 = vpop.f32.mrf.mxu0
        %v3653 = vadd.f32 %v3480, %v3652
        %3654 = vmatmul.f32.gmra.mxu0 %v3519
        %v3655 = vpop.f32.mrf.mxu0
        %v3656 = vadd.f32 %v3485, %v3655
        %3657 = vmatmul.f32.gmra.mxu0 %v3522
        %v3658 = vpop.f32.mrf.mxu0
        %v3659 = vadd.f32 %v3490, %v3658
        %3660 = vmatmul.f32.gmra.mxu0 %v3525
        %v3661 = vpop.f32.mrf.mxu0
        %v3662 = vadd.f32 %v3495, %v3661
        %3663 = vmatmul.f32.gmra.mxu0 %v3528
        %v3664 = vpop.f32.mrf.mxu0
        %v3665 = vadd.f32 %v3500, %v3664
        %3666 = vmatmul.f32.gmra.mxu0 %v3531
        %v3667 = vpop.f32.mrf.mxu0
        %v3668 = vadd.f32 %v3505, %v3667
        %3669 = vmatmul.f32.gmra.mxu0 %v3534
        %v3670 = vpop.f32.mrf.mxu0
        %v3671 = vadd.f32 %v3510, %v3670
        %3672 = vdwg.mxu0
        %3673 = vmatpush.xpose.msra.mxu0 %v3630
        %3674 = vmatpush.xpose.msra.mxu0 %v3627
        %3675 = vmatpush.xpose.msra.mxu0 %v3624
        %3676 = vmatpush.xpose.msra.mxu0 %v3621
        %3677 = vmatpush.xpose.msra.mxu0 %v3618
        %3678 = vmatpush.xpose.msra.mxu0 %v3615
        %3679 = vmatpush.xpose.msra.mxu0 %v3612
        %3680 = vmatpush.xpose.msra.mxu0 %v3609
        %3681 = vmatpush.xpose.msra.mxu0 %v3606
        %3682 = vmatpush.xpose.msra.mxu0 %v3603
        %3683 = vmatpush.xpose.msra.mxu0 %v3600
        %3684 = vmatpush.xpose.msra.mxu0 %v3597
        %3685 = vmatpush.xpose.msra.mxu0 %v3594
        %3686 = vmatpush.xpose.msra.mxu0 %v3591
        %3687 = vmatpush.xpose.msra.mxu0 %v3588
        %3688 = vmatpush.xpose.msra.mxu0 %v3585
        %3689 = vmatmul.f32.gmra.mxu0 %v3513
        %v3690 = vpop.f32.mrf.mxu0
        %v3691 = vadd.f32 %v3475, %v3690
        %3692 = vmatmul.f32.gmra.mxu0 %v3516
        %v3693 = vpop.f32.mrf.mxu0
        %v3694 = vadd.f32 %v3480, %v3693
        %3695 = vmatmul.f32.gmra.mxu0 %v3519
        %v3696 = vpop.f32.mrf.mxu0
        %v3697 = vadd.f32 %v3485, %v3696
        %3698 = vmatmul.f32.gmra.mxu0 %v3522
        %v3699 = vpop.f32.mrf.mxu0
        %v3700 = vadd.f32 %v3490, %v3699
        %3701 = vmatmul.f32.gmra.mxu0 %v3525
        %v3702 = vpop.f32.mrf.mxu0
        %v3703 = vadd.f32 %v3495, %v3702
        %3704 = vmatmul.f32.gmra.mxu0 %v3528
        %v3705 = vpop.f32.mrf.mxu0
        %v3706 = vadd.f32 %v3500, %v3705
        %3707 = vmatmul.f32.gmra.mxu0 %v3531
        %v3708 = vpop.f32.mrf.mxu0
        %v3709 = vadd.f32 %v3505, %v3708
        %3710 = vmatmul.f32.gmra.mxu0 %v3534
        %v3711 = vpop.f32.mrf.mxu0
        %v3712 = vadd.f32 %v3510, %v3711
        %3713 = vdwg.mxu0
        %v3714 = vadd.f32 %v1478, %v3650
        %v3715 = vadd.f32 %v1479, %v3691
        %v3716 = vadd.f32 %v1480, %v3653
        %v3717 = vadd.f32 %v1481, %v3694
        %v3718 = vadd.f32 %v1482, %v3656
        %v3719 = vadd.f32 %v1483, %v3697
        %v3720 = vadd.f32 %v1484, %v3659
        %v3721 = vadd.f32 %v1485, %v3700
        %v3722 = vadd.f32 %v1486, %v3662
        %v3723 = vadd.f32 %v1487, %v3703
        %v3724 = vadd.f32 %v1488, %v3665
        %v3725 = vadd.f32 %v1489, %v3706
        %v3726 = vadd.f32 %v1490, %v3668
        %v3727 = vadd.f32 %v1491, %v3709
        %v3728 = vadd.f32 %v1492, %v3671
        %v3729 = vadd.f32 %v1493, %v3712
        %3730 = vst [vmem:[%s464] sm:$0xff] %v3714
        %3731 = vst [vmem:[%s464 + $0x8] sm:$0xff] %v3715
        %3732 = vst [vmem:[%s464 + $0x10] sm:$0xff] %v3716
        %3733 = vst [vmem:[%s464 + $0x18] sm:$0xff] %v3717
        %3734 = vst [vmem:[%s464 + $0x20] sm:$0xff] %v3718
        %3735 = vst [vmem:[%s464 + $0x28] sm:$0xff] %v3719
        %3736 = vst [vmem:[%s464 + $0x30] sm:$0xff] %v3720
        %3737 = vst [vmem:[%s464 + $0x38] sm:$0xff] %v3721
        %3738 = vst [vmem:[%s464 + $0x40] sm:$0xff] %v3722
        %3739 = vst [vmem:[%s464 + $0x48] sm:$0xff] %v3723
        %3740 = vst [vmem:[%s464 + $0x50] sm:$0xff] %v3724
        %3741 = vst [vmem:[%s464 + $0x58] sm:$0xff] %v3725
        %3742 = vst [vmem:[%s464 + $0x60] sm:$0xff] %v3726
        %3743 = vst [vmem:[%s464 + $0x68] sm:$0xff] %v3727
        %3744 = vst [vmem:[%s464 + $0x70] sm:$0xff] %v3728
        %3745 = vst [vmem:[%s464 + $0x78] sm:$0xff] %v3729
        %s3746 = sand.u32 %s309, 1
        %s3747 = scalar_lea.sflag [#allocation8], %s3746
        %s3748 = sand.u32 %s309, 1
        %s3749 = smul.addr %s3748, 128
        %s3750 = scalar_lea.vmem [#allocation11], %s3749
        // Predicated region
        $region81: #{tpu_custom_call.1} parent=67 // pred_check
          %p3751 = pneg %p319
        $region82: #{tpu_custom_call.1} parent=67 // pred_check_branch
          %3753 = sbr.rel (%p3751) target = $region84
        $region83: #{tpu_custom_call.1} parent=67 // pred_region
          %s3754 = smul.u32 2, %s35
          %3756 = vsyncadd %s3747, 0
          %s3757 = smul.addr %s34, 16
          %s3758 = sadd.s32 %s3754, %s3757
          %s3759 = smul.addr %s3758, 8
          %s3760 = scalar_lea.hbm %s12, %s3759
          %s3761 = sshll.u32 %s3750, 4
          %s3762 = int_to_ptr.vmem [resolvable:$true] %s3761
          %s3763 = sshll.u32 %s3760, 4
          %s3764 = int_to_ptr.hbm [resolvable:$true] %s3763
          %3769 = dma.vmem_to_hbm [thread:$0]  %s3762, 2048, %s3764, %s3747, 256, 256, 16
        $region84: #{tpu_custom_call.1} parent=67 // pred_fallthru
          _
      $region68: #{tpu_custom_call.1} parent=5 // pred_fallthru
        _
      %p3770 = scmp.le.s32.totalorder 2, %s25
      // Predicated region
      $region85: #{tpu_custom_call.1} parent=5 // pred_check
        %p3771 = pneg %p3770
      $region86: #{tpu_custom_call.1} parent=5 // pred_check_branch
        %3773 = sbr.rel (%p3771) target = $region88
      $region87: #{tpu_custom_call.1} parent=5 // pred_region
        %s3774 = ssub.s32 %s25, 2
        // Predicated region
        $region89: #{tpu_custom_call.1} parent=87 // pred_check
          %p3775 = pneg %p325
        $region90: #{tpu_custom_call.1} parent=87 // pred_check_branch
          %3777 = sbr.rel (%p3775) target = $region92
        $region91: #{tpu_custom_call.1} parent=87 // pred_region
          %s3778 = sand.u32 %s310, 1
          %s3779 = scalar_lea.sflag [#allocation8], %s3778
          %s3780 = sand.u32 %s310, 1
          %s3781 = smul.addr %s3780, 128
          %s3782 = scalar_lea.vmem [#allocation11], %s3781
          %3784 = dma.done %s3779, 2048
        $region92: #{tpu_custom_call.1} parent=87 // pred_fallthru
          _
      $region88: #{tpu_custom_call.1} parent=5 // pred_fallthru
        _
    $region6: #{tpu_custom_call.1} parent=1 // loop_footer
      %s29 = sadd.s32 1, %s25
    $region7: #{tpu_custom_call.1} parent=1 // loop_footer_branch
      %24 = sbr.rel target = $region3
    $region8: #{tpu_custom_call.1} parent=1 // loop_exit
      _
    %3785 = vsyncpa [#allocation7], 1
    %s3786 = scalar_lea.sflag [#allocation7], 1
    %3787 = vsyncpa %s3786, 1
    %3788 = vsyncpa [#allocation10], 1
    %3789 = vsyncpa [#allocation8], 1
    %s3790 = scalar_lea.sflag [#allocation8], 1
    %3791 = vsyncpa %s3790, 1

</llo_original>
